<compile_context>
chip_gen: v6e
topology: v6e:2x2x1
jax: 0.10.0
libtpu: 0.0.40
codegen_flags: <defaults>
</compile_context>

<pallas_src>
import functools

import jax
import jax.numpy as jnp
from jax.experimental import pallas as pl
from jax.experimental.pallas import tpu as pltpu


def _layer_norm(v, w, b, eps=1e-5):
    # v: (rows, D) f32 ; w, b: (1, D) f32
    mu = jnp.mean(v, axis=-1, keepdims=True)
    c = v - mu
    var = jnp.mean(c * c, axis=-1, keepdims=True)
    return c * jax.lax.rsqrt(var + eps) * w + b


def _text_encoder_kernel(
    sel_ref,                       # (BB, S) f32 one-hot EOT selector
    prompts_ref, pos_ref,          # (BB, S, D), (S, D)
    ln1_w_ref, ln1_b_ref,          # (1, 1, D) each (layer-sliced)
    w_qkv_ref, b_qkv_ref,          # (1, D, 3D), (1, 1, 3D)
    w_o_ref, b_o_ref,              # (1, D, D),  (1, 1, D)
    ln2_w_ref, ln2_b_ref,          # (1, 1, D) each
    w_fc_ref, b_fc_ref,            # (1, D, 4D), (1, 1, 4D)
    w_pr_ref, b_pr_ref,            # (1, 4D, D), (1, 1, D)
    lnf_w_ref, lnf_b_ref,          # (1, D) each
    tproj_ref,                     # (D, P)
    o_ref,                         # (BB, P)
    x_sc,                          # VMEM scratch (BB*S, D) f32: residual stream carry
    *, num_heads):
    l = pl.program_id(1)
    n_layers = pl.num_programs(1)

    BB, S, D = prompts_ref.shape
    head_dim = D // num_heads
    scale = 1.0 / (head_dim ** 0.5)
    wdt = w_qkv_ref.dtype          # matmul compute dtype (bf16)

    # ---- first layer for this batch block: init residual stream = prompts + pos_emb
    @pl.when(l == 0)
    def _():
        pos = pos_ref[...].astype(jnp.float32)
        for bi in range(BB):       # static unroll; stores at static sublane offsets
            x_sc[bi * S:(bi + 1) * S, :] = prompts_ref[bi].astype(jnp.float32) + pos

    x = x_sc[...]                  # (BB*S, D) f32, whole batch block flat

    # ---------------- attention block ----------------
    ln1_out = _layer_norm(x, ln1_w_ref[0], ln1_b_ref[0])
    qkv = jnp.dot(ln1_out.astype(wdt), w_qkv_ref[0],
                  preferred_element_type=jnp.float32) + b_qkv_ref[0]     # (BB*S, 3D)

    # causal mask (built once per layer, reused across batch rows / heads)
    rows = jax.lax.broadcasted_iota(jnp.int32, (S, S), 0)
    cols = jax.lax.broadcasted_iota(jnp.int32, (S, S), 1)
    visible = cols <= rows

    attn_rows = []
    for bi in range(BB):
        qkv_b = qkv[bi * S:(bi + 1) * S, :]                               # (S, 3D)
        head_outs = []
        for hi in range(num_heads):
            qh = qkv_b[:, hi * head_dim:(hi + 1) * head_dim]
            kh = qkv_b[:, D + hi * head_dim:D + (hi + 1) * head_dim]
            vh = qkv_b[:, 2 * D + hi * head_dim:2 * D + (hi + 1) * head_dim]
            s = jax.lax.dot_general(qh, kh, (((1,), (1,)), ((), ())),
                                    preferred_element_type=jnp.float32) * scale
            s = jnp.where(visible, s, -1e30)
            m = jnp.max(s, axis=-1, keepdims=True)
            p = jnp.exp(s - m)
            attn = p / jnp.sum(p, axis=-1, keepdims=True)
            head_outs.append(jnp.dot(attn, vh, preferred_element_type=jnp.float32))
        attn_rows.append(jnp.concatenate(head_outs, axis=-1))            # (S, D)
    attn_cat = jnp.concatenate(attn_rows, axis=0)                        # (BB*S, D)

    attn_out = jnp.dot(attn_cat.astype(wdt), w_o_ref[0],
                       preferred_element_type=jnp.float32) + b_o_ref[0]
    x = x + attn_out

    # ---------------- MLP block ----------------
    ln2_out = _layer_norm(x, ln2_w_ref[0], ln2_b_ref[0])
    f = jnp.dot(ln2_out.astype(wdt), w_fc_ref[0],
                preferred_element_type=jnp.float32) + b_fc_ref[0]
    f = f * (1.0 / (1.0 + jnp.exp(-1.702 * f)))                          # QuickGELU
    mlp_out = jnp.dot(f.astype(wdt), w_pr_ref[0],
                      preferred_element_type=jnp.float32) + b_pr_ref[0]
    x = x + mlp_out

    x_sc[...] = x                   # carry residual stream to next layer

    # ---------------- final stage (last layer only) ----------------
    @pl.when(l == n_layers - 1)
    def _():
        sel = sel_ref[...]                                               # (BB, S)
        pooled = []
        for bi in range(BB):
            # one-hot select of the EOT row (exact; avoids dynamic sublane slicing)
            pooled.append(jnp.dot(sel[bi:bi + 1, :], x[bi * S:(bi + 1) * S, :],
                                  preferred_element_type=jnp.float32))   # (1, D)
        pooled = jnp.concatenate(pooled, axis=0)                         # (BB, D)
        pooled = _layer_norm(pooled, lnf_w_ref[...], lnf_b_ref[...])
        out = jnp.dot(pooled.astype(tproj_ref.dtype), tproj_ref[...],
                      preferred_element_type=jnp.float32)                # (BB, P)
        o_ref[...] = out.astype(o_ref.dtype)


def text_encoder_forward(prompts, tokenized_prompts, params, *, num_heads,
                         batch_block=None):
    """prompts: (B, S, D) f32; tokenized_prompts: (B, S) int; returns (B, P)."""
    B, S, D = prompts.shape
    L = params["w_qkv"].shape[0]
    P = params["text_proj"].shape[1]
    BB = B if batch_block is None else batch_block
    assert B % BB == 0, "batch must divide evenly into batch blocks"

    # x[arange(B), tokenized_prompts.argmax(-1)]: EOT positions -> one-hot selectors
    # computed host-side (trivial) and consumed via an MXU gather inside the kernel.
    eot_idx = jnp.argmax(tokenized_prompts, axis=-1)
    sel = jax.nn.one_hot(eot_idx, S, dtype=jnp.float32)                   # (B, S)

    kernel = functools.partial(_text_encoder_kernel, num_heads=num_heads)

    def wspec(shape):   # per-layer tensor (L, ...) -> block (1, ...) indexed by layer axis
        nrest = len(shape) - 1
        return pl.BlockSpec((1,) + tuple(shape[1:]),
                            lambda bi, li, n=nrest: (li,) + (0,) * n)

    def cspec(shape):   # shared tensor, full-array block, VMEM-resident across the grid
        n = len(shape)
        return pl.BlockSpec(tuple(shape), lambda bi, li, n=n: (0,) * n)

    in_specs = [
        pl.BlockSpec((BB, S), lambda bi, li: (bi, 0)),          # EOT one-hot selectors
        pl.BlockSpec((BB, S, D), lambda bi, li: (bi, 0, 0)),    # prompts (per batch block)
        cspec(params["pos_emb"].shape),
        wspec(params["ln1_w"].shape), wspec(params["ln1_b"].shape),
        wspec(params["w_qkv"].shape), wspec(params["b_qkv"].shape),
        wspec(params["w_o"].shape),   wspec(params["b_o"].shape),
        wspec(params["ln2_w"].shape), wspec(params["ln2_b"].shape),
        wspec(params["w_fc"].shape),  wspec(params["b_fc"].shape),
        wspec(params["w_pr"].shape),  wspec(params["b_pr"].shape),
        cspec(params["lnf_w"].shape), cspec(params["lnf_b"].shape),
        cspec(params["text_proj"].shape),
    ]
    out_spec = pl.BlockSpec((BB, P), lambda bi, li: (bi, 0))

    # Advisory cost estimate so XLA does not treat the fused call as opaque.
    H = num_heads
    flops = (2 * B * L * S * D * (3 * D)              # qkv proj
             + 2 * B * L * H * S * S * (D // H) * 2   # scores + attn*V
             + 2 * B * L * S * D * D                  # out proj
             + 2 * B * L * S * D * (4 * D) * 2        # mlp fc + proj
             + 2 * B * D * P)                         # text projection
    transcendentals = B * L * (H * S * S + S * 4 * D)
    bytes_accessed = int((B // BB) * sum(int(v.size) * v.dtype.itemsize
                                         for v in params.values())
                         + int(prompts.size) * prompts.dtype.itemsize
                         + B * P * prompts.dtype.itemsize)
    cost = pl.CostEstimate(flops=int(flops), transcendentals=int(transcendentals),
                           bytes_accessed=bytes_accessed)

    out = pl.pallas_call(
        kernel,
        out_shape=jax.ShapeDtypeStruct((B, P), prompts.dtype),
        grid_spec=pltpu.PrefetchScalarGridSpec(
            num_scalar_prefetch=0,
            grid=(B // BB, L),
            in_specs=in_specs,
            out_specs=out_spec,
            scratch_shapes=[pltpu.VMEM((BB * S, D), jnp.float32)],
        ),
        compiler_params=pltpu.CompilerParams(
            dimension_semantics=("parallel", "arbitrary"),
            vmem_limit_bytes=64 * 1024 * 1024,
        ),
        cost_estimate=cost,
    )(sel, prompts, params["pos_emb"],
      params["ln1_w"], params["ln1_b"],
      params["w_qkv"], params["b_qkv"], params["w_o"], params["b_o"],
      params["ln2_w"], params["ln2_b"],
      params["w_fc"], params["b_fc"], params["w_pr"], params["b_pr"],
      params["lnf_w"], params["lnf_b"], params["text_proj"])
    return out


def init_text_encoder_params(key, *, seq_len, width, layers, proj_dim,
                             weight_dtype=jnp.bfloat16):
    S, D, L, P = seq_len, width, layers, proj_dim
    ks = jax.random.split(key, 12)

    def nrm(k, shape, scale, dtype=jnp.float32):
        return (jax.random.normal(k, shape, jnp.float32) * scale).astype(dtype)

    return {
        "pos_emb": nrm(ks[0], (S, D), 0.01),
        "ln1_w": 1.0 + nrm(ks[1], (L, 1, D), 0.05),
        "ln1_b": nrm(ks[2], (L, 1, D), 0.05),
        "w_qkv": nrm(ks[3], (L, D, 3 * D), D ** -0.5, weight_dtype),
        "b_qkv": nrm(ks[4], (L, 1, 3 * D), 0.02),
        "w_o":   nrm(ks[5], (L, D, D), D ** -0.5, weight_dtype),
        "b_o":   nrm(ks[6], (L, 1, D), 0.02),
        "ln2_w": 1.0 + nrm(ks[7], (L, 1, D), 0.05),
        "ln2_b": nrm(ks[8], (L, 1, D), 0.05),
        "w_fc":  nrm(ks[9], (L, D, 4 * D), D ** -0.5, weight_dtype),
        "b_fc":  nrm(ks[10], (L, 1, 4 * D), 0.02),
        "w_pr":  nrm(ks[11], (L, 4 * D, D), (4 * D) ** -0.5, weight_dtype),
        "b_pr":  jnp.zeros((L, 1, D), jnp.float32),
        "lnf_w": jnp.ones((1, D), jnp.float32),
        "lnf_b": jnp.zeros((1, D), jnp.float32),
        "text_proj": nrm(ks[0], (D, P), D ** -0.5, weight_dtype),
    }


def text_encoder_reference(prompts, eot_idx, p, *, num_heads):
    """Pure-JAX reference mirroring the kernel's cast points (bf16 matmuls, f32 accum)."""
    f32 = jnp.float32
    x = prompts.astype(f32) + p["pos_emb"].astype(f32)
    B, S, D = x.shape
    hd = D // num_heads
    scale = 1.0 / (hd ** 0.5)
    L = p["w_qkv"].shape[0]

    def ln(v, w, b, eps=1e-5):
        mu = jnp.mean(v, -1, keepdims=True)
        c = v - mu
        var = jnp.mean(c * c, -1, keepdims=True)
        return c * jax.lax.rsqrt(var + eps) * w + b

    def mm(a, w):
        return jnp.dot(a.astype(w.dtype), w, preferred_element_type=f32)

    rows = jnp.arange(S)[:, None]
    cols = jnp.arange(S)[None, :]
    visible = cols <= rows

    for l in range(L):
        h = ln(x, p["ln1_w"][l].astype(f32), p["ln1_b"][l].astype(f32))
        qkv = mm(h, p["w_qkv"][l]) + p["b_qkv"][l].astype(f32)
        q, k, v = qkv[..., :D], qkv[..., D:2 * D], qkv[..., 2 * D:]
        outs = []
        for hi in range(num_heads):
            sl = slice(hi * hd, (hi + 1) * hd)
            qh, kh, vh = q[..., sl], k[..., sl], v[..., sl]
            s = jnp.einsum("bqd,bkd->bqk", qh, kh, preferred_element_type=f32) * scale
            s = jnp.where(visible, s, -1e30)
            m = jnp.max(s, -1, keepdims=True)
            pr = jnp.exp(s - m)
            a = pr / jnp.sum(pr, -1, keepdims=True)
            outs.append(jnp.einsum("bqk,bkd->bqd", a, vh, preferred_element_type=f32))
        att = jnp.concatenate(outs, -1)
        x = x + mm(att, p["w_o"][l]) + p["b_o"][l].astype(f32)

        h2 = ln(x, p["ln2_w"][l].astype(f32), p["ln2_b"][l].astype(f32))
        f = mm(h2, p["w_fc"][l]) + p["b_fc"][l].astype(f32)
        f = f * (1.0 / (1.0 + jnp.exp(-1.702 * f)))
        x = x + mm(f, p["w_pr"][l]) + p["b_pr"][l].astype(f32)

    x = ln(x, p["lnf_w"].astype(f32), p["lnf_b"].astype(f32))
    pooled = x[jnp.arange(B), eot_idx]
    return mm(pooled, p["text_proj"])


if __name__ == "__main__":
    key = jax.random.PRNGKey(0)
    k_prompt, k_param = jax.random.split(key)

    # Small shapes, lane-friendly: batch=2 prompts, seq=8, width=128, 2 heads, 2 layers.
    batch, seq_len, width, heads, layers, proj_dim = 2, 8, 128, 2, 2, 128

    prompts = jax.random.normal(k_prompt, (batch, seq_len, width), jnp.float32) * 0.02

    # tokenized prompts: EOT (largest token id) at a known position per row
    tok = jnp.full((batch, seq_len), 5, dtype=jnp.int32)
    eot_positions = jnp.array([seq_len - 1, seq_len - 3], dtype=jnp.int32)
    tok = tok.at[jnp.arange(batch), eot_positions].set(99)

    params = init_text_encoder_params(k_param, seq_len=seq_len, width=width,
                                      layers=layers, proj_dim=proj_dim)

    out = text_encoder_forward(prompts, tok, params, num_heads=heads)
    out = jax.block_until_ready(out)

    ref = text_encoder_reference(prompts, jnp.argmax(tok, axis=-1), params,
                                 num_heads=heads)
    assert out.shape == (batch, proj_dim)
    max_err = float(jnp.max(jnp.abs(out - ref)))
    assert jnp.allclose(out, ref, atol=1e-2, rtol=1e-2), f"max abs err = {max_err}"

    print("KERNEL_OK")
</pallas_src>

<mosaic_0001>
module attributes {stable_mosaic.version = 11 : i64} {
  func.func @_text_encoder_kernel(%arg0: i32, %arg1: i32, %arg2: memref<2x8xf32, #tpu.memory_space<vmem>>, %arg3: memref<2x8x128xf32, #tpu.memory_space<vmem>>, %arg4: memref<8x128xf32, #tpu.memory_space<vmem>>, %arg5: memref<1x1x128xf32, #tpu.memory_space<vmem>>, %arg6: memref<1x1x128xf32, #tpu.memory_space<vmem>>, %arg7: memref<1x128x384xbf16, #tpu.memory_space<vmem>>, %arg8: memref<1x1x384xf32, #tpu.memory_space<vmem>>, %arg9: memref<1x128x128xbf16, #tpu.memory_space<vmem>>, %arg10: memref<1x1x128xf32, #tpu.memory_space<vmem>>, %arg11: memref<1x1x128xf32, #tpu.memory_space<vmem>>, %arg12: memref<1x1x128xf32, #tpu.memory_space<vmem>>, %arg13: memref<1x128x512xbf16, #tpu.memory_space<vmem>>, %arg14: memref<1x1x512xf32, #tpu.memory_space<vmem>>, %arg15: memref<1x512x128xbf16, #tpu.memory_space<vmem>>, %arg16: memref<1x1x128xf32, #tpu.memory_space<vmem>>, %arg17: memref<1x128xf32, #tpu.memory_space<vmem>>, %arg18: memref<1x128xf32, #tpu.memory_space<vmem>>, %arg19: memref<128x128xbf16, #tpu.memory_space<vmem>>, %arg20: memref<2x128xf32, #tpu.memory_space<vmem>>, %arg21: memref<16x128xf32, #tpu.memory_space<vmem>>) attributes {dimension_semantics = [#tpu.dimension_semantics<parallel>, #tpu.dimension_semantics<arbitrary>], iteration_bounds = array<i64: 1, 2>, scalar_prefetch = 0 : i64, scratch_operands = 1 : i64, tpu.core_type = #tpu.core_type<tc>, window_params = [{transform_indices = @transform_0, window_bounds = array<i64: 2, 8>}, {transform_indices = @transform_1, window_bounds = array<i64: 2, 8, 128>}, {pipeline_mode = #tpu.pipeline_mode<synchronous>, transform_indices = @transform_2, window_bounds = array<i64: 8, 128>}, {transform_indices = @transform_3, window_bounds = array<i64: 1, 1, 128>}, {transform_indices = @transform_4, window_bounds = array<i64: 1, 1, 128>}, {transform_indices = @transform_5, window_bounds = array<i64: 1, 128, 384>}, {transform_indices = @transform_6, window_bounds = array<i64: 1, 1, 384>}, {transform_indices = @transform_7, window_bounds = array<i64: 1, 128, 128>}, {transform_indices = @transform_8, window_bounds = array<i64: 1, 1, 128>}, {transform_indices = @transform_9, window_bounds = array<i64: 1, 1, 128>}, {transform_indices = @transform_10, window_bounds = array<i64: 1, 1, 128>}, {transform_indices = @transform_11, window_bounds = array<i64: 1, 128, 512>}, {transform_indices = @transform_12, window_bounds = array<i64: 1, 1, 512>}, {transform_indices = @transform_13, window_bounds = array<i64: 1, 512, 128>}, {transform_indices = @transform_14, window_bounds = array<i64: 1, 1, 128>}, {pipeline_mode = #tpu.pipeline_mode<synchronous>, transform_indices = @transform_15, window_bounds = array<i64: 1, 128>}, {pipeline_mode = #tpu.pipeline_mode<synchronous>, transform_indices = @transform_16, window_bounds = array<i64: 1, 128>}, {pipeline_mode = #tpu.pipeline_mode<synchronous>, transform_indices = @transform_17, window_bounds = array<i64: 128, 128>}, {transform_indices = @transform_18, window_bounds = array<i64: 2, 128>}]} {
    %c0_i32 = arith.constant 0 : i32
    %0 = arith.cmpi eq, %arg1, %c0_i32 : i32
    %1 = arith.extui %0 : i1 to i32
    %c0_i32_0 = arith.constant 0 : i32
    %2 = arith.cmpi ne, %1, %c0_i32_0 : i32
    scf.if %2 {
      %c0_81 = arith.constant 0 : index
      %c0_82 = arith.constant 0 : index
      %178 = vector.load %arg4[%c0_81, %c0_82] : memref<8x128xf32, #tpu.memory_space<vmem>>, vector<8x128xf32>
      %c0_83 = arith.constant 0 : index
      %c0_84 = arith.constant 0 : index
      %c0_85 = arith.constant 0 : index
      %179 = vector.load %arg3[%c0_83, %c0_84, %c0_85] : memref<2x8x128xf32, #tpu.memory_space<vmem>>, vector<1x8x128xf32>
      %180 = vector.shape_cast %179 : vector<1x8x128xf32> to vector<8x128xf32>
      %181 = arith.addf %180, %178 : vector<8x128xf32>
      %c0_86 = arith.constant 0 : index
      %c0_87 = arith.constant 0 : index
      %182 = vector.load %arg21[%c0_86, %c0_87] : memref<16x128xf32, #tpu.memory_space<vmem>>, vector<8x128xf32>
      tpu.vector_store %arg21[%c0_86, %c0_87], %181 {strides = array<i32>} : memref<16x128xf32, #tpu.memory_space<vmem>>, vector<8x128xf32>,
      %c1 = arith.constant 1 : index
      %c0_88 = arith.constant 0 : index
      %c0_89 = arith.constant 0 : index
      %183 = vector.load %arg3[%c1, %c0_88, %c0_89] : memref<2x8x128xf32, #tpu.memory_space<vmem>>, vector<1x8x128xf32>
      %184 = vector.shape_cast %183 : vector<1x8x128xf32> to vector<8x128xf32>
      %185 = arith.addf %184, %178 : vector<8x128xf32>
      %c8 = arith.constant 8 : index
      %c0_90 = arith.constant 0 : index
      %186 = vector.load %arg21[%c8, %c0_90] : memref<16x128xf32, #tpu.memory_space<vmem>>, vector<8x128xf32>
      tpu.vector_store %arg21[%c8, %c0_90], %185 {strides = array<i32>} : memref<16x128xf32, #tpu.memory_space<vmem>>, vector<8x128xf32>,
    } else {
    }
    %c0 = arith.constant 0 : index
    %c0_1 = arith.constant 0 : index
    %3 = vector.load %arg21[%c0, %c0_1] : memref<16x128xf32, #tpu.memory_space<vmem>>, vector<16x128xf32>
    %c0_2 = arith.constant 0 : index
    %c0_3 = arith.constant 0 : index
    %c0_4 = arith.constant 0 : index
    %4 = vector.load %arg5[%c0_2, %c0_3, %c0_4] : memref<1x1x128xf32, #tpu.memory_space<vmem>>, vector<1x1x128xf32>
    %5 = vector.shape_cast %4 : vector<1x1x128xf32> to vector<1x128xf32>
    %c0_5 = arith.constant 0 : index
    %c0_6 = arith.constant 0 : index
    %c0_7 = arith.constant 0 : index
    %6 = vector.load %arg6[%c0_5, %c0_6, %c0_7] : memref<1x1x128xf32, #tpu.memory_space<vmem>>, vector<1x1x128xf32>
    %7 = vector.shape_cast %6 : vector<1x1x128xf32> to vector<1x128xf32>
    %cst = arith.constant dense<0.000000e+00> : vector<16xf32>
    %8 = vector.multi_reduction <add>, %3, %cst [1] : vector<16x128xf32> to vector<16xf32>
    %9 = vector.shape_cast %8 : vector<16xf32> to vector<16x1xf32>
    %cst_8 = arith.constant 1.280000e+02 : f32
    %10 = vector.broadcast %cst_8 : f32 to vector<16x1xf32>
    %11 = arith.divf %9, %10 : vector<16x1xf32>
    %12 = vector.broadcast %11 : vector<16x1xf32> to vector<16x128xf32>
    %13 = arith.subf %3, %12 : vector<16x128xf32>
    %14 = arith.mulf %13, %13 : vector<16x128xf32>
    %cst_9 = arith.constant dense<0.000000e+00> : vector<16xf32>
    %15 = vector.multi_reduction <add>, %14, %cst_9 [1] : vector<16x128xf32> to vector<16xf32>
    %16 = vector.shape_cast %15 : vector<16xf32> to vector<16x1xf32>
    %cst_10 = arith.constant 1.280000e+02 : f32
    %17 = vector.broadcast %cst_10 : f32 to vector<16x1xf32>
    %18 = arith.divf %16, %17 : vector<16x1xf32>
    %cst_11 = arith.constant 9.99999974E-6 : f32
    %19 = vector.broadcast %cst_11 : f32 to vector<16x1xf32>
    %20 = arith.addf %18, %19 : vector<16x1xf32>
    %21 = math.rsqrt %20 : vector<16x1xf32>
    %22 = vector.broadcast %21 : vector<16x1xf32> to vector<16x128xf32>
    %23 = arith.mulf %13, %22 : vector<16x128xf32>
    %24 = vector.broadcast %5 : vector<1x128xf32> to vector<16x128xf32>
    %25 = arith.mulf %23, %24 : vector<16x128xf32>
    %26 = vector.broadcast %7 : vector<1x128xf32> to vector<16x128xf32>
    %27 = arith.addf %25, %26 : vector<16x128xf32>
    %28 = arith.truncf %27 : vector<16x128xf32> to vector<16x128xbf16>
    %c0_12 = arith.constant 0 : index
    %c0_13 = arith.constant 0 : index
    %c0_14 = arith.constant 0 : index
    %29 = vector.load %arg7[%c0_12, %c0_13, %c0_14] : memref<1x128x384xbf16, #tpu.memory_space<vmem>>, vector<1x128x384xbf16>
    %30 = vector.shape_cast %29 : vector<1x128x384xbf16> to vector<128x384xbf16>
    %cst_15 = arith.constant dense<0.000000e+00> : vector<16x384xf32>
    %31 = tpu.matmul %28, %30, %cst_15 {dimension_numbers = #tpu.dot_dimension_numbers<[1], [0], [0], [1], [0, 0, 1, 1], [], []>} : vector<16x128xbf16>, vector<128x384xbf16>, vector<16x384xf32> -> vector<16x384xf32>
    %c0_16 = arith.constant 0 : index
    %c0_17 = arith.constant 0 : index
    %c0_18 = arith.constant 0 : index
    %32 = vector.load %arg8[%c0_16, %c0_17, %c0_18] : memref<1x1x384xf32, #tpu.memory_space<vmem>>, vector<1x1x384xf32>
    %33 = vector.shape_cast %32 : vector<1x1x384xf32> to vector<1x384xf32>
    %34 = vector.broadcast %33 : vector<1x384xf32> to vector<16x384xf32>
    %35 = arith.addf %31, %34 : vector<16x384xf32>
    %36 = tpu.iota {dimensions = array<i32: 0>} : vector<8x8xi32>
    %37 = tpu.iota {dimensions = array<i32: 1>} : vector<8x8xi32>
    %38 = arith.cmpi sle, %37, %36 : vector<8x8xi32>
    %39 = vector.extract_strided_slice %35 {offsets = [0, 0], sizes = [8, 384], strides = [1, 1]} : vector<16x384xf32> to vector<8x384xf32>
    %40 = vector.extract_strided_slice %39 {offsets = [0, 0], sizes = [8, 64], strides = [1, 1]} : vector<8x384xf32> to vector<8x64xf32>
    %41 = vector.extract_strided_slice %39 {offsets = [0, 128], sizes = [8, 64], strides = [1, 1]} : vector<8x384xf32> to vector<8x64xf32>
    %42 = vector.extract_strided_slice %39 {offsets = [0, 256], sizes = [8, 64], strides = [1, 1]} : vector<8x384xf32> to vector<8x64xf32>
    %cst_19 = arith.constant dense<0.000000e+00> : vector<8x8xf32>
    %43 = tpu.matmul %40, %41, %cst_19 {dimension_numbers = #tpu.dot_dimension_numbers<[1], [1], [0], [0], [0, 0, 1, 0], [], []>} : vector<8x64xf32>, vector<8x64xf32>, vector<8x8xf32> -> vector<8x8xf32>
    %cst_20 = arith.constant 1.250000e-01 : f32
    %44 = vector.broadcast %cst_20 : f32 to vector<8x8xf32>
    %45 = arith.mulf %43, %44 : vector<8x8xf32>
    %cst_21 = arith.constant -1.000000e+30 : f32
    %46 = vector.broadcast %cst_21 : f32 to vector<8x8xf32>
    %47 = arith.select %38, %45, %46 : vector<8x8xi1>, vector<8x8xf32>
    %cst_22 = arith.constant dense<0xFF800000> : vector<8xf32>
    %48 = vector.multi_reduction <maximumf>, %47, %cst_22 [1] : vector<8x8xf32> to vector<8xf32>
    %49 = vector.shape_cast %48 : vector<8xf32> to vector<8x1xf32>
    %50 = vector.broadcast %49 : vector<8x1xf32> to vector<8x8xf32>
    %51 = arith.subf %47, %50 : vector<8x8xf32>
    %52 = math.exp %51 : vector<8x8xf32>
    %cst_23 = arith.constant dense<0.000000e+00> : vector<8xf32>
    %53 = vector.multi_reduction <add>, %52, %cst_23 [1] : vector<8x8xf32> to vector<8xf32>
    %54 = vector.shape_cast %53 : vector<8xf32> to vector<8x1xf32>
    %55 = vector.broadcast %54 : vector<8x1xf32> to vector<8x8xf32>
    %56 = arith.divf %52, %55 : vector<8x8xf32>
    %cst_24 = arith.constant dense<0.000000e+00> : vector<8x64xf32>
    %57 = tpu.matmul %56, %42, %cst_24 {dimension_numbers = #tpu.dot_dimension_numbers<[1], [0], [0], [1], [0, 0, 1, 1], [], []>} : vector<8x8xf32>, vector<8x64xf32>, vector<8x64xf32> -> vector<8x64xf32>
    %58 = vector.extract_strided_slice %39 {offsets = [0, 64], sizes = [8, 64], strides = [1, 1]} : vector<8x384xf32> to vector<8x64xf32>
    %59 = vector.extract_strided_slice %39 {offsets = [0, 192], sizes = [8, 64], strides = [1, 1]} : vector<8x384xf32> to vector<8x64xf32>
    %60 = vector.extract_strided_slice %39 {offsets = [0, 320], sizes = [8, 64], strides = [1, 1]} : vector<8x384xf32> to vector<8x64xf32>
    %cst_25 = arith.constant dense<0.000000e+00> : vector<8x8xf32>
    %61 = tpu.matmul %58, %59, %cst_25 {dimension_numbers = #tpu.dot_dimension_numbers<[1], [1], [0], [0], [0, 0, 1, 0], [], []>} : vector<8x64xf32>, vector<8x64xf32>, vector<8x8xf32> -> vector<8x8xf32>
    %cst_26 = arith.constant 1.250000e-01 : f32
    %62 = vector.broadcast %cst_26 : f32 to vector<8x8xf32>
    %63 = arith.mulf %61, %62 : vector<8x8xf32>
    %cst_27 = arith.constant -1.000000e+30 : f32
    %64 = vector.broadcast %cst_27 : f32 to vector<8x8xf32>
    %65 = arith.select %38, %63, %64 : vector<8x8xi1>, vector<8x8xf32>
    %cst_28 = arith.constant dense<0xFF800000> : vector<8xf32>
    %66 = vector.multi_reduction <maximumf>, %65, %cst_28 [1] : vector<8x8xf32> to vector<8xf32>
    %67 = vector.shape_cast %66 : vector<8xf32> to vector<8x1xf32>
    %68 = vector.broadcast %67 : vector<8x1xf32> to vector<8x8xf32>
    %69 = arith.subf %65, %68 : vector<8x8xf32>
    %70 = math.exp %69 : vector<8x8xf32>
    %cst_29 = arith.constant dense<0.000000e+00> : vector<8xf32>
    %71 = vector.multi_reduction <add>, %70, %cst_29 [1] : vector<8x8xf32> to vector<8xf32>
    %72 = vector.shape_cast %71 : vector<8xf32> to vector<8x1xf32>
    %73 = vector.broadcast %72 : vector<8x1xf32> to vector<8x8xf32>
    %74 = arith.divf %70, %73 : vector<8x8xf32>
    %cst_30 = arith.constant dense<0.000000e+00> : vector<8x64xf32>
    %75 = tpu.matmul %74, %60, %cst_30 {dimension_numbers = #tpu.dot_dimension_numbers<[1], [0], [0], [1], [0, 0, 1, 1], [], []>} : vector<8x8xf32>, vector<8x64xf32>, vector<8x64xf32> -> vector<8x64xf32>
    %76 = tpu.concatenate %57, %75 in 1 : vector<8x64xf32>, vector<8x64xf32> -> vector<8x128xf32>
    %77 = vector.extract_strided_slice %35 {offsets = [8, 0], sizes = [8, 384], strides = [1, 1]} : vector<16x384xf32> to vector<8x384xf32>
    %78 = vector.extract_strided_slice %77 {offsets = [0, 0], sizes = [8, 64], strides = [1, 1]} : vector<8x384xf32> to vector<8x64xf32>
    %79 = vector.extract_strided_slice %77 {offsets = [0, 128], sizes = [8, 64], strides = [1, 1]} : vector<8x384xf32> to vector<8x64xf32>
    %80 = vector.extract_strided_slice %77 {offsets = [0, 256], sizes = [8, 64], strides = [1, 1]} : vector<8x384xf32> to vector<8x64xf32>
    %cst_31 = arith.constant dense<0.000000e+00> : vector<8x8xf32>
    %81 = tpu.matmul %78, %79, %cst_31 {dimension_numbers = #tpu.dot_dimension_numbers<[1], [1], [0], [0], [0, 0, 1, 0], [], []>} : vector<8x64xf32>, vector<8x64xf32>, vector<8x8xf32> -> vector<8x8xf32>
    %cst_32 = arith.constant 1.250000e-01 : f32
    %82 = vector.broadcast %cst_32 : f32 to vector<8x8xf32>
    %83 = arith.mulf %81, %82 : vector<8x8xf32>
    %cst_33 = arith.constant -1.000000e+30 : f32
    %84 = vector.broadcast %cst_33 : f32 to vector<8x8xf32>
    %85 = arith.select %38, %83, %84 : vector<8x8xi1>, vector<8x8xf32>
    %cst_34 = arith.constant dense<0xFF800000> : vector<8xf32>
    %86 = vector.multi_reduction <maximumf>, %85, %cst_34 [1] : vector<8x8xf32> to vector<8xf32>
    %87 = vector.shape_cast %86 : vector<8xf32> to vector<8x1xf32>
    %88 = vector.broadcast %87 : vector<8x1xf32> to vector<8x8xf32>
    %89 = arith.subf %85, %88 : vector<8x8xf32>
    %90 = math.exp %89 : vector<8x8xf32>
    %cst_35 = arith.constant dense<0.000000e+00> : vector<8xf32>
    %91 = vector.multi_reduction <add>, %90, %cst_35 [1] : vector<8x8xf32> to vector<8xf32>
    %92 = vector.shape_cast %91 : vector<8xf32> to vector<8x1xf32>
    %93 = vector.broadcast %92 : vector<8x1xf32> to vector<8x8xf32>
    %94 = arith.divf %90, %93 : vector<8x8xf32>
    %cst_36 = arith.constant dense<0.000000e+00> : vector<8x64xf32>
    %95 = tpu.matmul %94, %80, %cst_36 {dimension_numbers = #tpu.dot_dimension_numbers<[1], [0], [0], [1], [0, 0, 1, 1], [], []>} : vector<8x8xf32>, vector<8x64xf32>, vector<8x64xf32> -> vector<8x64xf32>
    %96 = vector.extract_strided_slice %77 {offsets = [0, 64], sizes = [8, 64], strides = [1, 1]} : vector<8x384xf32> to vector<8x64xf32>
    %97 = vector.extract_strided_slice %77 {offsets = [0, 192], sizes = [8, 64], strides = [1, 1]} : vector<8x384xf32> to vector<8x64xf32>
    %98 = vector.extract_strided_slice %77 {offsets = [0, 320], sizes = [8, 64], strides = [1, 1]} : vector<8x384xf32> to vector<8x64xf32>
    %cst_37 = arith.constant dense<0.000000e+00> : vector<8x8xf32>
    %99 = tpu.matmul %96, %97, %cst_37 {dimension_numbers = #tpu.dot_dimension_numbers<[1], [1], [0], [0], [0, 0, 1, 0], [], []>} : vector<8x64xf32>, vector<8x64xf32>, vector<8x8xf32> -> vector<8x8xf32>
    %cst_38 = arith.constant 1.250000e-01 : f32
    %100 = vector.broadcast %cst_38 : f32 to vector<8x8xf32>
    %101 = arith.mulf %99, %100 : vector<8x8xf32>
    %cst_39 = arith.constant -1.000000e+30 : f32
    %102 = vector.broadcast %cst_39 : f32 to vector<8x8xf32>
    %103 = arith.select %38, %101, %102 : vector<8x8xi1>, vector<8x8xf32>
    %cst_40 = arith.constant dense<0xFF800000> : vector<8xf32>
    %104 = vector.multi_reduction <maximumf>, %103, %cst_40 [1] : vector<8x8xf32> to vector<8xf32>
    %105 = vector.shape_cast %104 : vector<8xf32> to vector<8x1xf32>
    %106 = vector.broadcast %105 : vector<8x1xf32> to vector<8x8xf32>
    %107 = arith.subf %103, %106 : vector<8x8xf32>
    %108 = math.exp %107 : vector<8x8xf32>
    %cst_41 = arith.constant dense<0.000000e+00> : vector<8xf32>
    %109 = vector.multi_reduction <add>, %108, %cst_41 [1] : vector<8x8xf32> to vector<8xf32>
    %110 = vector.shape_cast %109 : vector<8xf32> to vector<8x1xf32>
    %111 = vector.broadcast %110 : vector<8x1xf32> to vector<8x8xf32>
    %112 = arith.divf %108, %111 : vector<8x8xf32>
    %cst_42 = arith.constant dense<0.000000e+00> : vector<8x64xf32>
    %113 = tpu.matmul %112, %98, %cst_42 {dimension_numbers = #tpu.dot_dimension_numbers<[1], [0], [0], [1], [0, 0, 1, 1], [], []>} : vector<8x8xf32>, vector<8x64xf32>, vector<8x64xf32> -> vector<8x64xf32>
    %114 = tpu.concatenate %95, %113 in 1 : vector<8x64xf32>, vector<8x64xf32> -> vector<8x128xf32>
    %115 = tpu.concatenate %76, %114 in 0 : vector<8x128xf32>, vector<8x128xf32> -> vector<16x128xf32>
    %116 = arith.truncf %115 : vector<16x128xf32> to vector<16x128xbf16>
    %c0_43 = arith.constant 0 : index
    %c0_44 = arith.constant 0 : index
    %c0_45 = arith.constant 0 : index
    %117 = vector.load %arg9[%c0_43, %c0_44, %c0_45] : memref<1x128x128xbf16, #tpu.memory_space<vmem>>, vector<1x128x128xbf16>
    %118 = vector.shape_cast %117 : vector<1x128x128xbf16> to vector<128x128xbf16>
    %cst_46 = arith.constant dense<0.000000e+00> : vector<16x128xf32>
    %119 = tpu.matmul %116, %118, %cst_46 {dimension_numbers = #tpu.dot_dimension_numbers<[1], [0], [0], [1], [0, 0, 1, 1], [], []>} : vector<16x128xbf16>, vector<128x128xbf16>, vector<16x128xf32> -> vector<16x128xf32>
    %c0_47 = arith.constant 0 : index
    %c0_48 = arith.constant 0 : index
    %c0_49 = arith.constant 0 : index
    %120 = vector.load %arg10[%c0_47, %c0_48, %c0_49] : memref<1x1x128xf32, #tpu.memory_space<vmem>>, vector<1x1x128xf32>
    %121 = vector.shape_cast %120 : vector<1x1x128xf32> to vector<1x128xf32>
    %122 = vector.broadcast %121 : vector<1x128xf32> to vector<16x128xf32>
    %123 = arith.addf %119, %122 : vector<16x128xf32>
    %124 = arith.addf %3, %123 : vector<16x128xf32>
    %c0_50 = arith.constant 0 : index
    %c0_51 = arith.constant 0 : index
    %c0_52 = arith.constant 0 : index
    %125 = vector.load %arg11[%c0_50, %c0_51, %c0_52] : memref<1x1x128xf32, #tpu.memory_space<vmem>>, vector<1x1x128xf32>
    %126 = vector.shape_cast %125 : vector<1x1x128xf32> to vector<1x128xf32>
    %c0_53 = arith.constant 0 : index
    %c0_54 = arith.constant 0 : index
    %c0_55 = arith.constant 0 : index
    %127 = vector.load %arg12[%c0_53, %c0_54, %c0_55] : memref<1x1x128xf32, #tpu.memory_space<vmem>>, vector<1x1x128xf32>
    %128 = vector.shape_cast %127 : vector<1x1x128xf32> to vector<1x128xf32>
    %cst_56 = arith.constant dense<0.000000e+00> : vector<16xf32>
    %129 = vector.multi_reduction <add>, %124, %cst_56 [1] : vector<16x128xf32> to vector<16xf32>
    %130 = vector.shape_cast %129 : vector<16xf32> to vector<16x1xf32>
    %cst_57 = arith.constant 1.280000e+02 : f32
    %131 = vector.broadcast %cst_57 : f32 to vector<16x1xf32>
    %132 = arith.divf %130, %131 : vector<16x1xf32>
    %133 = vector.broadcast %132 : vector<16x1xf32> to vector<16x128xf32>
    %134 = arith.subf %124, %133 : vector<16x128xf32>
    %135 = arith.mulf %134, %134 : vector<16x128xf32>
    %cst_58 = arith.constant dense<0.000000e+00> : vector<16xf32>
    %136 = vector.multi_reduction <add>, %135, %cst_58 [1] : vector<16x128xf32> to vector<16xf32>
    %137 = vector.shape_cast %136 : vector<16xf32> to vector<16x1xf32>
    %cst_59 = arith.constant 1.280000e+02 : f32
    %138 = vector.broadcast %cst_59 : f32 to vector<16x1xf32>
    %139 = arith.divf %137, %138 : vector<16x1xf32>
    %cst_60 = arith.constant 9.99999974E-6 : f32
    %140 = vector.broadcast %cst_60 : f32 to vector<16x1xf32>
    %141 = arith.addf %139, %140 : vector<16x1xf32>
    %142 = math.rsqrt %141 : vector<16x1xf32>
    %143 = vector.broadcast %142 : vector<16x1xf32> to vector<16x128xf32>
    %144 = arith.mulf %134, %143 : vector<16x128xf32>
    %145 = vector.broadcast %126 : vector<1x128xf32> to vector<16x128xf32>
    %146 = arith.mulf %144, %145 : vector<16x128xf32>
    %147 = vector.broadcast %128 : vector<1x128xf32> to vector<16x128xf32>
    %148 = arith.addf %146, %147 : vector<16x128xf32>
    %149 = arith.truncf %148 : vector<16x128xf32> to vector<16x128xbf16>
    %c0_61 = arith.constant 0 : index
    %c0_62 = arith.constant 0 : index
    %c0_63 = arith.constant 0 : index
    %150 = vector.load %arg13[%c0_61, %c0_62, %c0_63] : memref<1x128x512xbf16, #tpu.memory_space<vmem>>, vector<1x128x512xbf16>
    %151 = vector.shape_cast %150 : vector<1x128x512xbf16> to vector<128x512xbf16>
    %cst_64 = arith.constant dense<0.000000e+00> : vector<16x512xf32>
    %152 = tpu.matmul %149, %151, %cst_64 {dimension_numbers = #tpu.dot_dimension_numbers<[1], [0], [0], [1], [0, 0, 1, 1], [], []>} : vector<16x128xbf16>, vector<128x512xbf16>, vector<16x512xf32> -> vector<16x512xf32>
    %c0_65 = arith.constant 0 : index
    %c0_66 = arith.constant 0 : index
    %c0_67 = arith.constant 0 : index
    %153 = vector.load %arg14[%c0_65, %c0_66, %c0_67] : memref<1x1x512xf32, #tpu.memory_space<vmem>>, vector<1x1x512xf32>
    %154 = vector.shape_cast %153 : vector<1x1x512xf32> to vector<1x512xf32>
    %155 = vector.broadcast %154 : vector<1x512xf32> to vector<16x512xf32>
    %156 = arith.addf %152, %155 : vector<16x512xf32>
    %cst_68 = arith.constant -1.702000e+00 : f32
    %157 = vector.broadcast %cst_68 : f32 to vector<16x512xf32>
    %158 = arith.mulf %157, %156 : vector<16x512xf32>
    %159 = math.exp %158 : vector<16x512xf32>
    %cst_69 = arith.constant 1.000000e+00 : f32
    %160 = vector.broadcast %cst_69 : f32 to vector<16x512xf32>
    %161 = arith.addf %160, %159 : vector<16x512xf32>
    %cst_70 = arith.constant 1.000000e+00 : f32
    %162 = vector.broadcast %cst_70 : f32 to vector<16x512xf32>
    %163 = arith.divf %162, %161 : vector<16x512xf32>
    %164 = arith.mulf %156, %163 : vector<16x512xf32>
    %165 = arith.truncf %164 : vector<16x512xf32> to vector<16x512xbf16>
    %c0_71 = arith.constant 0 : index
    %c0_72 = arith.constant 0 : index
    %c0_73 = arith.constant 0 : index
    %166 = vector.load %arg15[%c0_71, %c0_72, %c0_73] : memref<1x512x128xbf16, #tpu.memory_space<vmem>>, vector<1x512x128xbf16>
    %167 = vector.shape_cast %166 : vector<1x512x128xbf16> to vector<512x128xbf16>
    %cst_74 = arith.constant dense<0.000000e+00> : vector<16x128xf32>
    %168 = tpu.matmul %165, %167, %cst_74 {dimension_numbers = #tpu.dot_dimension_numbers<[1], [0], [0], [1], [0, 0, 1, 1], [], []>} : vector<16x512xbf16>, vector<512x128xbf16>, vector<16x128xf32> -> vector<16x128xf32>
    %c0_75 = arith.constant 0 : index
    %c0_76 = arith.constant 0 : index
    %c0_77 = arith.constant 0 : index
    %169 = vector.load %arg16[%c0_75, %c0_76, %c0_77] : memref<1x1x128xf32, #tpu.memory_space<vmem>>, vector<1x1x128xf32>
    %170 = vector.shape_cast %169 : vector<1x1x128xf32> to vector<1x128xf32>
    %171 = vector.broadcast %170 : vector<1x128xf32> to vector<16x128xf32>
    %172 = arith.addf %168, %171 : vector<16x128xf32>
    %173 = arith.addf %124, %172 : vector<16x128xf32>
    %c0_78 = arith.constant 0 : index
    %c0_79 = arith.constant 0 : index
    %174 = vector.load %arg21[%c0_78, %c0_79] : memref<16x128xf32, #tpu.memory_space<vmem>>, vector<16x128xf32>
    tpu.vector_store %arg21[%c0_78, %c0_79], %173 {strides = array<i32>} : memref<16x128xf32, #tpu.memory_space<vmem>>, vector<16x128xf32>,
    %c1_i32 = arith.constant 1 : i32
    %175 = arith.cmpi eq, %arg1, %c1_i32 : i32
    %176 = arith.extui %175 : i1 to i32
    %c0_i32_80 = arith.constant 0 : i32
    %177 = arith.cmpi ne, %176, %c0_i32_80 : i32
    scf.if %177 {
      %c0_81 = arith.constant 0 : index
      %c0_82 = arith.constant 0 : index
      %178 = vector.load %arg2[%c0_81, %c0_82] : memref<2x8xf32, #tpu.memory_space<vmem>>, vector<2x8xf32>
      %179 = vector.extract_strided_slice %178 {offsets = [0, 0], sizes = [1, 8], strides = [1, 1]} : vector<2x8xf32> to vector<1x8xf32>
      %180 = vector.extract_strided_slice %173 {offsets = [0, 0], sizes = [8, 128], strides = [1, 1]} : vector<16x128xf32> to vector<8x128xf32>
      %cst_83 = arith.constant dense<0.000000e+00> : vector<1x128xf32>
      %181 = tpu.matmul %179, %180, %cst_83 {dimension_numbers = #tpu.dot_dimension_numbers<[1], [0], [0], [1], [0, 0, 1, 1], [], []>} : vector<1x8xf32>, vector<8x128xf32>, vector<1x128xf32> -> vector<1x128xf32>
      %182 = vector.extract_strided_slice %178 {offsets = [1, 0], sizes = [1, 8], strides = [1, 1]} : vector<2x8xf32> to vector<1x8xf32>
      %183 = vector.extract_strided_slice %173 {offsets = [8, 0], sizes = [8, 128], strides = [1, 1]} : vector<16x128xf32> to vector<8x128xf32>
      %cst_84 = arith.constant dense<0.000000e+00> : vector<1x128xf32>
      %184 = tpu.matmul %182, %183, %cst_84 {dimension_numbers = #tpu.dot_dimension_numbers<[1], [0], [0], [1], [0, 0, 1, 1], [], []>} : vector<1x8xf32>, vector<8x128xf32>, vector<1x128xf32> -> vector<1x128xf32>
      %185 = tpu.concatenate %181, %184 in 0 : vector<1x128xf32>, vector<1x128xf32> -> vector<2x128xf32>
      %c0_85 = arith.constant 0 : index
      %c0_86 = arith.constant 0 : index
      %186 = vector.load %arg17[%c0_85, %c0_86] : memref<1x128xf32, #tpu.memory_space<vmem>>, vector<1x128xf32>
      %c0_87 = arith.constant 0 : index
      %c0_88 = arith.constant 0 : index
      %187 = vector.load %arg18[%c0_87, %c0_88] : memref<1x128xf32, #tpu.memory_space<vmem>>, vector<1x128xf32>
      %cst_89 = arith.constant dense<0.000000e+00> : vector<2xf32>
      %188 = vector.multi_reduction <add>, %185, %cst_89 [1] : vector<2x128xf32> to vector<2xf32>
      %189 = vector.shape_cast %188 : vector<2xf32> to vector<2x1xf32>
      %cst_90 = arith.constant 1.280000e+02 : f32
      %190 = vector.broadcast %cst_90 : f32 to vector<2x1xf32>
      %191 = arith.divf %189, %190 : vector<2x1xf32>
      %192 = vector.broadcast %191 : vector<2x1xf32> to vector<2x128xf32>
      %193 = arith.subf %185, %192 : vector<2x128xf32>
      %194 = arith.mulf %193, %193 : vector<2x128xf32>
      %cst_91 = arith.constant dense<0.000000e+00> : vector<2xf32>
      %195 = vector.multi_reduction <add>, %194, %cst_91 [1] : vector<2x128xf32> to vector<2xf32>
      %196 = vector.shape_cast %195 : vector<2xf32> to vector<2x1xf32>
      %cst_92 = arith.constant 1.280000e+02 : f32
      %197 = vector.broadcast %cst_92 : f32 to vector<2x1xf32>
      %198 = arith.divf %196, %197 : vector<2x1xf32>
      %cst_93 = arith.constant 9.99999974E-6 : f32
      %199 = vector.broadcast %cst_93 : f32 to vector<2x1xf32>
      %200 = arith.addf %198, %199 : vector<2x1xf32>
      %201 = math.rsqrt %200 : vector<2x1xf32>
      %202 = vector.broadcast %201 : vector<2x1xf32> to vector<2x128xf32>
      %203 = arith.mulf %193, %202 : vector<2x128xf32>
      %204 = vector.broadcast %186 : vector<1x128xf32> to vector<2x128xf32>
      %205 = arith.mulf %203, %204 : vector<2x128xf32>
      %206 = vector.broadcast %187 : vector<1x128xf32> to vector<2x128xf32>
      %207 = arith.addf %205, %206 : vector<2x128xf32>
      %208 = arith.truncf %207 : vector<2x128xf32> to vector<2x128xbf16>
      %c0_94 = arith.constant 0 : index
      %c0_95 = arith.constant 0 : index
      %209 = vector.load %arg19[%c0_94, %c0_95] : memref<128x128xbf16, #tpu.memory_space<vmem>>, vector<128x128xbf16>
      %cst_96 = arith.constant dense<0.000000e+00> : vector<2x128xf32>
      %210 = tpu.matmul %208, %209, %cst_96 {dimension_numbers = #tpu.dot_dimension_numbers<[1], [0], [0], [1], [0, 0, 1, 1], [], []>} : vector<2x128xbf16>, vector<128x128xbf16>, vector<2x128xf32> -> vector<2x128xf32>
      %c0_97 = arith.constant 0 : index
      %c0_98 = arith.constant 0 : index
      %211 = vector.load %arg20[%c0_97, %c0_98] : memref<2x128xf32, #tpu.memory_space<vmem>>, vector<2x128xf32>
      tpu.vector_store %arg20[%c0_97, %c0_98], %210 {strides = array<i32>} : memref<2x128xf32, #tpu.memory_space<vmem>>, vector<2x128xf32>,
    } else {
    }
    return
  }
  func.func @transform_0(%arg0: i32, %arg1: i32) -> (i32, i32) {
    %c0_i32 = arith.constant 0 : i32
    %c0_i32_0 = arith.constant 0 : i32
    return %arg0, %c0_i32 : i32, i32
  }
  func.func @transform_1(%arg0: i32, %arg1: i32) -> (i32, i32, i32) {
    %c0_i32 = arith.constant 0 : i32
    %c0_i32_0 = arith.constant 0 : i32
    %c0_i32_1 = arith.constant 0 : i32
    return %arg0, %c0_i32, %c0_i32_0 : i32, i32, i32
  }
  func.func @transform_2(%arg0: i32, %arg1: i32) -> (i32, i32) {
    %c0_i32 = arith.constant 0 : i32
    %c0_i32_0 = arith.constant 0 : i32
    %c0_i32_1 = arith.constant 0 : i32
    return %c0_i32, %c0_i32_0 : i32, i32
  }
  func.func @transform_3(%arg0: i32, %arg1: i32) -> (i32, i32, i32) {
    %c0_i32 = arith.constant 0 : i32
    %c0_i32_0 = arith.constant 0 : i32
    %c0_i32_1 = arith.constant 0 : i32
    return %arg1, %c0_i32, %c0_i32_0 : i32, i32, i32
  }
  func.func @transform_4(%arg0: i32, %arg1: i32) -> (i32, i32, i32) {
    %c0_i32 = arith.constant 0 : i32
    %c0_i32_0 = arith.constant 0 : i32
    %c0_i32_1 = arith.constant 0 : i32
    return %arg1, %c0_i32, %c0_i32_0 : i32, i32, i32
  }
  func.func @transform_5(%arg0: i32, %arg1: i32) -> (i32, i32, i32) {
    %c0_i32 = arith.constant 0 : i32
    %c0_i32_0 = arith.constant 0 : i32
    %c0_i32_1 = arith.constant 0 : i32
    return %arg1, %c0_i32, %c0_i32_0 : i32, i32, i32
  }
  func.func @transform_6(%arg0: i32, %arg1: i32) -> (i32, i32, i32) {
    %c0_i32 = arith.constant 0 : i32
    %c0_i32_0 = arith.constant 0 : i32
    %c0_i32_1 = arith.constant 0 : i32
    return %arg1, %c0_i32, %c0_i32_0 : i32, i32, i32
  }
  func.func @transform_7(%arg0: i32, %arg1: i32) -> (i32, i32, i32) {
    %c0_i32 = arith.constant 0 : i32
    %c0_i32_0 = arith.constant 0 : i32
    %c0_i32_1 = arith.constant 0 : i32
    return %arg1, %c0_i32, %c0_i32_0 : i32, i32, i32
  }
  func.func @transform_8(%arg0: i32, %arg1: i32) -> (i32, i32, i32) {
    %c0_i32 = arith.constant 0 : i32
    %c0_i32_0 = arith.constant 0 : i32
    %c0_i32_1 = arith.constant 0 : i32
    return %arg1, %c0_i32, %c0_i32_0 : i32, i32, i32
  }
  func.func @transform_9(%arg0: i32, %arg1: i32) -> (i32, i32, i32) {
    %c0_i32 = arith.constant 0 : i32
    %c0_i32_0 = arith.constant 0 : i32
    %c0_i32_1 = arith.constant 0 : i32
    return %arg1, %c0_i32, %c0_i32_0 : i32, i32, i32
  }
  func.func @transform_10(%arg0: i32, %arg1: i32) -> (i32, i32, i32) {
    %c0_i32 = arith.constant 0 : i32
    %c0_i32_0 = arith.constant 0 : i32
    %c0_i32_1 = arith.constant 0 : i32
    return %arg1, %c0_i32, %c0_i32_0 : i32, i32, i32
  }
  func.func @transform_11(%arg0: i32, %arg1: i32) -> (i32, i32, i32) {
    %c0_i32 = arith.constant 0 : i32
    %c0_i32_0 = arith.constant 0 : i32
    %c0_i32_1 = arith.constant 0 : i32
    return %arg1, %c0_i32, %c0_i32_0 : i32, i32, i32
  }
  func.func @transform_12(%arg0: i32, %arg1: i32) -> (i32, i32, i32) {
    %c0_i32 = arith.constant 0 : i32
    %c0_i32_0 = arith.constant 0 : i32
    %c0_i32_1 = arith.constant 0 : i32
    return %arg1, %c0_i32, %c0_i32_0 : i32, i32, i32
  }
  func.func @transform_13(%arg0: i32, %arg1: i32) -> (i32, i32, i32) {
    %c0_i32 = arith.constant 0 : i32
    %c0_i32_0 = arith.constant 0 : i32
    %c0_i32_1 = arith.constant 0 : i32
    return %arg1, %c0_i32, %c0_i32_0 : i32, i32, i32
  }
  func.func @transform_14(%arg0: i32, %arg1: i32) -> (i32, i32, i32) {
    %c0_i32 = arith.constant 0 : i32
    %c0_i32_0 = arith.constant 0 : i32
    %c0_i32_1 = arith.constant 0 : i32
    return %arg1, %c0_i32, %c0_i32_0 : i32, i32, i32
  }
  func.func @transform_15(%arg0: i32, %arg1: i32) -> (i32, i32) {
    %c0_i32 = arith.constant 0 : i32
    %c0_i32_0 = arith.constant 0 : i32
    %c0_i32_1 = arith.constant 0 : i32
    return %c0_i32, %c0_i32_0 : i32, i32
  }
  func.func @transform_16(%arg0: i32, %arg1: i32) -> (i32, i32) {
    %c0_i32 = arith.constant 0 : i32
    %c0_i32_0 = arith.constant 0 : i32
    %c0_i32_1 = arith.constant 0 : i32
    return %c0_i32, %c0_i32_0 : i32, i32
  }
  func.func @transform_17(%arg0: i32, %arg1: i32) -> (i32, i32) {
    %c0_i32 = arith.constant 0 : i32
    %c0_i32_0 = arith.constant 0 : i32
    %c0_i32_1 = arith.constant 0 : i32
    return %c0_i32, %c0_i32_0 : i32, i32
  }
  func.func @transform_18(%arg0: i32, %arg1: i32) -> (i32, i32) {
    %c0_i32 = arith.constant 0 : i32
    %c0_i32_0 = arith.constant 0 : i32
    return %arg0, %c0_i32 : i32, i32
  }
}

</mosaic_0001>

<llo_original>
// kernel: tpu_custom_call.1
$region0: #{tpu_custom_call.1}
  #allocation0 [shape = 'u32[]', space=smem, size = 0x4, offset = 0x4, fixed_abs, tag = 'smem constant byte address 0x4 - core index']
  #allocation1 [shape = 'u32[144,128]{1,0:T(1,128)}', space=vmem, size = 0x12000, scoped, tag = 'internal scratch']
  #allocation2 [shape = 'f32[16,128]{1,0:T(8,128)}', space=vmem, size = 0x2000, scoped, tag = 'scratch operand']
  %s0 = inlined_call_operand.hbm [shape: f32[2,8], index: 0, kind: input, shape index: {}]
  %s1 = inlined_call_operand.hbm [shape: f32[2,8,128], index: 1, kind: input, shape index: {}]
  %s2 = inlined_call_operand.hbm [shape: f32[8,128], index: 2, kind: input, shape index: {}]
  %s3 = inlined_call_operand.vmem [shape: f32[2,1,128], index: 3, kind: input, shape index: {}]
  %s4 = inlined_call_operand.hbm [shape: f32[2,1,128], index: 4, kind: input, shape index: {}]
  %s5 = inlined_call_operand.hbm [shape: bf16[2,128,384], index: 5, kind: input, shape index: {}]
  %s6 = inlined_call_operand.vmem [shape: f32[2,1,384], index: 6, kind: input, shape index: {}]
  %s7 = inlined_call_operand.hbm [shape: bf16[2,128,128], index: 7, kind: input, shape index: {}]
  %s8 = inlined_call_operand.hbm [shape: f32[2,1,128], index: 8, kind: input, shape index: {}]
  %s9 = inlined_call_operand.hbm [shape: f32[2,1,128], index: 9, kind: input, shape index: {}]
  %s10 = inlined_call_operand.vmem [shape: f32[2,1,128], index: 10, kind: input, shape index: {}]
  %s11 = inlined_call_operand.hbm [shape: bf16[2,128,512], index: 11, kind: input, shape index: {}]
  %s12 = inlined_call_operand.vmem [shape: f32[2,1,512], index: 12, kind: input, shape index: {}]
  %s13 = inlined_call_operand.hbm [shape: bf16[2,512,128], index: 13, kind: input, shape index: {}]
  %s14 = inlined_call_operand.vmem [shape: f32[2,1,128], index: 14, kind: input, shape index: {}]
  %s15 = inlined_call_operand.vmem [shape: f32[1,128], index: 15, kind: input, shape index: {}]
  %s16 = inlined_call_operand.vmem [shape: f32[1,128], index: 16, kind: input, shape index: {}]
  %s17 = inlined_call_operand.hbm [shape: bf16[128,128], index: 17, kind: input, shape index: {}]
  %s18 = inlined_call_operand.hbm [shape: f32[2,128], index: 18, kind: output, shape index: {}]
  %s19 = sld [smem:[#allocation0]]
  $region157: #{tpu_custom_call.1} parent=0
    _
  %s21 = ssub.s32 1, %s19
  %s22 = scalar_select 0, %s21, %s19
  $region1: #{tpu_custom_call.1} parent=0
    #allocation3 [shape = 'u8[1024]{0}', space=vmem, size = 0x400, scoped, tag = 'input window, operand 0, single buffered']
    #allocation4 [shape = 's32[2]{0}', space=sflag, size = 0x8, scoped, tag = 'scoped memory for tpu_custom_call.1']
    #allocation5 [shape = 's32[2]{0}', space=sflag, size = 0x8, scoped, tag = 'scoped memory for tpu_custom_call.1']
    #allocation6 [shape = 'u8[8192]{0}', space=vmem, size = 0x2000, scoped, tag = 'input window, operand 1, single buffered']
    #allocation7 [shape = 's32[1]{0}', space=sflag, size = 0x4, scoped, tag = 'scoped memory for tpu_custom_call.1']
    #allocation8 [shape = 'u8[4096]{0}', space=vmem, size = 0x1000, scoped, tag = 'input window, operand 2, single buffered']
    #allocation9 [shape = 'u8[1024]{0}', space=vmem, size = 0x400, scoped, tag = 'input window, operand 4']
    #allocation10 [shape = 's32[2]{0}', space=sflag, size = 0x8, scoped, tag = 'scoped memory for tpu_custom_call.1']
    #allocation11 [shape = 'u8[196608]{0}', space=vmem, size = 0x30000, scoped, tag = 'input window, operand 5']
    #allocation12 [shape = 'u8[65536]{0}', space=vmem, size = 0x10000, scoped, tag = 'input window, operand 7']
    #allocation13 [shape = 's32[2]{0}', space=sflag, size = 0x8, scoped, tag = 'scoped memory for tpu_custom_call.1']
    #allocation14 [shape = 'u8[1024]{0}', space=vmem, size = 0x400, scoped, tag = 'input window, operand 8']
    #allocation15 [shape = 'u8[1024]{0}', space=vmem, size = 0x400, scoped, tag = 'input window, operand 9']
    #allocation16 [shape = 's32[2]{0}', space=sflag, size = 0x8, scoped, tag = 'scoped memory for tpu_custom_call.1']
    #allocation17 [shape = 'u8[262144]{0}', space=vmem, size = 0x40000, scoped, tag = 'input window, operand 11']
    #allocation18 [shape = 'u8[262144]{0}', space=vmem, size = 0x40000, scoped, tag = 'input window, operand 13']
    #allocation19 [shape = 's32[2]{0}', space=sflag, size = 0x8, scoped, tag = 'scoped memory for tpu_custom_call.1']
    #allocation20 [shape = 'u8[32768]{0}', space=vmem, size = 0x8000, scoped, tag = 'input window, operand 17, single buffered']
    #allocation21 [shape = 'u8[1024]{0}', space=vmem, size = 0x400, scoped, tag = 'output window, operand 0, single buffered']
    %23 = vsyncpa [#allocation4], 0
    %24 = vsyncpa [#allocation7], 0
    %25 = vsyncpa [#allocation10], 0
    %s26 = scalar_lea.sflag [#allocation10], 1
    %27 = vsyncpa %s26, 0
    %28 = vsyncpa [#allocation13], 0
    %s29 = scalar_lea.sflag [#allocation13], 1
    %30 = vsyncpa %s29, 0
    %31 = vsyncpa [#allocation16], 0
    %s32 = scalar_lea.sflag [#allocation16], 1
    %33 = vsyncpa %s32, 0
    %34 = vsyncpa [#allocation19], 0
    %s35 = scalar_lea.sflag [#allocation19], 1
    %36 = vsyncpa %s35, 0
    %37 = vsyncpa [#allocation5], 0
    loop: start=0, step=1, limit=4
    $region2: #{tpu_custom_call.1} parent=1 // loop_pre_header
      _
    $region3: #{tpu_custom_call.1} parent=1 // loop_header
      %s39 = sphi 0, %s43
      %p40 = scmp.ge.s32.totalorder %s39, 4
      %s46 = sphi 0, %s58
      %s47 = sphi 0, %s54
      %s48 = sphi 0, %s46
      %s49 = sphi 0, %s47
      %s50 = sphi 0, %s48
      %s51 = sphi 0, %s49
      %s61 = sphi 0, %s63
      %s64 = sphi 0, %s61
      %s65 = sphi 0, %s64
      %s81 = sphi 0, %s65
      %s87 = sphi 0, %s89
      %s90 = sphi 0, %s87
      %s91 = sphi 0, %s90
      %s107 = sphi 0, %s91
      %s111 = sphi 0, %s111
      %s113 = sphi 0, %s111
      %s114 = sphi 0, %s113
      %s128 = sphi 0, %s114
      %s134 = sphi 0, %s136
      %s137 = sphi 0, %s134
      %s138 = sphi 0, %s137
      %s154 = sphi 0, %s138
      %s160 = sphi 0, %s162
      %s163 = sphi 0, %s160
      %s164 = sphi 0, %s163
      %s180 = sphi 0, %s164
      %s186 = sphi 0, %s188
      %s189 = sphi 0, %s186
      %s190 = sphi 0, %s189
      %s206 = sphi 0, %s190
      %s212 = sphi 0, %s214
      %s215 = sphi 0, %s212
      %s216 = sphi 0, %s215
      %s232 = sphi 0, %s216
      %s238 = sphi 0, %s240
      %s241 = sphi 0, %s238
      %s242 = sphi 0, %s241
      %s258 = sphi 0, %s242
      %s264 = sphi 0, %s266
      %s267 = sphi 0, %s264
      %s268 = sphi 0, %s267
      %s284 = sphi 0, %s268
      %s290 = sphi 0, %s292
      %s293 = sphi 0, %s290
      %s294 = sphi 0, %s293
      %s310 = sphi 0, %s294
      %s316 = sphi 0, %s318
      %s319 = sphi 0, %s316
      %s320 = sphi 0, %s319
      %s336 = sphi 0, %s320
      %s342 = sphi 0, %s344
      %s345 = sphi 0, %s342
      %s346 = sphi 0, %s345
      %s362 = sphi 0, %s346
      %s368 = sphi 0, %s370
      %s371 = sphi 0, %s368
      %s372 = sphi 0, %s371
      %s388 = sphi 0, %s372
      %s394 = sphi 0, %s396
      %s397 = sphi 0, %s394
      %s398 = sphi 0, %s397
      %s414 = sphi 0, %s398
      %s420 = sphi 0, %s422
      %s423 = sphi 0, %s420
      %s424 = sphi 0, %s423
      %s440 = sphi 0, %s424
      %s444 = sphi 0, %s444
      %s446 = sphi 0, %s444
      %s447 = sphi 0, %s446
      %s461 = sphi 0, %s447
      %s465 = sphi 0, %s465
      %s467 = sphi 0, %s465
      %s468 = sphi 0, %s467
      %s482 = sphi 0, %s468
      %s486 = sphi 0, %s486
      %s488 = sphi 0, %s486
      %s489 = sphi 0, %s488
      %s503 = sphi 0, %s489
      %s509 = sphi 0, %s511
      %s512 = sphi 0, %s509
      %s513 = sphi 0, %s512
      %s529 = sphi 0, %s513
    $region4: #{tpu_custom_call.1} parent=1 // loop_header_branch
      %42 = sbr.rel (%p40) target = $region8
    $region5: #{tpu_custom_call.1} parent=1 // loop_body
      %s44 = ssub.s32 %s39, 1
      %s45 = ssub.s32 %s39, 2
      %s52 = sadd.s32 1, %s47
      %p53 = scmp.ge.s32.totalorder %s52, 2
      %s54 = scalar_select %p53, 0, %s52
      %s55 = sadd.s32 1, %s46
      %s56 = scalar_select %p53, %s55, %s46
      %p57 = scmp.ge.s32.totalorder %s56, 1
      %s58 = scalar_select %p57, 0, %s56
      %s59 = ssub.s32 %s46, %s58
      %p60 = scmp.eq.s32.totalorder %s59, 0
      %s62 = sadd.s32 %s61, 1
      %s63 = scalar_select %p60, %s61, %s62
      %p66 = pneg %p60
      %p67 = scmp.eq.s32.totalorder %s39, 1
      %p68 = por %p66, %p67
      %p69 = scmp.ne.s32.totalorder %s61, %s64
      %p70 = scmp.eq.s32.totalorder %s39, 0
      %p71 = por %p69, %p70
      %p72 = scmp.ne.s32.totalorder %s61, %s64
      %p73 = scmp.eq.s32.totalorder %s44, 1
      %p74 = por %p72, %p73
      %p75 = scmp.ne.s32.totalorder %s64, %s65
      %p76 = scmp.eq.s32.totalorder %s44, 0
      %p77 = por %p75, %p76
      %p78 = scmp.ne.s32.totalorder %s64, %s65
      %p79 = scmp.eq.s32.totalorder %s45, 1
      %p80 = por %p78, %p79
      %p82 = scmp.ne.s32.totalorder %s65, %s81
      %p83 = scmp.eq.s32.totalorder %s45, 0
      %p84 = por %p82, %p83
      %s85 = ssub.s32 %s46, %s58
      %p86 = scmp.eq.s32.totalorder %s85, 0
      %s88 = sadd.s32 %s87, 1
      %s89 = scalar_select %p86, %s87, %s88
      %p92 = pneg %p86
      %p93 = scmp.eq.s32.totalorder %s39, 1
      %p94 = por %p92, %p93
      %p95 = scmp.ne.s32.totalorder %s87, %s90
      %p96 = scmp.eq.s32.totalorder %s39, 0
      %p97 = por %p95, %p96
      %p98 = scmp.ne.s32.totalorder %s87, %s90
      %p99 = scmp.eq.s32.totalorder %s44, 1
      %p100 = por %p98, %p99
      %p101 = scmp.ne.s32.totalorder %s90, %s91
      %p102 = scmp.eq.s32.totalorder %s44, 0
      %p103 = por %p101, %p102
      %p104 = scmp.ne.s32.totalorder %s90, %s91
      %p105 = scmp.eq.s32.totalorder %s45, 1
      %p106 = por %p104, %p105
      %p108 = scmp.ne.s32.totalorder %s91, %s107
      %p109 = scmp.eq.s32.totalorder %s45, 0
      %p110 = por %p108, %p109
      %s112 = sadd.s32 %s111, 1
      %p115 = scmp.eq.s32.totalorder %s39, 1
      %p116 = scmp.ne.s32.totalorder %s111, %s113
      %p117 = scmp.eq.s32.totalorder %s39, 0
      %p118 = por %p116, %p117
      %p119 = scmp.ne.s32.totalorder %s111, %s113
      %p120 = scmp.eq.s32.totalorder %s44, 1
      %p121 = por %p119, %p120
      %p122 = scmp.ne.s32.totalorder %s113, %s114
      %p123 = scmp.eq.s32.totalorder %s44, 0
      %p124 = por %p122, %p123
      %p125 = scmp.ne.s32.totalorder %s113, %s114
      %p126 = scmp.eq.s32.totalorder %s45, 1
      %p127 = por %p125, %p126
      %p129 = scmp.ne.s32.totalorder %s114, %s128
      %p130 = scmp.eq.s32.totalorder %s45, 0
      %p131 = por %p129, %p130
      %s132 = ssub.s32 %s47, %s54
      %p133 = scmp.eq.s32.totalorder %s132, 0
      %s135 = sadd.s32 %s134, 1
      %s136 = scalar_select %p133, %s134, %s135
      %p139 = pneg %p133
      %p140 = scmp.eq.s32.totalorder %s39, 1
      %p141 = por %p139, %p140
      %p142 = scmp.ne.s32.totalorder %s134, %s137
      %p143 = scmp.eq.s32.totalorder %s39, 0
      %p144 = por %p142, %p143
      %p145 = scmp.ne.s32.totalorder %s134, %s137
      %p146 = scmp.eq.s32.totalorder %s44, 1
      %p147 = por %p145, %p146
      %p148 = scmp.ne.s32.totalorder %s137, %s138
      %p149 = scmp.eq.s32.totalorder %s44, 0
      %p150 = por %p148, %p149
      %p151 = scmp.ne.s32.totalorder %s137, %s138
      %p152 = scmp.eq.s32.totalorder %s45, 1
      %p153 = por %p151, %p152
      %p155 = scmp.ne.s32.totalorder %s138, %s154
      %p156 = scmp.eq.s32.totalorder %s45, 0
      %p157 = por %p155, %p156
      %s158 = ssub.s32 %s47, %s54
      %p159 = scmp.eq.s32.totalorder %s158, 0
      %s161 = sadd.s32 %s160, 1
      %s162 = scalar_select %p159, %s160, %s161
      %p165 = pneg %p159
      %p166 = scmp.eq.s32.totalorder %s39, 1
      %p167 = por %p165, %p166
      %p168 = scmp.ne.s32.totalorder %s160, %s163
      %p169 = scmp.eq.s32.totalorder %s39, 0
      %p170 = por %p168, %p169
      %p171 = scmp.ne.s32.totalorder %s160, %s163
      %p172 = scmp.eq.s32.totalorder %s44, 1
      %p173 = por %p171, %p172
      %p174 = scmp.ne.s32.totalorder %s163, %s164
      %p175 = scmp.eq.s32.totalorder %s44, 0
      %p176 = por %p174, %p175
      %p177 = scmp.ne.s32.totalorder %s163, %s164
      %p178 = scmp.eq.s32.totalorder %s45, 1
      %p179 = por %p177, %p178
      %p181 = scmp.ne.s32.totalorder %s164, %s180
      %p182 = scmp.eq.s32.totalorder %s45, 0
      %p183 = por %p181, %p182
      %s184 = ssub.s32 %s47, %s54
      %p185 = scmp.eq.s32.totalorder %s184, 0
      %s187 = sadd.s32 %s186, 1
      %s188 = scalar_select %p185, %s186, %s187
      %p191 = pneg %p185
      %p192 = scmp.eq.s32.totalorder %s39, 1
      %p193 = por %p191, %p192
      %p194 = scmp.ne.s32.totalorder %s186, %s189
      %p195 = scmp.eq.s32.totalorder %s39, 0
      %p196 = por %p194, %p195
      %p197 = scmp.ne.s32.totalorder %s186, %s189
      %p198 = scmp.eq.s32.totalorder %s44, 1
      %p199 = por %p197, %p198
      %p200 = scmp.ne.s32.totalorder %s189, %s190
      %p201 = scmp.eq.s32.totalorder %s44, 0
      %p202 = por %p200, %p201
      %p203 = scmp.ne.s32.totalorder %s189, %s190
      %p204 = scmp.eq.s32.totalorder %s45, 1
      %p205 = por %p203, %p204
      %p207 = scmp.ne.s32.totalorder %s190, %s206
      %p208 = scmp.eq.s32.totalorder %s45, 0
      %p209 = por %p207, %p208
      %s210 = ssub.s32 %s47, %s54
      %p211 = scmp.eq.s32.totalorder %s210, 0
      %s213 = sadd.s32 %s212, 1
      %s214 = scalar_select %p211, %s212, %s213
      %p217 = pneg %p211
      %p218 = scmp.eq.s32.totalorder %s39, 1
      %p219 = por %p217, %p218
      %p220 = scmp.ne.s32.totalorder %s212, %s215
      %p221 = scmp.eq.s32.totalorder %s39, 0
      %p222 = por %p220, %p221
      %p223 = scmp.ne.s32.totalorder %s212, %s215
      %p224 = scmp.eq.s32.totalorder %s44, 1
      %p225 = por %p223, %p224
      %p226 = scmp.ne.s32.totalorder %s215, %s216
      %p227 = scmp.eq.s32.totalorder %s44, 0
      %p228 = por %p226, %p227
      %p229 = scmp.ne.s32.totalorder %s215, %s216
      %p230 = scmp.eq.s32.totalorder %s45, 1
      %p231 = por %p229, %p230
      %p233 = scmp.ne.s32.totalorder %s216, %s232
      %p234 = scmp.eq.s32.totalorder %s45, 0
      %p235 = por %p233, %p234
      %s236 = ssub.s32 %s47, %s54
      %p237 = scmp.eq.s32.totalorder %s236, 0
      %s239 = sadd.s32 %s238, 1
      %s240 = scalar_select %p237, %s238, %s239
      %p243 = pneg %p237
      %p244 = scmp.eq.s32.totalorder %s39, 1
      %p245 = por %p243, %p244
      %p246 = scmp.ne.s32.totalorder %s238, %s241
      %p247 = scmp.eq.s32.totalorder %s39, 0
      %p248 = por %p246, %p247
      %p249 = scmp.ne.s32.totalorder %s238, %s241
      %p250 = scmp.eq.s32.totalorder %s44, 1
      %p251 = por %p249, %p250
      %p252 = scmp.ne.s32.totalorder %s241, %s242
      %p253 = scmp.eq.s32.totalorder %s44, 0
      %p254 = por %p252, %p253
      %p255 = scmp.ne.s32.totalorder %s241, %s242
      %p256 = scmp.eq.s32.totalorder %s45, 1
      %p257 = por %p255, %p256
      %p259 = scmp.ne.s32.totalorder %s242, %s258
      %p260 = scmp.eq.s32.totalorder %s45, 0
      %p261 = por %p259, %p260
      %s262 = ssub.s32 %s47, %s54
      %p263 = scmp.eq.s32.totalorder %s262, 0
      %s265 = sadd.s32 %s264, 1
      %s266 = scalar_select %p263, %s264, %s265
      %p269 = pneg %p263
      %p270 = scmp.eq.s32.totalorder %s39, 1
      %p271 = por %p269, %p270
      %p272 = scmp.ne.s32.totalorder %s264, %s267
      %p273 = scmp.eq.s32.totalorder %s39, 0
      %p274 = por %p272, %p273
      %p275 = scmp.ne.s32.totalorder %s264, %s267
      %p276 = scmp.eq.s32.totalorder %s44, 1
      %p277 = por %p275, %p276
      %p278 = scmp.ne.s32.totalorder %s267, %s268
      %p279 = scmp.eq.s32.totalorder %s44, 0
      %p280 = por %p278, %p279
      %p281 = scmp.ne.s32.totalorder %s267, %s268
      %p282 = scmp.eq.s32.totalorder %s45, 1
      %p283 = por %p281, %p282
      %p285 = scmp.ne.s32.totalorder %s268, %s284
      %p286 = scmp.eq.s32.totalorder %s45, 0
      %p287 = por %p285, %p286
      %s288 = ssub.s32 %s47, %s54
      %p289 = scmp.eq.s32.totalorder %s288, 0
      %s291 = sadd.s32 %s290, 1
      %s292 = scalar_select %p289, %s290, %s291
      %p295 = pneg %p289
      %p296 = scmp.eq.s32.totalorder %s39, 1
      %p297 = por %p295, %p296
      %p298 = scmp.ne.s32.totalorder %s290, %s293
      %p299 = scmp.eq.s32.totalorder %s39, 0
      %p300 = por %p298, %p299
      %p301 = scmp.ne.s32.totalorder %s290, %s293
      %p302 = scmp.eq.s32.totalorder %s44, 1
      %p303 = por %p301, %p302
      %p304 = scmp.ne.s32.totalorder %s293, %s294
      %p305 = scmp.eq.s32.totalorder %s44, 0
      %p306 = por %p304, %p305
      %p307 = scmp.ne.s32.totalorder %s293, %s294
      %p308 = scmp.eq.s32.totalorder %s45, 1
      %p309 = por %p307, %p308
      %p311 = scmp.ne.s32.totalorder %s294, %s310
      %p312 = scmp.eq.s32.totalorder %s45, 0
      %p313 = por %p311, %p312
      %s314 = ssub.s32 %s47, %s54
      %p315 = scmp.eq.s32.totalorder %s314, 0
      %s317 = sadd.s32 %s316, 1
      %s318 = scalar_select %p315, %s316, %s317
      %p321 = pneg %p315
      %p322 = scmp.eq.s32.totalorder %s39, 1
      %p323 = por %p321, %p322
      %p324 = scmp.ne.s32.totalorder %s316, %s319
      %p325 = scmp.eq.s32.totalorder %s39, 0
      %p326 = por %p324, %p325
      %p327 = scmp.ne.s32.totalorder %s316, %s319
      %p328 = scmp.eq.s32.totalorder %s44, 1
      %p329 = por %p327, %p328
      %p330 = scmp.ne.s32.totalorder %s319, %s320
      %p331 = scmp.eq.s32.totalorder %s44, 0
      %p332 = por %p330, %p331
      %p333 = scmp.ne.s32.totalorder %s319, %s320
      %p334 = scmp.eq.s32.totalorder %s45, 1
      %p335 = por %p333, %p334
      %p337 = scmp.ne.s32.totalorder %s320, %s336
      %p338 = scmp.eq.s32.totalorder %s45, 0
      %p339 = por %p337, %p338
      %s340 = ssub.s32 %s47, %s54
      %p341 = scmp.eq.s32.totalorder %s340, 0
      %s343 = sadd.s32 %s342, 1
      %s344 = scalar_select %p341, %s342, %s343
      %p347 = pneg %p341
      %p348 = scmp.eq.s32.totalorder %s39, 1
      %p349 = por %p347, %p348
      %p350 = scmp.ne.s32.totalorder %s342, %s345
      %p351 = scmp.eq.s32.totalorder %s39, 0
      %p352 = por %p350, %p351
      %p353 = scmp.ne.s32.totalorder %s342, %s345
      %p354 = scmp.eq.s32.totalorder %s44, 1
      %p355 = por %p353, %p354
      %p356 = scmp.ne.s32.totalorder %s345, %s346
      %p357 = scmp.eq.s32.totalorder %s44, 0
      %p358 = por %p356, %p357
      %p359 = scmp.ne.s32.totalorder %s345, %s346
      %p360 = scmp.eq.s32.totalorder %s45, 1
      %p361 = por %p359, %p360
      %p363 = scmp.ne.s32.totalorder %s346, %s362
      %p364 = scmp.eq.s32.totalorder %s45, 0
      %p365 = por %p363, %p364
      %s366 = ssub.s32 %s47, %s54
      %p367 = scmp.eq.s32.totalorder %s366, 0
      %s369 = sadd.s32 %s368, 1
      %s370 = scalar_select %p367, %s368, %s369
      %p373 = pneg %p367
      %p374 = scmp.eq.s32.totalorder %s39, 1
      %p375 = por %p373, %p374
      %p376 = scmp.ne.s32.totalorder %s368, %s371
      %p377 = scmp.eq.s32.totalorder %s39, 0
      %p378 = por %p376, %p377
      %p379 = scmp.ne.s32.totalorder %s368, %s371
      %p380 = scmp.eq.s32.totalorder %s44, 1
      %p381 = por %p379, %p380
      %p382 = scmp.ne.s32.totalorder %s371, %s372
      %p383 = scmp.eq.s32.totalorder %s44, 0
      %p384 = por %p382, %p383
      %p385 = scmp.ne.s32.totalorder %s371, %s372
      %p386 = scmp.eq.s32.totalorder %s45, 1
      %p387 = por %p385, %p386
      %p389 = scmp.ne.s32.totalorder %s372, %s388
      %p390 = scmp.eq.s32.totalorder %s45, 0
      %p391 = por %p389, %p390
      %s392 = ssub.s32 %s47, %s54
      %p393 = scmp.eq.s32.totalorder %s392, 0
      %s395 = sadd.s32 %s394, 1
      %s396 = scalar_select %p393, %s394, %s395
      %p399 = pneg %p393
      %p400 = scmp.eq.s32.totalorder %s39, 1
      %p401 = por %p399, %p400
      %p402 = scmp.ne.s32.totalorder %s394, %s397
      %p403 = scmp.eq.s32.totalorder %s39, 0
      %p404 = por %p402, %p403
      %p405 = scmp.ne.s32.totalorder %s394, %s397
      %p406 = scmp.eq.s32.totalorder %s44, 1
      %p407 = por %p405, %p406
      %p408 = scmp.ne.s32.totalorder %s397, %s398
      %p409 = scmp.eq.s32.totalorder %s44, 0
      %p410 = por %p408, %p409
      %p411 = scmp.ne.s32.totalorder %s397, %s398
      %p412 = scmp.eq.s32.totalorder %s45, 1
      %p413 = por %p411, %p412
      %p415 = scmp.ne.s32.totalorder %s398, %s414
      %p416 = scmp.eq.s32.totalorder %s45, 0
      %p417 = por %p415, %p416
      %s418 = ssub.s32 %s47, %s54
      %p419 = scmp.eq.s32.totalorder %s418, 0
      %s421 = sadd.s32 %s420, 1
      %s422 = scalar_select %p419, %s420, %s421
      %p425 = pneg %p419
      %p426 = scmp.eq.s32.totalorder %s39, 1
      %p427 = por %p425, %p426
      %p428 = scmp.ne.s32.totalorder %s420, %s423
      %p429 = scmp.eq.s32.totalorder %s39, 0
      %p430 = por %p428, %p429
      %p431 = scmp.ne.s32.totalorder %s420, %s423
      %p432 = scmp.eq.s32.totalorder %s44, 1
      %p433 = por %p431, %p432
      %p434 = scmp.ne.s32.totalorder %s423, %s424
      %p435 = scmp.eq.s32.totalorder %s44, 0
      %p436 = por %p434, %p435
      %p437 = scmp.ne.s32.totalorder %s423, %s424
      %p438 = scmp.eq.s32.totalorder %s45, 1
      %p439 = por %p437, %p438
      %p441 = scmp.ne.s32.totalorder %s424, %s440
      %p442 = scmp.eq.s32.totalorder %s45, 0
      %p443 = por %p441, %p442
      %s445 = sadd.s32 %s444, 1
      %p448 = scmp.eq.s32.totalorder %s39, 1
      %p449 = scmp.ne.s32.totalorder %s444, %s446
      %p450 = scmp.eq.s32.totalorder %s39, 0
      %p451 = por %p449, %p450
      %p452 = scmp.ne.s32.totalorder %s444, %s446
      %p453 = scmp.eq.s32.totalorder %s44, 1
      %p454 = por %p452, %p453
      %p455 = scmp.ne.s32.totalorder %s446, %s447
      %p456 = scmp.eq.s32.totalorder %s44, 0
      %p457 = por %p455, %p456
      %p458 = scmp.ne.s32.totalorder %s446, %s447
      %p459 = scmp.eq.s32.totalorder %s45, 1
      %p460 = por %p458, %p459
      %p462 = scmp.ne.s32.totalorder %s447, %s461
      %p463 = scmp.eq.s32.totalorder %s45, 0
      %p464 = por %p462, %p463
      %s466 = sadd.s32 %s465, 1
      %p469 = scmp.eq.s32.totalorder %s39, 1
      %p470 = scmp.ne.s32.totalorder %s465, %s467
      %p471 = scmp.eq.s32.totalorder %s39, 0
      %p472 = por %p470, %p471
      %p473 = scmp.ne.s32.totalorder %s465, %s467
      %p474 = scmp.eq.s32.totalorder %s44, 1
      %p475 = por %p473, %p474
      %p476 = scmp.ne.s32.totalorder %s467, %s468
      %p477 = scmp.eq.s32.totalorder %s44, 0
      %p478 = por %p476, %p477
      %p479 = scmp.ne.s32.totalorder %s467, %s468
      %p480 = scmp.eq.s32.totalorder %s45, 1
      %p481 = por %p479, %p480
      %p483 = scmp.ne.s32.totalorder %s468, %s482
      %p484 = scmp.eq.s32.totalorder %s45, 0
      %p485 = por %p483, %p484
      %s487 = sadd.s32 %s486, 1
      %p490 = scmp.eq.s32.totalorder %s39, 1
      %p491 = scmp.ne.s32.totalorder %s486, %s488
      %p492 = scmp.eq.s32.totalorder %s39, 0
      %p493 = por %p491, %p492
      %p494 = scmp.ne.s32.totalorder %s486, %s488
      %p495 = scmp.eq.s32.totalorder %s44, 1
      %p496 = por %p494, %p495
      %p497 = scmp.ne.s32.totalorder %s488, %s489
      %p498 = scmp.eq.s32.totalorder %s44, 0
      %p499 = por %p497, %p498
      %p500 = scmp.ne.s32.totalorder %s488, %s489
      %p501 = scmp.eq.s32.totalorder %s45, 1
      %p502 = por %p500, %p501
      %p504 = scmp.ne.s32.totalorder %s489, %s503
      %p505 = scmp.eq.s32.totalorder %s45, 0
      %p506 = por %p504, %p505
      %s507 = ssub.s32 %s46, %s58
      %p508 = scmp.eq.s32.totalorder %s507, 0
      %s510 = sadd.s32 %s509, 1
      %s511 = scalar_select %p508, %s509, %s510
      %p514 = pneg %p508
      %p515 = scmp.eq.s32.totalorder %s39, 1
      %p516 = por %p514, %p515
      %p517 = scmp.ne.s32.totalorder %s509, %s512
      %p518 = scmp.eq.s32.totalorder %s39, 0
      %p519 = por %p517, %p518
      %p520 = scmp.ne.s32.totalorder %s509, %s512
      %p521 = scmp.eq.s32.totalorder %s44, 1
      %p522 = por %p520, %p521
      %p523 = scmp.ne.s32.totalorder %s512, %s513
      %p524 = scmp.eq.s32.totalorder %s44, 0
      %p525 = por %p523, %p524
      %p526 = scmp.ne.s32.totalorder %s512, %s513
      %p527 = scmp.eq.s32.totalorder %s45, 1
      %p528 = por %p526, %p527
      %p530 = scmp.ne.s32.totalorder %s513, %s529
      %p531 = scmp.eq.s32.totalorder %s45, 0
      %p532 = por %p530, %p531
      %p533 = scmp.le.s32.totalorder 1, %s39
      %p534 = scmp.lt.s32.totalorder %s39, 3
      %p535 = pnand %p533, %p534
      %p536 = pneg %p535
      // Predicated region
      $region9: #{tpu_custom_call.1} parent=5 // pred_check
        _
      $region10: #{tpu_custom_call.1} parent=5 // pred_check_branch
        %538 = sbr.rel (%p535) target = $region12
      $region11: #{tpu_custom_call.1} parent=5 // pred_region
        %s539 = ssub.s32 %s39, 1
        // Predicated region
        $region13: #{tpu_custom_call.1} parent=11 // pred_check
          %p540 = pneg %p77
        $region14: #{tpu_custom_call.1} parent=11 // pred_check_branch
          %542 = sbr.rel (%p540) target = $region16
        $region15: #{tpu_custom_call.1} parent=11 // pred_region
          %s544 = ssub.s32 32, 32
          %545 = vsyncadd [#allocation4], %s544
          %s546 = smul.addr %s48, 32
          %s547 = scalar_lea.hbm %s0, %s546
          %s549 = sshll.u32 [#allocation3], 4
          %s550 = int_to_ptr.vmem [resolvable:$true] %s549
          %552 = dma.hbm_to_vmem [thread:$0]  %s547, 32, %s550, [#allocation4]
        $region16: #{tpu_custom_call.1} parent=11 // pred_fallthru
          _
        // Predicated region
        $region17: #{tpu_custom_call.1} parent=11 // pred_check
          %p553 = pneg %p103
        $region18: #{tpu_custom_call.1} parent=11 // pred_check_branch
          %555 = sbr.rel (%p553) target = $region20
        $region19: #{tpu_custom_call.1} parent=11 // pred_region
          %s556 = smul.u32 2, %s48
          %s558 = ssub.s32 256, 256
          %559 = vsyncadd [#allocation7], %s558
          %s560 = smul.addr %s556, 128
          %s561 = scalar_lea.hbm %s1, %s560
          %s562 = sshll.u32 [#allocation6], 4
          %s563 = int_to_ptr.vmem [resolvable:$true] %s562
          %568 = dma.hbm_to_vmem [thread:$0]  %s561, 256, %s563, [#allocation7], 128, 128, 8
        $region20: #{tpu_custom_call.1} parent=11 // pred_fallthru
          _
        // Predicated region
        $region21: #{tpu_custom_call.1} parent=11 // pred_check
          %p569 = pneg %p124
        $region22: #{tpu_custom_call.1} parent=11 // pred_check_branch
          %571 = sbr.rel (%p569) target = $region24
        $region23: #{tpu_custom_call.1} parent=11 // pred_region
          %s573 = ssub.s32 128, 128
          %574 = vsyncadd [#allocation7], %s573
          %s576 = sshll.u32 [#allocation8], 4
          %s577 = int_to_ptr.vmem [resolvable:$true] %s576
          %579 = dma.hbm_to_vmem [thread:$0]  %s2, 128, %s577, [#allocation7]
        $region24: #{tpu_custom_call.1} parent=11 // pred_fallthru
          _
        // Predicated region
        $region25: #{tpu_custom_call.1} parent=11 // pred_check
          %p580 = pneg %p457
        $region26: #{tpu_custom_call.1} parent=11 // pred_check_branch
          %582 = sbr.rel (%p580) target = $region28
        $region27: #{tpu_custom_call.1} parent=11 // pred_region
          _
        $region28: #{tpu_custom_call.1} parent=11 // pred_fallthru
          _
        // Predicated region
        $region29: #{tpu_custom_call.1} parent=11 // pred_check
          %p583 = pneg %p478
        $region30: #{tpu_custom_call.1} parent=11 // pred_check_branch
          %585 = sbr.rel (%p583) target = $region32
        $region31: #{tpu_custom_call.1} parent=11 // pred_region
          _
        $region32: #{tpu_custom_call.1} parent=11 // pred_fallthru
          _
        // Predicated region
        $region33: #{tpu_custom_call.1} parent=11 // pred_check
          %p586 = pneg %p499
        $region34: #{tpu_custom_call.1} parent=11 // pred_check_branch
          %588 = sbr.rel (%p586) target = $region36
        $region35: #{tpu_custom_call.1} parent=11 // pred_region
          %s590 = ssub.s32 1024, 1024
          %591 = vsyncadd [#allocation19], %s590
          %s592 = sshll.u32 [#allocation20], 4
          %s593 = int_to_ptr.vmem [resolvable:$true] %s592
          %598 = dma.hbm_to_vmem [thread:$0]  %s17, 1024, %s593, [#allocation19], 64, 64, 4
        $region36: #{tpu_custom_call.1} parent=11 // pred_fallthru
          _
      $region12: #{tpu_custom_call.1} parent=5 // pred_fallthru
        _
      %p599 = scmp.lt.s32.totalorder %s39, 2
      // Predicated region
      $region37: #{tpu_custom_call.1} parent=5 // pred_check
        %p600 = pneg %p599
      $region38: #{tpu_custom_call.1} parent=5 // pred_check_branch
        %602 = sbr.rel (%p600) target = $region40
      $region39: #{tpu_custom_call.1} parent=5 // pred_region
        // Predicated region
        $region41: #{tpu_custom_call.1} parent=39 // pred_check
          %p603 = pneg %p144
        $region42: #{tpu_custom_call.1} parent=39 // pred_check_branch
          %605 = sbr.rel (%p603) target = $region44
        $region43: #{tpu_custom_call.1} parent=39 // pred_region
          %p606 = scmp.lt.s32.totalorder %s47, 1
          %s607 = scalar_select %p606, %s47, 1
          %s608 = scalar_lea.vmem %s3, %s607
        $region44: #{tpu_custom_call.1} parent=39 // pred_fallthru
          _
        // Predicated region
        $region45: #{tpu_custom_call.1} parent=39 // pred_check
          %p609 = pneg %p170
        $region46: #{tpu_custom_call.1} parent=39 // pred_check_branch
          %611 = sbr.rel (%p609) target = $region48
        $region47: #{tpu_custom_call.1} parent=39 // pred_region
          %s612 = sand.u32 %s39, 1
          %s613 = scalar_lea.sflag [#allocation10], %s612
          %s614 = sand.u32 %s160, 1
          %s615 = scalar_lea.vmem [#allocation9], %s614
          %s617 = ssub.s32 16, 16
          %618 = vsyncadd %s613, %s617
          %s619 = smul.addr %s47, 16
          %s620 = scalar_lea.hbm %s4, %s619
          %s622 = sshll.u32 %s615, 4
          %s623 = int_to_ptr.vmem [resolvable:$true] %s622
          %625 = dma.hbm_to_vmem [thread:$0]  %s620, 16, %s623, %s613
        $region48: #{tpu_custom_call.1} parent=39 // pred_fallthru
          _
        // Predicated region
        $region49: #{tpu_custom_call.1} parent=39 // pred_check
          %p626 = pneg %p196
        $region50: #{tpu_custom_call.1} parent=39 // pred_check_branch
          %628 = sbr.rel (%p626) target = $region52
        $region51: #{tpu_custom_call.1} parent=39 // pred_region
          %s629 = sand.u32 %s39, 1
          %s630 = scalar_lea.sflag [#allocation10], %s629
          %s631 = sand.u32 %s186, 1
          %s632 = smul.addr %s631, 192
          %s633 = scalar_lea.vmem [#allocation11], %s632
          %s635 = ssub.s32 3072, 3072
          %636 = vsyncadd %s630, %s635
          %s637 = smul.addr %s47, 48
          %s638 = smul.addr %s637, 64
          %s639 = scalar_lea.hbm %s5, %s638
          %s640 = sshll.u32 %s633, 4
          %s641 = int_to_ptr.vmem [resolvable:$true] %s640
          %646 = dma.hbm_to_vmem [thread:$0]  %s639, 3072, %s641, %s630, 192, 192, 12
        $region52: #{tpu_custom_call.1} parent=39 // pred_fallthru
          _
        // Predicated region
        $region53: #{tpu_custom_call.1} parent=39 // pred_check
          %p647 = pneg %p222
        $region54: #{tpu_custom_call.1} parent=39 // pred_check_branch
          %649 = sbr.rel (%p647) target = $region56
        $region55: #{tpu_custom_call.1} parent=39 // pred_region
          %p650 = scmp.lt.s32.totalorder %s47, 1
          %s651 = scalar_select %p650, %s47, 1
          %s652 = smul.addr %s651, 3
          %s653 = scalar_lea.vmem %s6, %s652
        $region56: #{tpu_custom_call.1} parent=39 // pred_fallthru
          _
        // Predicated region
        $region57: #{tpu_custom_call.1} parent=39 // pred_check
          %p654 = pneg %p248
        $region58: #{tpu_custom_call.1} parent=39 // pred_check_branch
          %656 = sbr.rel (%p654) target = $region60
        $region59: #{tpu_custom_call.1} parent=39 // pred_region
          %s657 = sand.u32 %s39, 1
          %s658 = scalar_lea.sflag [#allocation13], %s657
          %s659 = sand.u32 %s238, 1
          %s660 = smul.addr %s659, 64
          %s661 = scalar_lea.vmem [#allocation12], %s660
          %s663 = ssub.s32 1024, 1024
          %664 = vsyncadd %s658, %s663
          %s665 = smul.addr %s47, 16
          %s666 = smul.addr %s665, 64
          %s667 = scalar_lea.hbm %s7, %s666
          %s668 = sshll.u32 %s661, 4
          %s669 = int_to_ptr.vmem [resolvable:$true] %s668
          %674 = dma.hbm_to_vmem [thread:$0]  %s667, 1024, %s669, %s658, 64, 64, 4
        $region60: #{tpu_custom_call.1} parent=39 // pred_fallthru
          _
        // Predicated region
        $region61: #{tpu_custom_call.1} parent=39 // pred_check
          %p675 = pneg %p274
        $region62: #{tpu_custom_call.1} parent=39 // pred_check_branch
          %677 = sbr.rel (%p675) target = $region64
        $region63: #{tpu_custom_call.1} parent=39 // pred_region
          %s678 = sand.u32 %s39, 1
          %s679 = scalar_lea.sflag [#allocation13], %s678
          %s680 = sand.u32 %s264, 1
          %s681 = scalar_lea.vmem [#allocation14], %s680
          %s683 = ssub.s32 16, 16
          %684 = vsyncadd %s679, %s683
          %s685 = smul.addr %s47, 16
          %s686 = scalar_lea.hbm %s8, %s685
          %s688 = sshll.u32 %s681, 4
          %s689 = int_to_ptr.vmem [resolvable:$true] %s688
          %691 = dma.hbm_to_vmem [thread:$0]  %s686, 16, %s689, %s679
        $region64: #{tpu_custom_call.1} parent=39 // pred_fallthru
          _
        // Predicated region
        $region65: #{tpu_custom_call.1} parent=39 // pred_check
          %p692 = pneg %p300
        $region66: #{tpu_custom_call.1} parent=39 // pred_check_branch
          %694 = sbr.rel (%p692) target = $region68
        $region67: #{tpu_custom_call.1} parent=39 // pred_region
          %s695 = sand.u32 %s39, 1
          %s696 = scalar_lea.sflag [#allocation16], %s695
          %s697 = sand.u32 %s290, 1
          %s698 = scalar_lea.vmem [#allocation15], %s697
          %s700 = ssub.s32 16, 16
          %701 = vsyncadd %s696, %s700
          %s702 = smul.addr %s47, 16
          %s703 = scalar_lea.hbm %s9, %s702
          %s705 = sshll.u32 %s698, 4
          %s706 = int_to_ptr.vmem [resolvable:$true] %s705
          %708 = dma.hbm_to_vmem [thread:$0]  %s703, 16, %s706, %s696
        $region68: #{tpu_custom_call.1} parent=39 // pred_fallthru
          _
        // Predicated region
        $region69: #{tpu_custom_call.1} parent=39 // pred_check
          %p709 = pneg %p326
        $region70: #{tpu_custom_call.1} parent=39 // pred_check_branch
          %711 = sbr.rel (%p709) target = $region72
        $region71: #{tpu_custom_call.1} parent=39 // pred_region
          %p712 = scmp.lt.s32.totalorder %s47, 1
          %s713 = scalar_select %p712, %s47, 1
          %s714 = scalar_lea.vmem %s10, %s713
        $region72: #{tpu_custom_call.1} parent=39 // pred_fallthru
          _
        // Predicated region
        $region73: #{tpu_custom_call.1} parent=39 // pred_check
          %p715 = pneg %p352
        $region74: #{tpu_custom_call.1} parent=39 // pred_check_branch
          %717 = sbr.rel (%p715) target = $region76
        $region75: #{tpu_custom_call.1} parent=39 // pred_region
          %s718 = sand.u32 %s39, 1
          %s719 = scalar_lea.sflag [#allocation16], %s718
          %s720 = sand.u32 %s342, 1
          %s721 = smul.addr %s720, 256
          %s722 = scalar_lea.vmem [#allocation17], %s721
          %s724 = ssub.s32 4096, 4096
          %725 = vsyncadd %s719, %s724
          %s726 = smul.addr %s47, 64
          %s727 = smul.addr %s726, 64
          %s728 = scalar_lea.hbm %s11, %s727
          %s729 = sshll.u32 %s722, 4
          %s730 = int_to_ptr.vmem [resolvable:$true] %s729
          %735 = dma.hbm_to_vmem [thread:$0]  %s728, 4096, %s730, %s719, 256, 256, 16
        $region76: #{tpu_custom_call.1} parent=39 // pred_fallthru
          _
        // Predicated region
        $region77: #{tpu_custom_call.1} parent=39 // pred_check
          %p736 = pneg %p378
        $region78: #{tpu_custom_call.1} parent=39 // pred_check_branch
          %738 = sbr.rel (%p736) target = $region80
        $region79: #{tpu_custom_call.1} parent=39 // pred_region
          %p739 = scmp.lt.s32.totalorder %s47, 1
          %s740 = scalar_select %p739, %s47, 1
          %s741 = smul.addr %s740, 4
          %s742 = scalar_lea.vmem %s12, %s741
        $region80: #{tpu_custom_call.1} parent=39 // pred_fallthru
          _
        // Predicated region
        $region81: #{tpu_custom_call.1} parent=39 // pred_check
          %p743 = pneg %p404
        $region82: #{tpu_custom_call.1} parent=39 // pred_check_branch
          %745 = sbr.rel (%p743) target = $region84
        $region83: #{tpu_custom_call.1} parent=39 // pred_region
          %s746 = sand.u32 %s39, 1
          %s747 = scalar_lea.sflag [#allocation19], %s746
          %s748 = sand.u32 %s394, 1
          %s749 = smul.addr %s748, 256
          %s750 = scalar_lea.vmem [#allocation18], %s749
          %s752 = ssub.s32 4096, 4096
          %753 = vsyncadd %s747, %s752
          %s754 = smul.addr %s47, 64
          %s755 = smul.addr %s754, 64
          %s756 = scalar_lea.hbm %s13, %s755
          %s757 = sshll.u32 %s750, 4
          %s758 = int_to_ptr.vmem [resolvable:$true] %s757
          %763 = dma.hbm_to_vmem [thread:$0]  %s756, 4096, %s758, %s747, 64, 64, 4
        $region84: #{tpu_custom_call.1} parent=39 // pred_fallthru
          _
        // Predicated region
        $region85: #{tpu_custom_call.1} parent=39 // pred_check
          %p764 = pneg %p430
        $region86: #{tpu_custom_call.1} parent=39 // pred_check_branch
          %766 = sbr.rel (%p764) target = $region88
        $region87: #{tpu_custom_call.1} parent=39 // pred_region
          %p767 = scmp.lt.s32.totalorder %s47, 1
          %s768 = scalar_select %p767, %s47, 1
          %s769 = scalar_lea.vmem %s14, %s768
        $region88: #{tpu_custom_call.1} parent=39 // pred_fallthru
          _
      $region40: #{tpu_custom_call.1} parent=5 // pred_fallthru
        _
      %p770 = scmp.le.s32.totalorder 1, %s39
      %p771 = scmp.lt.s32.totalorder %s39, 3
      %p772 = pnand %p770, %p771
      %p773 = pneg %p772
      // Predicated region
      $region89: #{tpu_custom_call.1} parent=5 // pred_check
        _
      $region90: #{tpu_custom_call.1} parent=5 // pred_check_branch
        %775 = sbr.rel (%p772) target = $region92
      $region91: #{tpu_custom_call.1} parent=5 // pred_region
        %s776 = ssub.s32 %s39, 1
        // Predicated region
        $region93: #{tpu_custom_call.1} parent=91 // pred_check
          %p777 = pneg %p77
        $region94: #{tpu_custom_call.1} parent=91 // pred_check_branch
          %779 = sbr.rel (%p777) target = $region96
        $region95: #{tpu_custom_call.1} parent=91 // pred_region
          %780 = dma.done [#allocation4], 32
        $region96: #{tpu_custom_call.1} parent=91 // pred_fallthru
          _
        // Predicated region
        $region97: #{tpu_custom_call.1} parent=91 // pred_check
          %p781 = pneg %p103
        $region98: #{tpu_custom_call.1} parent=91 // pred_check_branch
          %783 = sbr.rel (%p781) target = $region100
        $region99: #{tpu_custom_call.1} parent=91 // pred_region
          %784 = dma.done [#allocation7], 256
        $region100: #{tpu_custom_call.1} parent=91 // pred_fallthru
          _
        // Predicated region
        $region101: #{tpu_custom_call.1} parent=91 // pred_check
          %p785 = pneg %p124
        $region102: #{tpu_custom_call.1} parent=91 // pred_check_branch
          %787 = sbr.rel (%p785) target = $region104
        $region103: #{tpu_custom_call.1} parent=91 // pred_region
          %788 = dma.done [#allocation7], 128
        $region104: #{tpu_custom_call.1} parent=91 // pred_fallthru
          _
        %s789 = sand.u32 %s44, 1
        %s790 = scalar_lea.sflag [#allocation10], %s789
        %s791 = sand.u32 %s163, 1
        %s792 = scalar_lea.vmem [#allocation9], %s791
        // Predicated region
        $region105: #{tpu_custom_call.1} parent=91 // pred_check
          %p793 = pneg %p176
        $region106: #{tpu_custom_call.1} parent=91 // pred_check_branch
          %795 = sbr.rel (%p793) target = $region108
        $region107: #{tpu_custom_call.1} parent=91 // pred_region
          %796 = dma.done %s790, 16
        $region108: #{tpu_custom_call.1} parent=91 // pred_fallthru
          _
        %s797 = sand.u32 %s44, 1
        %s798 = scalar_lea.sflag [#allocation10], %s797
        %s799 = sand.u32 %s189, 1
        %s800 = smul.addr %s799, 192
        %s801 = scalar_lea.vmem [#allocation11], %s800
        // Predicated region
        $region109: #{tpu_custom_call.1} parent=91 // pred_check
          %p802 = pneg %p202
        $region110: #{tpu_custom_call.1} parent=91 // pred_check_branch
          %804 = sbr.rel (%p802) target = $region112
        $region111: #{tpu_custom_call.1} parent=91 // pred_region
          %805 = dma.done %s798, 3072
        $region112: #{tpu_custom_call.1} parent=91 // pred_fallthru
          _
        %s806 = sand.u32 %s44, 1
        %s807 = scalar_lea.sflag [#allocation13], %s806
        %s808 = sand.u32 %s241, 1
        %s809 = smul.addr %s808, 64
        %s810 = scalar_lea.vmem [#allocation12], %s809
        // Predicated region
        $region113: #{tpu_custom_call.1} parent=91 // pred_check
          %p811 = pneg %p254
        $region114: #{tpu_custom_call.1} parent=91 // pred_check_branch
          %813 = sbr.rel (%p811) target = $region116
        $region115: #{tpu_custom_call.1} parent=91 // pred_region
          %814 = dma.done %s807, 1024
        $region116: #{tpu_custom_call.1} parent=91 // pred_fallthru
          _
        %s815 = sand.u32 %s44, 1
        %s816 = scalar_lea.sflag [#allocation13], %s815
        %s817 = sand.u32 %s267, 1
        %s818 = scalar_lea.vmem [#allocation14], %s817
        // Predicated region
        $region117: #{tpu_custom_call.1} parent=91 // pred_check
          %p819 = pneg %p280
        $region118: #{tpu_custom_call.1} parent=91 // pred_check_branch
          %821 = sbr.rel (%p819) target = $region120
        $region119: #{tpu_custom_call.1} parent=91 // pred_region
          %822 = dma.done %s816, 16
        $region120: #{tpu_custom_call.1} parent=91 // pred_fallthru
          _
        %s823 = sand.u32 %s44, 1
        %s824 = scalar_lea.sflag [#allocation16], %s823
        %s825 = sand.u32 %s293, 1
        %s826 = scalar_lea.vmem [#allocation15], %s825
        // Predicated region
        $region121: #{tpu_custom_call.1} parent=91 // pred_check
          %p827 = pneg %p306
        $region122: #{tpu_custom_call.1} parent=91 // pred_check_branch
          %829 = sbr.rel (%p827) target = $region124
        $region123: #{tpu_custom_call.1} parent=91 // pred_region
          %830 = dma.done %s824, 16
        $region124: #{tpu_custom_call.1} parent=91 // pred_fallthru
          _
        %s831 = sand.u32 %s44, 1
        %s832 = scalar_lea.sflag [#allocation16], %s831
        %s833 = sand.u32 %s345, 1
        %s834 = smul.addr %s833, 256
        %s835 = scalar_lea.vmem [#allocation17], %s834
        // Predicated region
        $region125: #{tpu_custom_call.1} parent=91 // pred_check
          %p836 = pneg %p358
        $region126: #{tpu_custom_call.1} parent=91 // pred_check_branch
          %838 = sbr.rel (%p836) target = $region128
        $region127: #{tpu_custom_call.1} parent=91 // pred_region
          %839 = dma.done %s832, 4096
        $region128: #{tpu_custom_call.1} parent=91 // pred_fallthru
          _
        %s840 = sand.u32 %s44, 1
        %s841 = scalar_lea.sflag [#allocation19], %s840
        %s842 = sand.u32 %s397, 1
        %s843 = smul.addr %s842, 256
        %s844 = scalar_lea.vmem [#allocation18], %s843
        // Predicated region
        $region129: #{tpu_custom_call.1} parent=91 // pred_check
          %p845 = pneg %p410
        $region130: #{tpu_custom_call.1} parent=91 // pred_check_branch
          %847 = sbr.rel (%p845) target = $region132
        $region131: #{tpu_custom_call.1} parent=91 // pred_region
          %848 = dma.done %s841, 4096
        $region132: #{tpu_custom_call.1} parent=91 // pred_fallthru
          _
        // Predicated region
        $region133: #{tpu_custom_call.1} parent=91 // pred_check
          %p849 = pneg %p499
        $region134: #{tpu_custom_call.1} parent=91 // pred_check_branch
          %851 = sbr.rel (%p849) target = $region136
        $region135: #{tpu_custom_call.1} parent=91 // pred_region
          %852 = dma.done [#allocation19], 1024
        $region136: #{tpu_custom_call.1} parent=91 // pred_fallthru
          _
        %p853 = pneg %p77
        %p854 = pneg %p74
        %p855 = pneg %p103
        %p856 = pneg %p100
        %p857 = pneg %p124
        %p858 = pneg %p121
        %p859 = scmp.lt.s32.totalorder %s49, 1
        %s860 = scalar_select %p859, %s49, 1
        %s861 = scalar_lea.vmem %s3, %s860
        %p862 = pneg %p150
        %p863 = pneg %p147
        %s864 = sand.u32 %s44, 1
        %s865 = scalar_lea.sflag [#allocation10], %s864
        %s866 = sand.u32 %s163, 1
        %s867 = scalar_lea.vmem [#allocation9], %s866
        %p868 = pneg %p176
        %p869 = pneg %p173
        %s870 = sand.u32 %s44, 1
        %s871 = scalar_lea.sflag [#allocation10], %s870
        %s872 = sand.u32 %s189, 1
        %s873 = smul.addr %s872, 192
        %s874 = scalar_lea.vmem [#allocation11], %s873
        %p875 = pneg %p202
        %p876 = pneg %p199
        %p877 = scmp.lt.s32.totalorder %s49, 1
        %s878 = scalar_select %p877, %s49, 1
        %s879 = smul.addr %s878, 3
        %s880 = scalar_lea.vmem %s6, %s879
        %p881 = pneg %p228
        %p882 = pneg %p225
        %s883 = sand.u32 %s44, 1
        %s884 = scalar_lea.sflag [#allocation13], %s883
        %s885 = sand.u32 %s241, 1
        %s886 = smul.addr %s885, 64
        %s887 = scalar_lea.vmem [#allocation12], %s886
        %p888 = pneg %p254
        %p889 = pneg %p251
        %s890 = sand.u32 %s44, 1
        %s891 = scalar_lea.sflag [#allocation13], %s890
        %s892 = sand.u32 %s267, 1
        %s893 = scalar_lea.vmem [#allocation14], %s892
        %p894 = pneg %p280
        %p895 = pneg %p277
        %s896 = sand.u32 %s44, 1
        %s897 = scalar_lea.sflag [#allocation16], %s896
        %s898 = sand.u32 %s293, 1
        %s899 = scalar_lea.vmem [#allocation15], %s898
        %p900 = pneg %p306
        %p901 = pneg %p303
        %p902 = scmp.lt.s32.totalorder %s49, 1
        %s903 = scalar_select %p902, %s49, 1
        %s904 = scalar_lea.vmem %s10, %s903
        %p905 = pneg %p332
        %p906 = pneg %p329
        %s907 = sand.u32 %s44, 1
        %s908 = scalar_lea.sflag [#allocation16], %s907
        %s909 = sand.u32 %s345, 1
        %s910 = smul.addr %s909, 256
        %s911 = scalar_lea.vmem [#allocation17], %s910
        %p912 = pneg %p358
        %p913 = pneg %p355
        %p914 = scmp.lt.s32.totalorder %s49, 1
        %s915 = scalar_select %p914, %s49, 1
        %s916 = smul.addr %s915, 4
        %s917 = scalar_lea.vmem %s12, %s916
        %p918 = pneg %p384
        %p919 = pneg %p381
        %s920 = sand.u32 %s44, 1
        %s921 = scalar_lea.sflag [#allocation19], %s920
        %s922 = sand.u32 %s397, 1
        %s923 = smul.addr %s922, 256
        %s924 = scalar_lea.vmem [#allocation18], %s923
        %p925 = pneg %p410
        %p926 = pneg %p407
        %p927 = scmp.lt.s32.totalorder %s49, 1
        %s928 = scalar_select %p927, %s49, 1
        %s929 = scalar_lea.vmem %s14, %s928
        %p930 = pneg %p436
        %p931 = pneg %p433
        %p932 = pneg %p457
        %p933 = pneg %p454
        %p934 = pneg %p478
        %p935 = pneg %p475
        %p936 = pneg %p499
        %p937 = pneg %p496
        %p938 = pneg %p525
        %p939 = pneg %p522
        %s940 = smul.u32 2, %s48
        %p941 = scmp.lt.s32.totalorder %s49, 1
        %s942 = scalar_select %p941, %s49, 1
        %s943 = scalar_lea.vmem %s3, %s942
        %p944 = scmp.lt.s32.totalorder %s49, 1
        %s945 = scalar_select %p944, %s49, 1
        %s946 = smul.addr %s945, 3
        %s947 = scalar_lea.vmem %s6, %s946
        %p948 = scmp.lt.s32.totalorder %s49, 1
        %s949 = scalar_select %p948, %s49, 1
        %s950 = scalar_lea.vmem %s10, %s949
        %p951 = scmp.lt.s32.totalorder %s49, 1
        %s952 = scalar_select %p951, %s49, 1
        %s953 = smul.addr %s952, 4
        %s954 = scalar_lea.vmem %s12, %s953
        %p955 = scmp.lt.s32.totalorder %s49, 1
        %s956 = scalar_select %p955, %s49, 1
        %s957 = scalar_lea.vmem %s14, %s956
        %p959 = scmp.eq.s32.totalorder %s49, 0
        // Predicated region
        $region137: #{tpu_custom_call.1} parent=91 // pred_check
          %p960 = pneg %p959
        $region138: #{tpu_custom_call.1} parent=91 // pred_check_branch
          %962 = sbr.rel (%p960) target = $region140
        $region139: #{tpu_custom_call.1} parent=91 // pred_region
          %v963 = vld [vmem:[#allocation8] sm:$0xff]
          %v964 = vld [vmem:[#allocation6] sm:$0xff]
          %v965 = vadd.f32 %v964, %v963
          %966 = vst [vmem:[#allocation2] sm:$0xff] %v965
          %s967 = scalar_lea.vmem [#allocation6], 8
          %v968 = vld [vmem:[%s967] sm:$0xff]
          %v969 = vadd.f32 %v968, %v963
          %970 = vst [vmem:[#allocation2 + $0x8] sm:$0xff] %v969
        $region140: #{tpu_custom_call.1} parent=91 // pred_fallthru
          _
        %v971 = vld [vmem:[#allocation2] sm:$0xff]
        %v972 = vld [vmem:[#allocation2 + $0x8] sm:$0xff]
        %v973 = vld [vmem:[%s943] sm:$0x1]
        %v974 = vld [vmem:[%s792] sm:$0x1]
        %975 = vadd.xlane.f32.xlu0 %v971
        %v976 = vpop.xlane.xlu0 %975
        %977 = vadd.xlane.f32.xlu0 %v972
        %v978 = vpop.xlane.xlu0 %977
        %v979 = vrcp.pop 128.0
        %v980 = vmul.f32 %v976, %v979
        %v981 = vmul.f32 %v978, %v979
        %v982 = vsub.f32 %v971, %v980
        %v983 = vsub.f32 %v972, %v981
        %v984 = vmul.f32 %v982, %v982
        %v985 = vmul.f32 %v983, %v983
        %986 = vadd.xlane.f32.xlu0 %v984
        %v987 = vpop.xlane.xlu0 %986
        %988 = vadd.xlane.f32.xlu0 %v985
        %v989 = vpop.xlane.xlu0 %988
        %v990 = vmul.f32 %v987, %v979
        %v991 = vmul.f32 %v989, %v979
        %v992 = vadd.f32 %v990, 1e-05
        %v993 = vadd.f32 %v991, 1e-05
        %v994 = vrsqrt.pop %v992
        %v995 = vrsqrt.pop %v993
        %v996 = vmul.f32 %v982, %v994
        %v997 = vmul.f32 %v983, %v995
        %v999 = vlaneseq
        %v1000 = vshrl.u32 %v999, 7
        %v1001 = vsub.s32 0, %v1000
        %v1002 = vrot.slane %v973, %v1001
        %v1004 = vmul.f32 %v996, %v1002
        %v1005 = vmul.f32 %v997, %v1002
        %v1007 = vlaneseq
        %v1008 = vshrl.u32 %v1007, 7
        %v1009 = vsub.s32 0, %v1008
        %v1010 = vrot.slane %v974, %v1009
        %v1012 = vadd.f32 %v1004, %v1010
        %v1013 = vadd.f32 %v1005, %v1010
        %v1014 = vpack.c.bf16 %v1013, %v1012
        %v1015 = vld [vmem:[%s801] sm:$0xff]
        %v1016 = vld [vmem:[%s801 + $0x8] sm:$0xf]
        %v1017 = vld [vmem:[%s801 + $0xc] sm:$0xff]
        %v1018 = vld [vmem:[%s801 + $0x14] sm:$0xf]
        %v1019 = vld [vmem:[%s801 + $0x18] sm:$0xff]
        %v1020 = vld [vmem:[%s801 + $0x20] sm:$0xf]
        %v1021 = vld [vmem:[%s801 + $0x24] sm:$0xff]
        %v1022 = vld [vmem:[%s801 + $0x2c] sm:$0xf]
        %v1023 = vld [vmem:[%s801 + $0x30] sm:$0xff]
        %v1024 = vld [vmem:[%s801 + $0x38] sm:$0xf]
        %v1025 = vld [vmem:[%s801 + $0x3c] sm:$0xff]
        %v1026 = vld [vmem:[%s801 + $0x44] sm:$0xf]
        %v1027 = vld [vmem:[%s801 + $0x48] sm:$0xff]
        %v1028 = vld [vmem:[%s801 + $0x50] sm:$0xf]
        %v1029 = vld [vmem:[%s801 + $0x54] sm:$0xff]
        %v1030 = vld [vmem:[%s801 + $0x5c] sm:$0xf]
        %v1031 = vld [vmem:[%s801 + $0x60] sm:$0xff]
        %v1032 = vld [vmem:[%s801 + $0x68] sm:$0xf]
        %v1033 = vld [vmem:[%s801 + $0x6c] sm:$0xff]
        %v1034 = vld [vmem:[%s801 + $0x74] sm:$0xf]
        %v1035 = vld [vmem:[%s801 + $0x78] sm:$0xff]
        %v1036 = vld [vmem:[%s801 + $0x80] sm:$0xf]
        %v1037 = vld [vmem:[%s801 + $0x84] sm:$0xff]
        %v1038 = vld [vmem:[%s801 + $0x8c] sm:$0xf]
        %v1039 = vld [vmem:[%s801 + $0x90] sm:$0xff]
        %v1040 = vld [vmem:[%s801 + $0x98] sm:$0xf]
        %v1041 = vld [vmem:[%s801 + $0x9c] sm:$0xff]
        %v1042 = vld [vmem:[%s801 + $0xa4] sm:$0xf]
        %v1043 = vld [vmem:[%s801 + $0xa8] sm:$0xff]
        %v1044 = vld [vmem:[%s801 + $0xb0] sm:$0xf]
        %v1045 = vld [vmem:[%s801 + $0xb4] sm:$0xff]
        %v1046 = vld [vmem:[%s801 + $0xbc] sm:$0xf]
        %v1047 = vld [vmem:[%s947] sm:$0x7]
        %v1049 = vlaneseq
        %v1050 = vshrl.u32 %v1049, 7
        %v1051 = vsub.s32 0, %v1050
        %v1052 = vrot.slane %v1047, %v1051
        %v1053 = vlaneseq
        %v1054 = vshrl.u32 %v1053, 7
        %v1055 = vsub.s32 1, %v1054
        %v1056 = vrot.slane %v1047, %v1055
        %v1057 = vlaneseq
        %v1058 = vshrl.u32 %v1057, 7
        %v1059 = vsub.s32 2, %v1058
        %v1060 = vrot.slane %v1047, %v1059
        %v1096 = vunpack.c.l.b16 %v1015
        %v1097 = vunpack.c.h.b16 %v1015
        %v1098 = vunpack.c.l.b16 %v1016
        %v1099 = vunpack.c.l.b16 %v1017
        %v1100 = vunpack.c.h.b16 %v1017
        %v1101 = vunpack.c.l.b16 %v1018
        %v1102 = vunpack.c.l.b16 %v1019
        %v1103 = vunpack.c.h.b16 %v1019
        %v1104 = vunpack.c.l.b16 %v1020
        %v1105 = vunpack.c.l.b16 %v1021
        %v1106 = vunpack.c.h.b16 %v1021
        %v1107 = vunpack.c.l.b16 %v1022
        %v1108 = vunpack.c.l.b16 %v1023
        %v1109 = vunpack.c.h.b16 %v1023
        %v1110 = vunpack.c.l.b16 %v1024
        %v1111 = vunpack.c.l.b16 %v1025
        %v1112 = vunpack.c.h.b16 %v1025
        %v1113 = vunpack.c.l.b16 %v1026
        %v1114 = vunpack.c.l.b16 %v1027
        %v1115 = vunpack.c.h.b16 %v1027
        %v1116 = vunpack.c.l.b16 %v1028
        %v1117 = vunpack.c.l.b16 %v1029
        %v1118 = vunpack.c.h.b16 %v1029
        %v1119 = vunpack.c.l.b16 %v1030
        %v1120 = vunpack.c.l.b16 %v1031
        %v1121 = vunpack.c.h.b16 %v1031
        %v1122 = vunpack.c.l.b16 %v1032
        %v1123 = vunpack.c.l.b16 %v1033
        %v1124 = vunpack.c.h.b16 %v1033
        %v1125 = vunpack.c.l.b16 %v1034
        %v1126 = vunpack.c.l.b16 %v1035
        %v1127 = vunpack.c.h.b16 %v1035
        %v1128 = vunpack.c.l.b16 %v1036
        %v1129 = vunpack.c.l.b16 %v1037
        %v1130 = vunpack.c.h.b16 %v1037
        %v1131 = vunpack.c.l.b16 %v1038
        %v1132 = vunpack.c.l.b16 %v1039
        %v1133 = vunpack.c.h.b16 %v1039
        %v1134 = vunpack.c.l.b16 %v1040
        %v1135 = vunpack.c.l.b16 %v1041
        %v1136 = vunpack.c.h.b16 %v1041
        %v1137 = vunpack.c.l.b16 %v1042
        %v1138 = vunpack.c.l.b16 %v1043
        %v1139 = vunpack.c.h.b16 %v1043
        %v1140 = vunpack.c.l.b16 %v1044
        %v1141 = vunpack.c.l.b16 %v1045
        %v1142 = vunpack.c.h.b16 %v1045
        %v1143 = vunpack.c.l.b16 %v1046
        %v1144 = vpack.c.b16 %v1099, %v1096
        %v1145 = vpack.c.b16 %v1100, %v1097
        %v1146 = vpack.c.b16 %v1101, %v1098
        %v1147 = vpack.c.b16 %v1105, %v1102
        %v1148 = vpack.c.b16 %v1106, %v1103
        %v1149 = vpack.c.b16 %v1107, %v1104
        %v1150 = vpack.c.b16 %v1111, %v1108
        %v1151 = vpack.c.b16 %v1112, %v1109
        %v1152 = vpack.c.b16 %v1113, %v1110
        %v1153 = vpack.c.b16 %v1117, %v1114
        %v1154 = vpack.c.b16 %v1118, %v1115
        %v1155 = vpack.c.b16 %v1119, %v1116
        %v1156 = vpack.c.b16 %v1123, %v1120
        %v1157 = vpack.c.b16 %v1124, %v1121
        %v1158 = vpack.c.b16 %v1125, %v1122
        %v1159 = vpack.c.b16 %v1129, %v1126
        %v1160 = vpack.c.b16 %v1130, %v1127
        %v1161 = vpack.c.b16 %v1131, %v1128
        %v1162 = vpack.c.b16 %v1135, %v1132
        %v1163 = vpack.c.b16 %v1136, %v1133
        %v1164 = vpack.c.b16 %v1137, %v1134
        %v1165 = vpack.c.b16 %v1141, %v1138
        %v1166 = vpack.c.b16 %v1142, %v1139
        %v1167 = vpack.c.b16 %v1143, %v1140
        %1192 = vmatprep.subr.bf16.mxu0 %v1166
        %1193 = vmatpush1.bf16.msra.mxu0 %v1165
        %1194 = vmatprep.subr.bf16.mxu0 %v1163
        %1195 = vmatpush1.bf16.msra.mxu0 %v1162
        %1196 = vmatprep.subr.bf16.mxu0 %v1160
        %1197 = vmatpush1.bf16.msra.mxu0 %v1159
        %1198 = vmatprep.subr.bf16.mxu0 %v1157
        %1199 = vmatpush1.bf16.msra.mxu0 %v1156
        %1200 = vmatprep.subr.bf16.mxu0 %v1154
        %1201 = vmatpush1.bf16.msra.mxu0 %v1153
        %1202 = vmatprep.subr.bf16.mxu0 %v1151
        %1203 = vmatpush1.bf16.msra.mxu0 %v1150
        %1204 = vmatprep.subr.bf16.mxu0 %v1148
        %1205 = vmatpush1.bf16.msra.mxu0 %v1147
        %1206 = vmatprep.subr.bf16.mxu0 %v1145
        %1207 = vmatpush1.bf16.msra.mxu0 %v1144
        %1208 = vmatprep.subr.bf16.mxu0 0
        %1209 = vmatpush2.bf16.msra.mxu0 0
        %1210 = vmatprep.subr.bf16.mxu0 0
        %1211 = vmatpush2.bf16.msra.mxu0 0
        %1212 = vmatprep.subr.bf16.mxu0 0
        %1213 = vmatpush2.bf16.msra.mxu0 0
        %1214 = vmatprep.subr.bf16.mxu0 0
        %1215 = vmatpush2.bf16.msra.mxu0 0
        %1216 = vmatprep.subr.bf16.mxu0 0
        %1217 = vmatpush2.bf16.msra.mxu0 0
        %1218 = vmatprep.subr.bf16.mxu0 0
        %1219 = vmatpush2.bf16.msra.mxu0 0
        %1220 = vmatprep.subr.bf16.mxu0 0
        %1221 = vmatpush2.bf16.msra.mxu0 0
        %1222 = vmatprep.subr.bf16.mxu0 0
        %1223 = vmatpush2.bf16.msra.mxu0 0
        %1224 = vmatprep.mubr.bf16.mxu0 0
        %1225 = vmatmul.mubr.bf16.gmra.mxu0 %v1014
        %v1226 = vpop.f32.mrf.mxu0
        %v1227 = vadd.f32 %v1052, %v1226
        %v1228 = vpop.f32.mrf.mxu0
        %v1229 = vadd.f32 %v1056, %v1228
        %v1230 = vpop.f32.mrf.mxu0
        %v1231 = vadd.f32 %v1052, %v1230
        %v1232 = vpop.f32.mrf.mxu0
        %v1233 = vadd.f32 %v1056, %v1232
        %1234 = vdwg.mxu0
        %1235 = vmatprep.subr.bf16.mxu0 0
        %1236 = vmatpush1.bf16.msra.mxu0 %v1167
        %1237 = vmatprep.subr.bf16.mxu0 0
        %1238 = vmatpush1.bf16.msra.mxu0 %v1164
        %1239 = vmatprep.subr.bf16.mxu0 0
        %1240 = vmatpush1.bf16.msra.mxu0 %v1161
        %1241 = vmatprep.subr.bf16.mxu0 0
        %1242 = vmatpush1.bf16.msra.mxu0 %v1158
        %1243 = vmatprep.subr.bf16.mxu0 0
        %1244 = vmatpush1.bf16.msra.mxu0 %v1155
        %1245 = vmatprep.subr.bf16.mxu0 0
        %1246 = vmatpush1.bf16.msra.mxu0 %v1152
        %1247 = vmatprep.subr.bf16.mxu0 0
        %1248 = vmatpush1.bf16.msra.mxu0 %v1149
        %1249 = vmatprep.subr.bf16.mxu0 0
        %1250 = vmatpush1.bf16.msra.mxu0 %v1146
        %1251 = vmatprep.subr.bf16.mxu0 0
        %1252 = vmatpush2.bf16.msra.mxu0 0
        %1253 = vmatprep.subr.bf16.mxu0 0
        %1254 = vmatpush2.bf16.msra.mxu0 0
        %1255 = vmatprep.subr.bf16.mxu0 0
        %1256 = vmatpush2.bf16.msra.mxu0 0
        %1257 = vmatprep.subr.bf16.mxu0 0
        %1258 = vmatpush2.bf16.msra.mxu0 0
        %1259 = vmatprep.subr.bf16.mxu0 0
        %1260 = vmatpush2.bf16.msra.mxu0 0
        %1261 = vmatprep.subr.bf16.mxu0 0
        %1262 = vmatpush2.bf16.msra.mxu0 0
        %1263 = vmatprep.subr.bf16.mxu0 0
        %1264 = vmatpush2.bf16.msra.mxu0 0
        %1265 = vmatprep.subr.bf16.mxu0 0
        %1266 = vmatpush2.bf16.msra.mxu0 0
        %1267 = vmatprep.mubr.bf16.mxu0 0
        %1268 = vmatmul.mubr.bf16.gmra.mxu0 %v1014
        %v1269 = vpop.f32.mrf.mxu0
        %v1270 = vadd.f32 %v1060, %v1269
        %v1271 = vpop.f32.mrf.mxu0
        %v1272 = vpop.f32.mrf.mxu0
        %v1273 = vadd.f32 %v1060, %v1272
        %v1274 = vpop.f32.mrf.mxu0
        %1275 = vdwg.mxu0
        %v1276 = vlaneseq
        %v1277 = vshrl.u32 %v1276, 7
        %v1278 = vlaneseq
        %v1279 = vand.u32 %v1278, 127
        %vm1280 = vcmp.le.s32.totalorder %v1279, %v1277
        %vm1281 = vcmask 523264
        %v1283 = vsel %vm1281, %v1227, 0
        %v1286 = vsel %vm1281, %v1229, 0
        %1288 = vmatprep.subr.mxu0 0.0
        %1289 = vmatpush1.xpose.msra.mxu0 0.0
        %1290 = vmatprep.subr.mxu0 0.0
        %1291 = vmatpush1.xpose.msra.mxu0 0.0
        %1292 = vmatprep.subr.mxu0 0.0
        %1293 = vmatpush1.xpose.msra.mxu0 0.0
        %1294 = vmatprep.subr.mxu0 0.0
        %1295 = vmatpush1.xpose.msra.mxu0 0.0
        %1296 = vmatprep.subr.mxu0 0.0
        %1297 = vmatpush1.xpose.msra.mxu0 0.0
        %1298 = vmatprep.subr.mxu0 0.0
        %1299 = vmatpush1.xpose.msra.mxu0 0.0
        %1300 = vmatprep.subr.mxu0 0.0
        %1301 = vmatpush1.xpose.msra.mxu0 0.0
        %1302 = vmatprep.subr.mxu0 0.0
        %1303 = vmatpush1.xpose.msra.mxu0 0.0
        %1304 = vmatprep.subr.mxu0 0.0
        %1305 = vmatpush1.xpose.msra.mxu0 0.0
        %1306 = vmatprep.subr.mxu0 0.0
        %1307 = vmatpush1.xpose.msra.mxu0 0.0
        %1308 = vmatprep.subr.mxu0 0.0
        %1309 = vmatpush1.xpose.msra.mxu0 0.0
        %1310 = vmatprep.subr.mxu0 0.0
        %1311 = vmatpush1.xpose.msra.mxu0 0.0
        %1312 = vmatprep.subr.mxu0 0.0
        %1313 = vmatpush1.xpose.msra.mxu0 0.0
        %1314 = vmatprep.subr.mxu0 0.0
        %1315 = vmatpush1.xpose.msra.mxu0 0.0
        %1316 = vmatprep.subr.mxu0 0.0
        %1317 = vmatpush1.xpose.msra.mxu0 0.0
        %1318 = vmatprep.subr.mxu0 0.0
        %1319 = vmatpush1.xpose.msra.mxu0 %v1286
        %1320 = vmatprep.subr.mxu0 0.0
        %1321 = vmatpush2.xpose.msra.mxu0 0.0
        %1322 = vmatprep.subr.mxu0 0.0
        %1323 = vmatpush2.xpose.msra.mxu0 0.0
        %1324 = vmatprep.subr.mxu0 0.0
        %1325 = vmatpush2.xpose.msra.mxu0 0.0
        %1326 = vmatprep.subr.mxu0 0.0
        %1327 = vmatpush2.xpose.msra.mxu0 0.0
        %1328 = vmatprep.subr.mxu0 0.0
        %1329 = vmatpush2.xpose.msra.mxu0 0.0
        %1330 = vmatprep.subr.mxu0 0.0
        %1331 = vmatpush2.xpose.msra.mxu0 0.0
        %1332 = vmatprep.subr.mxu0 0.0
        %1333 = vmatpush2.xpose.msra.mxu0 0.0
        %1334 = vmatprep.subr.mxu0 0.0
        %1335 = vmatpush2.xpose.msra.mxu0 0.0
        %1336 = vmatprep.subr.mxu0 0.0
        %1337 = vmatpush2.xpose.msra.mxu0 0.0
        %1338 = vmatprep.subr.mxu0 0.0
        %1339 = vmatpush2.xpose.msra.mxu0 0.0
        %1340 = vmatprep.subr.mxu0 0.0
        %1341 = vmatpush2.xpose.msra.mxu0 0.0
        %1342 = vmatprep.subr.mxu0 0.0
        %1343 = vmatpush2.xpose.msra.mxu0 0.0
        %1344 = vmatprep.subr.mxu0 0.0
        %1345 = vmatpush2.xpose.msra.mxu0 0.0
        %1346 = vmatprep.subr.mxu0 0.0
        %1347 = vmatpush2.xpose.msra.mxu0 0.0
        %1348 = vmatprep.subr.mxu0 0.0
        %1349 = vmatpush2.xpose.msra.mxu0 0.0
        %1350 = vmatprep.subr.mxu0 0.0
        %1351 = vmatpush2.xpose.msra.mxu0 0.0
        %1352 = vmatprep.mubr.f32.mxu0 0.0
        %1353 = vmatmul.mubr.f32.gmra.mxu0 %v1283
        %v1354 = vpop.f32.mrf.mxu0
        %v1355 = vadd.f32 0.0, %v1354
        %v1356 = vpop.f32.mrf.mxu0
        %1357 = vdwg.mxu0
        %v1358 = vmul.f32 %v1355, 0.125
        %v1359 = vsel %vm1280, %v1358, -1e+30
        %vm1360 = vcmask 64512
        %v1361 = vsel %vm1360, %v1359, -inf
        %1362 = vmax.xlane.f32.xlu0 %v1361
        %v1363 = vpop.xlane.xlu0 %1362
        %v1364 = vsub.f32 %v1359, %v1363
        %v1365 = vmul.f32 %v1364, 1.442695
        %v1366 = vpow.pop %v1365
        %v1367 = vsel %vm1360, %v1366, 0.0
        %1368 = vadd.xlane.f32.xlu0 %v1367
        %v1369 = vpop.xlane.xlu0 %1368
        %v1370 = vrcp.pop %v1369
        %v1371 = vmul.f32 %v1366, %v1370
        %v1373 = vsel %vm1360, %v1371, 0
        %1375 = vmatprep.subr.mxu0 0.0
        %1376 = vmatpush1.msra.mxu0 0.0
        %1377 = vmatprep.subr.mxu0 0.0
        %1378 = vmatpush1.msra.mxu0 0.0
        %1379 = vmatprep.subr.mxu0 0.0
        %1380 = vmatpush1.msra.mxu0 0.0
        %1381 = vmatprep.subr.mxu0 0.0
        %1382 = vmatpush1.msra.mxu0 0.0
        %1383 = vmatprep.subr.mxu0 0.0
        %1384 = vmatpush1.msra.mxu0 0.0
        %1385 = vmatprep.subr.mxu0 0.0
        %1386 = vmatpush1.msra.mxu0 0.0
        %1387 = vmatprep.subr.mxu0 0.0
        %1388 = vmatpush1.msra.mxu0 0.0
        %1389 = vmatprep.subr.mxu0 0.0
        %1390 = vmatpush1.msra.mxu0 0.0
        %1391 = vmatprep.subr.mxu0 0.0
        %1392 = vmatpush1.msra.mxu0 0.0
        %1393 = vmatprep.subr.mxu0 0.0
        %1394 = vmatpush1.msra.mxu0 0.0
        %1395 = vmatprep.subr.mxu0 0.0
        %1396 = vmatpush1.msra.mxu0 0.0
        %1397 = vmatprep.subr.mxu0 0.0
        %1398 = vmatpush1.msra.mxu0 0.0
        %1399 = vmatprep.subr.mxu0 0.0
        %1400 = vmatpush1.msra.mxu0 0.0
        %1401 = vmatprep.subr.mxu0 0.0
        %1402 = vmatpush1.msra.mxu0 0.0
        %1403 = vmatprep.subr.mxu0 0.0
        %1404 = vmatpush1.msra.mxu0 0.0
        %1405 = vmatprep.subr.mxu0 0.0
        %1406 = vmatpush1.msra.mxu0 %v1270
        %1407 = vmatprep.subr.mxu0 0.0
        %1408 = vmatpush2.msra.mxu0 0.0
        %1409 = vmatprep.subr.mxu0 0.0
        %1410 = vmatpush2.msra.mxu0 0.0
        %1411 = vmatprep.subr.mxu0 0.0
        %1412 = vmatpush2.msra.mxu0 0.0
        %1413 = vmatprep.subr.mxu0 0.0
        %1414 = vmatpush2.msra.mxu0 0.0
        %1415 = vmatprep.subr.mxu0 0.0
        %1416 = vmatpush2.msra.mxu0 0.0
        %1417 = vmatprep.subr.mxu0 0.0
        %1418 = vmatpush2.msra.mxu0 0.0
        %1419 = vmatprep.subr.mxu0 0.0
        %1420 = vmatpush2.msra.mxu0 0.0
        %1421 = vmatprep.subr.mxu0 0.0
        %1422 = vmatpush2.msra.mxu0 0.0
        %1423 = vmatprep.subr.mxu0 0.0
        %1424 = vmatpush2.msra.mxu0 0.0
        %1425 = vmatprep.subr.mxu0 0.0
        %1426 = vmatpush2.msra.mxu0 0.0
        %1427 = vmatprep.subr.mxu0 0.0
        %1428 = vmatpush2.msra.mxu0 0.0
        %1429 = vmatprep.subr.mxu0 0.0
        %1430 = vmatpush2.msra.mxu0 0.0
        %1431 = vmatprep.subr.mxu0 0.0
        %1432 = vmatpush2.msra.mxu0 0.0
        %1433 = vmatprep.subr.mxu0 0.0
        %1434 = vmatpush2.msra.mxu0 0.0
        %1435 = vmatprep.subr.mxu0 0.0
        %1436 = vmatpush2.msra.mxu0 0.0
        %1437 = vmatprep.subr.mxu0 0.0
        %1438 = vmatpush2.msra.mxu0 0.0
        %1439 = vmatprep.mubr.f32.mxu0 0.0
        %1440 = vmatmul.mubr.f32.gmra.mxu0 %v1373
        %v1441 = vpop.f32.mrf.mxu0
        %v1442 = vadd.f32 0.0, %v1441
        %v1443 = vpop.f32.mrf.mxu0
        %1444 = vdwg.mxu0
        %1445 = vrot.lane.b32.xlu0 %v1227, 64
        %v1446 = vpop.permute.xlu0 %1445
        %1447 = vrot.lane.b32.xlu0 %v1229, 64
        %v1448 = vpop.permute.xlu0 %1447
        %v1449 = vsel %vm1281, %v1446, 0
        %v1451 = vsel %vm1281, %v1448, 0
        %1453 = vmatprep.subr.mxu0 0.0
        %1454 = vmatpush1.xpose.msra.mxu0 0.0
        %1455 = vmatprep.subr.mxu0 0.0
        %1456 = vmatpush1.xpose.msra.mxu0 0.0
        %1457 = vmatprep.subr.mxu0 0.0
        %1458 = vmatpush1.xpose.msra.mxu0 0.0
        %1459 = vmatprep.subr.mxu0 0.0
        %1460 = vmatpush1.xpose.msra.mxu0 0.0
        %1461 = vmatprep.subr.mxu0 0.0
        %1462 = vmatpush1.xpose.msra.mxu0 0.0
        %1463 = vmatprep.subr.mxu0 0.0
        %1464 = vmatpush1.xpose.msra.mxu0 0.0
        %1465 = vmatprep.subr.mxu0 0.0
        %1466 = vmatpush1.xpose.msra.mxu0 0.0
        %1467 = vmatprep.subr.mxu0 0.0
        %1468 = vmatpush1.xpose.msra.mxu0 0.0
        %1469 = vmatprep.subr.mxu0 0.0
        %1470 = vmatpush1.xpose.msra.mxu0 0.0
        %1471 = vmatprep.subr.mxu0 0.0
        %1472 = vmatpush1.xpose.msra.mxu0 0.0
        %1473 = vmatprep.subr.mxu0 0.0
        %1474 = vmatpush1.xpose.msra.mxu0 0.0
        %1475 = vmatprep.subr.mxu0 0.0
        %1476 = vmatpush1.xpose.msra.mxu0 0.0
        %1477 = vmatprep.subr.mxu0 0.0
        %1478 = vmatpush1.xpose.msra.mxu0 0.0
        %1479 = vmatprep.subr.mxu0 0.0
        %1480 = vmatpush1.xpose.msra.mxu0 0.0
        %1481 = vmatprep.subr.mxu0 0.0
        %1482 = vmatpush1.xpose.msra.mxu0 0.0
        %1483 = vmatprep.subr.mxu0 0.0
        %1484 = vmatpush1.xpose.msra.mxu0 %v1451
        %1485 = vmatprep.subr.mxu0 0.0
        %1486 = vmatpush2.xpose.msra.mxu0 0.0
        %1487 = vmatprep.subr.mxu0 0.0
        %1488 = vmatpush2.xpose.msra.mxu0 0.0
        %1489 = vmatprep.subr.mxu0 0.0
        %1490 = vmatpush2.xpose.msra.mxu0 0.0
        %1491 = vmatprep.subr.mxu0 0.0
        %1492 = vmatpush2.xpose.msra.mxu0 0.0
        %1493 = vmatprep.subr.mxu0 0.0
        %1494 = vmatpush2.xpose.msra.mxu0 0.0
        %1495 = vmatprep.subr.mxu0 0.0
        %1496 = vmatpush2.xpose.msra.mxu0 0.0
        %1497 = vmatprep.subr.mxu0 0.0
        %1498 = vmatpush2.xpose.msra.mxu0 0.0
        %1499 = vmatprep.subr.mxu0 0.0
        %1500 = vmatpush2.xpose.msra.mxu0 0.0
        %1501 = vmatprep.subr.mxu0 0.0
        %1502 = vmatpush2.xpose.msra.mxu0 0.0
        %1503 = vmatprep.subr.mxu0 0.0
        %1504 = vmatpush2.xpose.msra.mxu0 0.0
        %1505 = vmatprep.subr.mxu0 0.0
        %1506 = vmatpush2.xpose.msra.mxu0 0.0
        %1507 = vmatprep.subr.mxu0 0.0
        %1508 = vmatpush2.xpose.msra.mxu0 0.0
        %1509 = vmatprep.subr.mxu0 0.0
        %1510 = vmatpush2.xpose.msra.mxu0 0.0
        %1511 = vmatprep.subr.mxu0 0.0
        %1512 = vmatpush2.xpose.msra.mxu0 0.0
        %1513 = vmatprep.subr.mxu0 0.0
        %1514 = vmatpush2.xpose.msra.mxu0 0.0
        %1515 = vmatprep.subr.mxu0 0.0
        %1516 = vmatpush2.xpose.msra.mxu0 0.0
        %1517 = vmatprep.mubr.f32.mxu0 0.0
        %1518 = vmatmul.mubr.f32.gmra.mxu0 %v1449
        %v1519 = vpop.f32.mrf.mxu0
        %v1520 = vadd.f32 0.0, %v1519
        %v1521 = vpop.f32.mrf.mxu0
        %1522 = vdwg.mxu0
        %v1523 = vmul.f32 %v1520, 0.125
        %v1524 = vsel %vm1280, %v1523, -1e+30
        %v1525 = vsel %vm1360, %v1524, -inf
        %1526 = vmax.xlane.f32.xlu0 %v1525
        %v1527 = vpop.xlane.xlu0 %1526
        %v1528 = vsub.f32 %v1524, %v1527
        %v1529 = vmul.f32 %v1528, 1.442695
        %v1530 = vpow.pop %v1529
        %v1531 = vsel %vm1360, %v1530, 0.0
        %1532 = vadd.xlane.f32.xlu0 %v1531
        %v1533 = vpop.xlane.xlu0 %1532
        %v1534 = vrcp.pop %v1533
        %v1535 = vmul.f32 %v1530, %v1534
        %1537 = vrot.lane.b32.xlu0 %v1270, 64
        %v1538 = vpop.permute.xlu0 %1537
        %v1541 = vsel %vm1360, %v1535, 0
        %1543 = vmatprep.subr.mxu0 0.0
        %1544 = vmatpush1.msra.mxu0 0.0
        %1545 = vmatprep.subr.mxu0 0.0
        %1546 = vmatpush1.msra.mxu0 0.0
        %1547 = vmatprep.subr.mxu0 0.0
        %1548 = vmatpush1.msra.mxu0 0.0
        %1549 = vmatprep.subr.mxu0 0.0
        %1550 = vmatpush1.msra.mxu0 0.0
        %1551 = vmatprep.subr.mxu0 0.0
        %1552 = vmatpush1.msra.mxu0 0.0
        %1553 = vmatprep.subr.mxu0 0.0
        %1554 = vmatpush1.msra.mxu0 0.0
        %1555 = vmatprep.subr.mxu0 0.0
        %1556 = vmatpush1.msra.mxu0 0.0
        %1557 = vmatprep.subr.mxu0 0.0
        %1558 = vmatpush1.msra.mxu0 0.0
        %1559 = vmatprep.subr.mxu0 0.0
        %1560 = vmatpush1.msra.mxu0 0.0
        %1561 = vmatprep.subr.mxu0 0.0
        %1562 = vmatpush1.msra.mxu0 0.0
        %1563 = vmatprep.subr.mxu0 0.0
        %1564 = vmatpush1.msra.mxu0 0.0
        %1565 = vmatprep.subr.mxu0 0.0
        %1566 = vmatpush1.msra.mxu0 0.0
        %1567 = vmatprep.subr.mxu0 0.0
        %1568 = vmatpush1.msra.mxu0 0.0
        %1569 = vmatprep.subr.mxu0 0.0
        %1570 = vmatpush1.msra.mxu0 0.0
        %1571 = vmatprep.subr.mxu0 0.0
        %1572 = vmatpush1.msra.mxu0 0.0
        %1573 = vmatprep.subr.mxu0 0.0
        %1574 = vmatpush1.msra.mxu0 %v1538
        %1575 = vmatprep.subr.mxu0 0.0
        %1576 = vmatpush2.msra.mxu0 0.0
        %1577 = vmatprep.subr.mxu0 0.0
        %1578 = vmatpush2.msra.mxu0 0.0
        %1579 = vmatprep.subr.mxu0 0.0
        %1580 = vmatpush2.msra.mxu0 0.0
        %1581 = vmatprep.subr.mxu0 0.0
        %1582 = vmatpush2.msra.mxu0 0.0
        %1583 = vmatprep.subr.mxu0 0.0
        %1584 = vmatpush2.msra.mxu0 0.0
        %1585 = vmatprep.subr.mxu0 0.0
        %1586 = vmatpush2.msra.mxu0 0.0
        %1587 = vmatprep.subr.mxu0 0.0
        %1588 = vmatpush2.msra.mxu0 0.0
        %1589 = vmatprep.subr.mxu0 0.0
        %1590 = vmatpush2.msra.mxu0 0.0
        %1591 = vmatprep.subr.mxu0 0.0
        %1592 = vmatpush2.msra.mxu0 0.0
        %1593 = vmatprep.subr.mxu0 0.0
        %1594 = vmatpush2.msra.mxu0 0.0
        %1595 = vmatprep.subr.mxu0 0.0
        %1596 = vmatpush2.msra.mxu0 0.0
        %1597 = vmatprep.subr.mxu0 0.0
        %1598 = vmatpush2.msra.mxu0 0.0
        %1599 = vmatprep.subr.mxu0 0.0
        %1600 = vmatpush2.msra.mxu0 0.0
        %1601 = vmatprep.subr.mxu0 0.0
        %1602 = vmatpush2.msra.mxu0 0.0
        %1603 = vmatprep.subr.mxu0 0.0
        %1604 = vmatpush2.msra.mxu0 0.0
        %1605 = vmatprep.subr.mxu0 0.0
        %1606 = vmatpush2.msra.mxu0 0.0
        %1607 = vmatprep.mubr.f32.mxu0 0.0
        %1608 = vmatmul.mubr.f32.gmra.mxu0 %v1541
        %v1609 = vpop.f32.mrf.mxu0
        %v1610 = vadd.f32 0.0, %v1609
        %v1611 = vpop.f32.mrf.mxu0
        %1612 = vdwg.mxu0
        %1614 = vrot.lane.b32.xlu0 %v1610, 64
        %v1615 = vpop.permute.xlu0 %1614
        %v1617 = vsel %vm1281, %v1442, %v1615
        %v1619 = vsel %vm1281, %v1231, 0
        %v1622 = vsel %vm1281, %v1233, 0
        %1624 = vmatprep.subr.mxu0 0.0
        %1625 = vmatpush1.xpose.msra.mxu0 0.0
        %1626 = vmatprep.subr.mxu0 0.0
        %1627 = vmatpush1.xpose.msra.mxu0 0.0
        %1628 = vmatprep.subr.mxu0 0.0
        %1629 = vmatpush1.xpose.msra.mxu0 0.0
        %1630 = vmatprep.subr.mxu0 0.0
        %1631 = vmatpush1.xpose.msra.mxu0 0.0
        %1632 = vmatprep.subr.mxu0 0.0
        %1633 = vmatpush1.xpose.msra.mxu0 0.0
        %1634 = vmatprep.subr.mxu0 0.0
        %1635 = vmatpush1.xpose.msra.mxu0 0.0
        %1636 = vmatprep.subr.mxu0 0.0
        %1637 = vmatpush1.xpose.msra.mxu0 0.0
        %1638 = vmatprep.subr.mxu0 0.0
        %1639 = vmatpush1.xpose.msra.mxu0 0.0
        %1640 = vmatprep.subr.mxu0 0.0
        %1641 = vmatpush1.xpose.msra.mxu0 0.0
        %1642 = vmatprep.subr.mxu0 0.0
        %1643 = vmatpush1.xpose.msra.mxu0 0.0
        %1644 = vmatprep.subr.mxu0 0.0
        %1645 = vmatpush1.xpose.msra.mxu0 0.0
        %1646 = vmatprep.subr.mxu0 0.0
        %1647 = vmatpush1.xpose.msra.mxu0 0.0
        %1648 = vmatprep.subr.mxu0 0.0
        %1649 = vmatpush1.xpose.msra.mxu0 0.0
        %1650 = vmatprep.subr.mxu0 0.0
        %1651 = vmatpush1.xpose.msra.mxu0 0.0
        %1652 = vmatprep.subr.mxu0 0.0
        %1653 = vmatpush1.xpose.msra.mxu0 0.0
        %1654 = vmatprep.subr.mxu0 0.0
        %1655 = vmatpush1.xpose.msra.mxu0 %v1622
        %1656 = vmatprep.subr.mxu0 0.0
        %1657 = vmatpush2.xpose.msra.mxu0 0.0
        %1658 = vmatprep.subr.mxu0 0.0
        %1659 = vmatpush2.xpose.msra.mxu0 0.0
        %1660 = vmatprep.subr.mxu0 0.0
        %1661 = vmatpush2.xpose.msra.mxu0 0.0
        %1662 = vmatprep.subr.mxu0 0.0
        %1663 = vmatpush2.xpose.msra.mxu0 0.0
        %1664 = vmatprep.subr.mxu0 0.0
        %1665 = vmatpush2.xpose.msra.mxu0 0.0
        %1666 = vmatprep.subr.mxu0 0.0
        %1667 = vmatpush2.xpose.msra.mxu0 0.0
        %1668 = vmatprep.subr.mxu0 0.0
        %1669 = vmatpush2.xpose.msra.mxu0 0.0
        %1670 = vmatprep.subr.mxu0 0.0
        %1671 = vmatpush2.xpose.msra.mxu0 0.0
        %1672 = vmatprep.subr.mxu0 0.0
        %1673 = vmatpush2.xpose.msra.mxu0 0.0
        %1674 = vmatprep.subr.mxu0 0.0
        %1675 = vmatpush2.xpose.msra.mxu0 0.0
        %1676 = vmatprep.subr.mxu0 0.0
        %1677 = vmatpush2.xpose.msra.mxu0 0.0
        %1678 = vmatprep.subr.mxu0 0.0
        %1679 = vmatpush2.xpose.msra.mxu0 0.0
        %1680 = vmatprep.subr.mxu0 0.0
        %1681 = vmatpush2.xpose.msra.mxu0 0.0
        %1682 = vmatprep.subr.mxu0 0.0
        %1683 = vmatpush2.xpose.msra.mxu0 0.0
        %1684 = vmatprep.subr.mxu0 0.0
        %1685 = vmatpush2.xpose.msra.mxu0 0.0
        %1686 = vmatprep.subr.mxu0 0.0
        %1687 = vmatpush2.xpose.msra.mxu0 0.0
        %1688 = vmatprep.mubr.f32.mxu0 0.0
        %1689 = vmatmul.mubr.f32.gmra.mxu0 %v1619
        %v1690 = vpop.f32.mrf.mxu0
        %v1691 = vadd.f32 0.0, %v1690
        %v1692 = vpop.f32.mrf.mxu0
        %1693 = vdwg.mxu0
        %v1694 = vmul.f32 %v1691, 0.125
        %v1695 = vsel %vm1280, %v1694, -1e+30
        %v1696 = vsel %vm1360, %v1695, -inf
        %1697 = vmax.xlane.f32.xlu0 %v1696
        %v1698 = vpop.xlane.xlu0 %1697
        %v1699 = vsub.f32 %v1695, %v1698
        %v1700 = vmul.f32 %v1699, 1.442695
        %v1701 = vpow.pop %v1700
        %v1702 = vsel %vm1360, %v1701, 0.0
        %1703 = vadd.xlane.f32.xlu0 %v1702
        %v1704 = vpop.xlane.xlu0 %1703
        %v1705 = vrcp.pop %v1704
        %v1706 = vmul.f32 %v1701, %v1705
        %v1708 = vsel %vm1360, %v1706, 0
        %1710 = vmatprep.subr.mxu0 0.0
        %1711 = vmatpush1.msra.mxu0 0.0
        %1712 = vmatprep.subr.mxu0 0.0
        %1713 = vmatpush1.msra.mxu0 0.0
        %1714 = vmatprep.subr.mxu0 0.0
        %1715 = vmatpush1.msra.mxu0 0.0
        %1716 = vmatprep.subr.mxu0 0.0
        %1717 = vmatpush1.msra.mxu0 0.0
        %1718 = vmatprep.subr.mxu0 0.0
        %1719 = vmatpush1.msra.mxu0 0.0
        %1720 = vmatprep.subr.mxu0 0.0
        %1721 = vmatpush1.msra.mxu0 0.0
        %1722 = vmatprep.subr.mxu0 0.0
        %1723 = vmatpush1.msra.mxu0 0.0
        %1724 = vmatprep.subr.mxu0 0.0
        %1725 = vmatpush1.msra.mxu0 0.0
        %1726 = vmatprep.subr.mxu0 0.0
        %1727 = vmatpush1.msra.mxu0 0.0
        %1728 = vmatprep.subr.mxu0 0.0
        %1729 = vmatpush1.msra.mxu0 0.0
        %1730 = vmatprep.subr.mxu0 0.0
        %1731 = vmatpush1.msra.mxu0 0.0
        %1732 = vmatprep.subr.mxu0 0.0
        %1733 = vmatpush1.msra.mxu0 0.0
        %1734 = vmatprep.subr.mxu0 0.0
        %1735 = vmatpush1.msra.mxu0 0.0
        %1736 = vmatprep.subr.mxu0 0.0
        %1737 = vmatpush1.msra.mxu0 0.0
        %1738 = vmatprep.subr.mxu0 0.0
        %1739 = vmatpush1.msra.mxu0 0.0
        %1740 = vmatprep.subr.mxu0 0.0
        %1741 = vmatpush1.msra.mxu0 %v1273
        %1742 = vmatprep.subr.mxu0 0.0
        %1743 = vmatpush2.msra.mxu0 0.0
        %1744 = vmatprep.subr.mxu0 0.0
        %1745 = vmatpush2.msra.mxu0 0.0
        %1746 = vmatprep.subr.mxu0 0.0
        %1747 = vmatpush2.msra.mxu0 0.0
        %1748 = vmatprep.subr.mxu0 0.0
        %1749 = vmatpush2.msra.mxu0 0.0
        %1750 = vmatprep.subr.mxu0 0.0
        %1751 = vmatpush2.msra.mxu0 0.0
        %1752 = vmatprep.subr.mxu0 0.0
        %1753 = vmatpush2.msra.mxu0 0.0
        %1754 = vmatprep.subr.mxu0 0.0
        %1755 = vmatpush2.msra.mxu0 0.0
        %1756 = vmatprep.subr.mxu0 0.0
        %1757 = vmatpush2.msra.mxu0 0.0
        %1758 = vmatprep.subr.mxu0 0.0
        %1759 = vmatpush2.msra.mxu0 0.0
        %1760 = vmatprep.subr.mxu0 0.0
        %1761 = vmatpush2.msra.mxu0 0.0
        %1762 = vmatprep.subr.mxu0 0.0
        %1763 = vmatpush2.msra.mxu0 0.0
        %1764 = vmatprep.subr.mxu0 0.0
        %1765 = vmatpush2.msra.mxu0 0.0
        %1766 = vmatprep.subr.mxu0 0.0
        %1767 = vmatpush2.msra.mxu0 0.0
        %1768 = vmatprep.subr.mxu0 0.0
        %1769 = vmatpush2.msra.mxu0 0.0
        %1770 = vmatprep.subr.mxu0 0.0
        %1771 = vmatpush2.msra.mxu0 0.0
        %1772 = vmatprep.subr.mxu0 0.0
        %1773 = vmatpush2.msra.mxu0 0.0
        %1774 = vmatprep.mubr.f32.mxu0 0.0
        %1775 = vmatmul.mubr.f32.gmra.mxu0 %v1708
        %v1776 = vpop.f32.mrf.mxu0
        %v1777 = vadd.f32 0.0, %v1776
        %v1778 = vpop.f32.mrf.mxu0
        %1779 = vdwg.mxu0
        %1780 = vrot.lane.b32.xlu0 %v1231, 64
        %v1781 = vpop.permute.xlu0 %1780
        %1782 = vrot.lane.b32.xlu0 %v1233, 64
        %v1783 = vpop.permute.xlu0 %1782
        %v1784 = vsel %vm1281, %v1781, 0
        %v1786 = vsel %vm1281, %v1783, 0
        %1788 = vmatprep.subr.mxu0 0.0
        %1789 = vmatpush1.xpose.msra.mxu0 0.0
        %1790 = vmatprep.subr.mxu0 0.0
        %1791 = vmatpush1.xpose.msra.mxu0 0.0
        %1792 = vmatprep.subr.mxu0 0.0
        %1793 = vmatpush1.xpose.msra.mxu0 0.0
        %1794 = vmatprep.subr.mxu0 0.0
        %1795 = vmatpush1.xpose.msra.mxu0 0.0
        %1796 = vmatprep.subr.mxu0 0.0
        %1797 = vmatpush1.xpose.msra.mxu0 0.0
        %1798 = vmatprep.subr.mxu0 0.0
        %1799 = vmatpush1.xpose.msra.mxu0 0.0
        %1800 = vmatprep.subr.mxu0 0.0
        %1801 = vmatpush1.xpose.msra.mxu0 0.0
        %1802 = vmatprep.subr.mxu0 0.0
        %1803 = vmatpush1.xpose.msra.mxu0 0.0
        %1804 = vmatprep.subr.mxu0 0.0
        %1805 = vmatpush1.xpose.msra.mxu0 0.0
        %1806 = vmatprep.subr.mxu0 0.0
        %1807 = vmatpush1.xpose.msra.mxu0 0.0
        %1808 = vmatprep.subr.mxu0 0.0
        %1809 = vmatpush1.xpose.msra.mxu0 0.0
        %1810 = vmatprep.subr.mxu0 0.0
        %1811 = vmatpush1.xpose.msra.mxu0 0.0
        %1812 = vmatprep.subr.mxu0 0.0
        %1813 = vmatpush1.xpose.msra.mxu0 0.0
        %1814 = vmatprep.subr.mxu0 0.0
        %1815 = vmatpush1.xpose.msra.mxu0 0.0
        %1816 = vmatprep.subr.mxu0 0.0
        %1817 = vmatpush1.xpose.msra.mxu0 0.0
        %1818 = vmatprep.subr.mxu0 0.0
        %1819 = vmatpush1.xpose.msra.mxu0 %v1786
        %1820 = vmatprep.subr.mxu0 0.0
        %1821 = vmatpush2.xpose.msra.mxu0 0.0
        %1822 = vmatprep.subr.mxu0 0.0
        %1823 = vmatpush2.xpose.msra.mxu0 0.0
        %1824 = vmatprep.subr.mxu0 0.0
        %1825 = vmatpush2.xpose.msra.mxu0 0.0
        %1826 = vmatprep.subr.mxu0 0.0
        %1827 = vmatpush2.xpose.msra.mxu0 0.0
        %1828 = vmatprep.subr.mxu0 0.0
        %1829 = vmatpush2.xpose.msra.mxu0 0.0
        %1830 = vmatprep.subr.mxu0 0.0
        %1831 = vmatpush2.xpose.msra.mxu0 0.0
        %1832 = vmatprep.subr.mxu0 0.0
        %1833 = vmatpush2.xpose.msra.mxu0 0.0
        %1834 = vmatprep.subr.mxu0 0.0
        %1835 = vmatpush2.xpose.msra.mxu0 0.0
        %1836 = vmatprep.subr.mxu0 0.0
        %1837 = vmatpush2.xpose.msra.mxu0 0.0
        %1838 = vmatprep.subr.mxu0 0.0
        %1839 = vmatpush2.xpose.msra.mxu0 0.0
        %1840 = vmatprep.subr.mxu0 0.0
        %1841 = vmatpush2.xpose.msra.mxu0 0.0
        %1842 = vmatprep.subr.mxu0 0.0
        %1843 = vmatpush2.xpose.msra.mxu0 0.0
        %1844 = vmatprep.subr.mxu0 0.0
        %1845 = vmatpush2.xpose.msra.mxu0 0.0
        %1846 = vmatprep.subr.mxu0 0.0
        %1847 = vmatpush2.xpose.msra.mxu0 0.0
        %1848 = vmatprep.subr.mxu0 0.0
        %1849 = vmatpush2.xpose.msra.mxu0 0.0
        %1850 = vmatprep.subr.mxu0 0.0
        %1851 = vmatpush2.xpose.msra.mxu0 0.0
        %1852 = vmatprep.mubr.f32.mxu0 0.0
        %1853 = vmatmul.mubr.f32.gmra.mxu0 %v1784
        %v1854 = vpop.f32.mrf.mxu0
        %v1855 = vadd.f32 0.0, %v1854
        %v1856 = vpop.f32.mrf.mxu0
        %1857 = vdwg.mxu0
        %v1858 = vmul.f32 %v1855, 0.125
        %v1859 = vsel %vm1280, %v1858, -1e+30
        %v1860 = vsel %vm1360, %v1859, -inf
        %1861 = vmax.xlane.f32.xlu0 %v1860
        %v1862 = vpop.xlane.xlu0 %1861
        %v1863 = vsub.f32 %v1859, %v1862
        %v1864 = vmul.f32 %v1863, 1.442695
        %v1865 = vpow.pop %v1864
        %v1866 = vsel %vm1360, %v1865, 0.0
        %1867 = vadd.xlane.f32.xlu0 %v1866
        %v1868 = vpop.xlane.xlu0 %1867
        %v1869 = vrcp.pop %v1868
        %v1870 = vmul.f32 %v1865, %v1869
        %1872 = vrot.lane.b32.xlu0 %v1273, 64
        %v1873 = vpop.permute.xlu0 %1872
        %v1876 = vsel %vm1360, %v1870, 0
        %1878 = vmatprep.subr.mxu0 0.0
        %1879 = vmatpush1.msra.mxu0 0.0
        %1880 = vmatprep.subr.mxu0 0.0
        %1881 = vmatpush1.msra.mxu0 0.0
        %1882 = vmatprep.subr.mxu0 0.0
        %1883 = vmatpush1.msra.mxu0 0.0
        %1884 = vmatprep.subr.mxu0 0.0
        %1885 = vmatpush1.msra.mxu0 0.0
        %1886 = vmatprep.subr.mxu0 0.0
        %1887 = vmatpush1.msra.mxu0 0.0
        %1888 = vmatprep.subr.mxu0 0.0
        %1889 = vmatpush1.msra.mxu0 0.0
        %1890 = vmatprep.subr.mxu0 0.0
        %1891 = vmatpush1.msra.mxu0 0.0
        %1892 = vmatprep.subr.mxu0 0.0
        %1893 = vmatpush1.msra.mxu0 0.0
        %1894 = vmatprep.subr.mxu0 0.0
        %1895 = vmatpush1.msra.mxu0 0.0
        %1896 = vmatprep.subr.mxu0 0.0
        %1897 = vmatpush1.msra.mxu0 0.0
        %1898 = vmatprep.subr.mxu0 0.0
        %1899 = vmatpush1.msra.mxu0 0.0
        %1900 = vmatprep.subr.mxu0 0.0
        %1901 = vmatpush1.msra.mxu0 0.0
        %1902 = vmatprep.subr.mxu0 0.0
        %1903 = vmatpush1.msra.mxu0 0.0
        %1904 = vmatprep.subr.mxu0 0.0
        %1905 = vmatpush1.msra.mxu0 0.0
        %1906 = vmatprep.subr.mxu0 0.0
        %1907 = vmatpush1.msra.mxu0 0.0
        %1908 = vmatprep.subr.mxu0 0.0
        %1909 = vmatpush1.msra.mxu0 %v1873
        %1910 = vmatprep.subr.mxu0 0.0
        %1911 = vmatpush2.msra.mxu0 0.0
        %1912 = vmatprep.subr.mxu0 0.0
        %1913 = vmatpush2.msra.mxu0 0.0
        %1914 = vmatprep.subr.mxu0 0.0
        %1915 = vmatpush2.msra.mxu0 0.0
        %1916 = vmatprep.subr.mxu0 0.0
        %1917 = vmatpush2.msra.mxu0 0.0
        %1918 = vmatprep.subr.mxu0 0.0
        %1919 = vmatpush2.msra.mxu0 0.0
        %1920 = vmatprep.subr.mxu0 0.0
        %1921 = vmatpush2.msra.mxu0 0.0
        %1922 = vmatprep.subr.mxu0 0.0
        %1923 = vmatpush2.msra.mxu0 0.0
        %1924 = vmatprep.subr.mxu0 0.0
        %1925 = vmatpush2.msra.mxu0 0.0
        %1926 = vmatprep.subr.mxu0 0.0
        %1927 = vmatpush2.msra.mxu0 0.0
        %1928 = vmatprep.subr.mxu0 0.0
        %1929 = vmatpush2.msra.mxu0 0.0
        %1930 = vmatprep.subr.mxu0 0.0
        %1931 = vmatpush2.msra.mxu0 0.0
        %1932 = vmatprep.subr.mxu0 0.0
        %1933 = vmatpush2.msra.mxu0 0.0
        %1934 = vmatprep.subr.mxu0 0.0
        %1935 = vmatpush2.msra.mxu0 0.0
        %1936 = vmatprep.subr.mxu0 0.0
        %1937 = vmatpush2.msra.mxu0 0.0
        %1938 = vmatprep.subr.mxu0 0.0
        %1939 = vmatpush2.msra.mxu0 0.0
        %1940 = vmatprep.subr.mxu0 0.0
        %1941 = vmatpush2.msra.mxu0 0.0
        %1942 = vmatprep.mubr.f32.mxu0 0.0
        %1943 = vmatmul.mubr.f32.gmra.mxu0 %v1876
        %v1944 = vpop.f32.mrf.mxu0
        %v1945 = vadd.f32 0.0, %v1944
        %v1946 = vpop.f32.mrf.mxu0
        %1947 = vdwg.mxu0
        %1949 = vrot.lane.b32.xlu0 %v1945, 64
        %v1950 = vpop.permute.xlu0 %1949
        %v1952 = vsel %vm1281, %v1777, %v1950
        %v1953 = vpack.c.bf16 %v1952, %v1617
        %v1954 = vld [vmem:[%s810] sm:$0xf]
        %v1955 = vld [vmem:[%s810 + $0x4] sm:$0xf]
        %v1956 = vld [vmem:[%s810 + $0x8] sm:$0xf]
        %v1957 = vld [vmem:[%s810 + $0xc] sm:$0xf]
        %v1958 = vld [vmem:[%s810 + $0x10] sm:$0xf]
        %v1959 = vld [vmem:[%s810 + $0x14] sm:$0xf]
        %v1960 = vld [vmem:[%s810 + $0x18] sm:$0xf]
        %v1961 = vld [vmem:[%s810 + $0x1c] sm:$0xf]
        %v1962 = vld [vmem:[%s810 + $0x20] sm:$0xf]
        %v1963 = vld [vmem:[%s810 + $0x24] sm:$0xf]
        %v1964 = vld [vmem:[%s810 + $0x28] sm:$0xf]
        %v1965 = vld [vmem:[%s810 + $0x2c] sm:$0xf]
        %v1966 = vld [vmem:[%s810 + $0x30] sm:$0xf]
        %v1967 = vld [vmem:[%s810 + $0x34] sm:$0xf]
        %v1968 = vld [vmem:[%s810 + $0x38] sm:$0xf]
        %v1969 = vld [vmem:[%s810 + $0x3c] sm:$0xf]
        %v1970 = vld [vmem:[%s818] sm:$0x1]
        %v1972 = vlaneseq
        %v1973 = vshrl.u32 %v1972, 7
        %v1974 = vsub.s32 0, %v1973
        %v1975 = vrot.slane %v1970, %v1974
        %v1993 = vunpack.c.l.b16 %v1954
        %v1994 = vunpack.c.l.b16 %v1955
        %v1995 = vunpack.c.l.b16 %v1956
        %v1996 = vunpack.c.l.b16 %v1957
        %v1997 = vunpack.c.l.b16 %v1958
        %v1998 = vunpack.c.l.b16 %v1959
        %v1999 = vunpack.c.l.b16 %v1960
        %v2000 = vunpack.c.l.b16 %v1961
        %v2001 = vunpack.c.l.b16 %v1962
        %v2002 = vunpack.c.l.b16 %v1963
        %v2003 = vunpack.c.l.b16 %v1964
        %v2004 = vunpack.c.l.b16 %v1965
        %v2005 = vunpack.c.l.b16 %v1966
        %v2006 = vunpack.c.l.b16 %v1967
        %v2007 = vunpack.c.l.b16 %v1968
        %v2008 = vunpack.c.l.b16 %v1969
        %v2009 = vpack.c.b16 %v1994, %v1993
        %v2010 = vpack.c.b16 %v1996, %v1995
        %v2011 = vpack.c.b16 %v1998, %v1997
        %v2012 = vpack.c.b16 %v2000, %v1999
        %v2013 = vpack.c.b16 %v2002, %v2001
        %v2014 = vpack.c.b16 %v2004, %v2003
        %v2015 = vpack.c.b16 %v2006, %v2005
        %v2016 = vpack.c.b16 %v2008, %v2007
        %2025 = vmatprep.subr.bf16.mxu0 0
        %2026 = vmatpush1.bf16.msra.mxu0 %v2016
        %2027 = vmatprep.subr.bf16.mxu0 0
        %2028 = vmatpush1.bf16.msra.mxu0 %v2015
        %2029 = vmatprep.subr.bf16.mxu0 0
        %2030 = vmatpush1.bf16.msra.mxu0 %v2014
        %2031 = vmatprep.subr.bf16.mxu0 0
        %2032 = vmatpush1.bf16.msra.mxu0 %v2013
        %2033 = vmatprep.subr.bf16.mxu0 0
        %2034 = vmatpush1.bf16.msra.mxu0 %v2012
        %2035 = vmatprep.subr.bf16.mxu0 0
        %2036 = vmatpush1.bf16.msra.mxu0 %v2011
        %2037 = vmatprep.subr.bf16.mxu0 0
        %2038 = vmatpush1.bf16.msra.mxu0 %v2010
        %2039 = vmatprep.subr.bf16.mxu0 0
        %2040 = vmatpush1.bf16.msra.mxu0 %v2009
        %2041 = vmatprep.subr.bf16.mxu0 0
        %2042 = vmatpush2.bf16.msra.mxu0 0
        %2043 = vmatprep.subr.bf16.mxu0 0
        %2044 = vmatpush2.bf16.msra.mxu0 0
        %2045 = vmatprep.subr.bf16.mxu0 0
        %2046 = vmatpush2.bf16.msra.mxu0 0
        %2047 = vmatprep.subr.bf16.mxu0 0
        %2048 = vmatpush2.bf16.msra.mxu0 0
        %2049 = vmatprep.subr.bf16.mxu0 0
        %2050 = vmatpush2.bf16.msra.mxu0 0
        %2051 = vmatprep.subr.bf16.mxu0 0
        %2052 = vmatpush2.bf16.msra.mxu0 0
        %2053 = vmatprep.subr.bf16.mxu0 0
        %2054 = vmatpush2.bf16.msra.mxu0 0
        %2055 = vmatprep.subr.bf16.mxu0 0
        %2056 = vmatpush2.bf16.msra.mxu0 0
        %2057 = vmatprep.mubr.bf16.mxu0 0
        %2058 = vmatmul.mubr.bf16.gmra.mxu0 %v1953
        %v2059 = vpop.f32.mrf.mxu0
        %v2060 = vadd.f32 %v1975, %v2059
        %v2061 = vpop.f32.mrf.mxu0
        %v2062 = vpop.f32.mrf.mxu0
        %v2063 = vadd.f32 %v1975, %v2062
        %v2064 = vpop.f32.mrf.mxu0
        %2065 = vdwg.mxu0
        %v2066 = vadd.f32 %v971, %v2060
        %v2067 = vadd.f32 %v972, %v2063
        %v2068 = vld [vmem:[%s826] sm:$0x1]
        %v2069 = vld [vmem:[%s950] sm:$0x1]
        %2070 = vadd.xlane.f32.xlu0 %v2066
        %v2071 = vpop.xlane.xlu0 %2070
        %2072 = vadd.xlane.f32.xlu0 %v2067
        %v2073 = vpop.xlane.xlu0 %2072
        %v2074 = vmul.f32 %v2071, %v979
        %v2075 = vmul.f32 %v2073, %v979
        %v2076 = vsub.f32 %v2066, %v2074
        %v2077 = vsub.f32 %v2067, %v2075
        %v2078 = vmul.f32 %v2076, %v2076
        %v2079 = vmul.f32 %v2077, %v2077
        %2080 = vadd.xlane.f32.xlu0 %v2078
        %v2081 = vpop.xlane.xlu0 %2080
        %2082 = vadd.xlane.f32.xlu0 %v2079
        %v2083 = vpop.xlane.xlu0 %2082
        %v2084 = vmul.f32 %v2081, %v979
        %v2085 = vmul.f32 %v2083, %v979
        %v2086 = vadd.f32 %v2084, 1e-05
        %v2087 = vadd.f32 %v2085, 1e-05
        %v2088 = vrsqrt.pop %v2086
        %v2089 = vrsqrt.pop %v2087
        %v2090 = vmul.f32 %v2076, %v2088
        %v2091 = vmul.f32 %v2077, %v2089
        %v2093 = vlaneseq
        %v2094 = vshrl.u32 %v2093, 7
        %v2095 = vsub.s32 0, %v2094
        %v2096 = vrot.slane %v2068, %v2095
        %v2098 = vmul.f32 %v2090, %v2096
        %v2099 = vmul.f32 %v2091, %v2096
        %v2101 = vlaneseq
        %v2102 = vshrl.u32 %v2101, 7
        %v2103 = vsub.s32 0, %v2102
        %v2104 = vrot.slane %v2069, %v2103
        %v2106 = vadd.f32 %v2098, %v2104
        %v2107 = vadd.f32 %v2099, %v2104
        %v2108 = vpack.c.bf16 %v2107, %v2106
        %v2109 = vld [vmem:[%s835] sm:$0xff]
        %v2110 = vld [vmem:[%s835 + $0x8] sm:$0xff]
        %v2111 = vld [vmem:[%s835 + $0x10] sm:$0xff]
        %v2112 = vld [vmem:[%s835 + $0x18] sm:$0xff]
        %v2113 = vld [vmem:[%s835 + $0x20] sm:$0xff]
        %v2114 = vld [vmem:[%s835 + $0x28] sm:$0xff]
        %v2115 = vld [vmem:[%s835 + $0x30] sm:$0xff]
        %v2116 = vld [vmem:[%s835 + $0x38] sm:$0xff]
        %v2117 = vld [vmem:[%s835 + $0x40] sm:$0xff]
        %v2118 = vld [vmem:[%s835 + $0x48] sm:$0xff]
        %v2119 = vld [vmem:[%s835 + $0x50] sm:$0xff]
        %v2120 = vld [vmem:[%s835 + $0x58] sm:$0xff]
        %v2121 = vld [vmem:[%s835 + $0x60] sm:$0xff]
        %v2122 = vld [vmem:[%s835 + $0x68] sm:$0xff]
        %v2123 = vld [vmem:[%s835 + $0x70] sm:$0xff]
        %v2124 = vld [vmem:[%s835 + $0x78] sm:$0xff]
        %v2125 = vld [vmem:[%s835 + $0x80] sm:$0xff]
        %v2126 = vld [vmem:[%s835 + $0x88] sm:$0xff]
        %v2127 = vld [vmem:[%s835 + $0x90] sm:$0xff]
        %v2128 = vld [vmem:[%s835 + $0x98] sm:$0xff]
        %v2129 = vld [vmem:[%s835 + $0xa0] sm:$0xff]
        %v2130 = vld [vmem:[%s835 + $0xa8] sm:$0xff]
        %v2131 = vld [vmem:[%s835 + $0xb0] sm:$0xff]
        %v2132 = vld [vmem:[%s835 + $0xb8] sm:$0xff]
        %v2133 = vld [vmem:[%s835 + $0xc0] sm:$0xff]
        %v2134 = vld [vmem:[%s835 + $0xc8] sm:$0xff]
        %v2135 = vld [vmem:[%s835 + $0xd0] sm:$0xff]
        %v2136 = vld [vmem:[%s835 + $0xd8] sm:$0xff]
        %v2137 = vld [vmem:[%s835 + $0xe0] sm:$0xff]
        %v2138 = vld [vmem:[%s835 + $0xe8] sm:$0xff]
        %v2139 = vld [vmem:[%s835 + $0xf0] sm:$0xff]
        %v2140 = vld [vmem:[%s835 + $0xf8] sm:$0xff]
        %v2141 = vld [vmem:[%s954] sm:$0xf]
        %v2143 = vlaneseq
        %v2144 = vshrl.u32 %v2143, 7
        %v2145 = vsub.s32 0, %v2144
        %v2146 = vrot.slane %v2141, %v2145
        %v2147 = vlaneseq
        %v2148 = vshrl.u32 %v2147, 7
        %v2149 = vsub.s32 1, %v2148
        %v2150 = vrot.slane %v2141, %v2149
        %v2151 = vlaneseq
        %v2152 = vshrl.u32 %v2151, 7
        %v2153 = vsub.s32 2, %v2152
        %v2154 = vrot.slane %v2141, %v2153
        %v2155 = vlaneseq
        %v2156 = vshrl.u32 %v2155, 7
        %v2157 = vsub.s32 3, %v2156
        %v2158 = vrot.slane %v2141, %v2157
        %v2195 = vunpack.c.l.b16 %v2109
        %v2196 = vunpack.c.h.b16 %v2109
        %v2197 = vunpack.c.l.b16 %v2110
        %v2198 = vunpack.c.h.b16 %v2110
        %v2199 = vunpack.c.l.b16 %v2111
        %v2200 = vunpack.c.h.b16 %v2111
        %v2201 = vunpack.c.l.b16 %v2112
        %v2202 = vunpack.c.h.b16 %v2112
        %v2203 = vunpack.c.l.b16 %v2113
        %v2204 = vunpack.c.h.b16 %v2113
        %v2205 = vunpack.c.l.b16 %v2114
        %v2206 = vunpack.c.h.b16 %v2114
        %v2207 = vunpack.c.l.b16 %v2115
        %v2208 = vunpack.c.h.b16 %v2115
        %v2209 = vunpack.c.l.b16 %v2116
        %v2210 = vunpack.c.h.b16 %v2116
        %v2211 = vunpack.c.l.b16 %v2117
        %v2212 = vunpack.c.h.b16 %v2117
        %v2213 = vunpack.c.l.b16 %v2118
        %v2214 = vunpack.c.h.b16 %v2118
        %v2215 = vunpack.c.l.b16 %v2119
        %v2216 = vunpack.c.h.b16 %v2119
        %v2217 = vunpack.c.l.b16 %v2120
        %v2218 = vunpack.c.h.b16 %v2120
        %v2219 = vunpack.c.l.b16 %v2121
        %v2220 = vunpack.c.h.b16 %v2121
        %v2221 = vunpack.c.l.b16 %v2122
        %v2222 = vunpack.c.h.b16 %v2122
        %v2223 = vunpack.c.l.b16 %v2123
        %v2224 = vunpack.c.h.b16 %v2123
        %v2225 = vunpack.c.l.b16 %v2124
        %v2226 = vunpack.c.h.b16 %v2124
        %v2227 = vunpack.c.l.b16 %v2125
        %v2228 = vunpack.c.h.b16 %v2125
        %v2229 = vunpack.c.l.b16 %v2126
        %v2230 = vunpack.c.h.b16 %v2126
        %v2231 = vunpack.c.l.b16 %v2127
        %v2232 = vunpack.c.h.b16 %v2127
        %v2233 = vunpack.c.l.b16 %v2128
        %v2234 = vunpack.c.h.b16 %v2128
        %v2235 = vunpack.c.l.b16 %v2129
        %v2236 = vunpack.c.h.b16 %v2129
        %v2237 = vunpack.c.l.b16 %v2130
        %v2238 = vunpack.c.h.b16 %v2130
        %v2239 = vunpack.c.l.b16 %v2131
        %v2240 = vunpack.c.h.b16 %v2131
        %v2241 = vunpack.c.l.b16 %v2132
        %v2242 = vunpack.c.h.b16 %v2132
        %v2243 = vunpack.c.l.b16 %v2133
        %v2244 = vunpack.c.h.b16 %v2133
        %v2245 = vunpack.c.l.b16 %v2134
        %v2246 = vunpack.c.h.b16 %v2134
        %v2247 = vunpack.c.l.b16 %v2135
        %v2248 = vunpack.c.h.b16 %v2135
        %v2249 = vunpack.c.l.b16 %v2136
        %v2250 = vunpack.c.h.b16 %v2136
        %v2251 = vunpack.c.l.b16 %v2137
        %v2252 = vunpack.c.h.b16 %v2137
        %v2253 = vunpack.c.l.b16 %v2138
        %v2254 = vunpack.c.h.b16 %v2138
        %v2255 = vunpack.c.l.b16 %v2139
        %v2256 = vunpack.c.h.b16 %v2139
        %v2257 = vunpack.c.l.b16 %v2140
        %v2258 = vunpack.c.h.b16 %v2140
        %v2259 = vpack.c.b16 %v2199, %v2195
        %v2260 = vpack.c.b16 %v2200, %v2196
        %v2261 = vpack.c.b16 %v2201, %v2197
        %v2262 = vpack.c.b16 %v2202, %v2198
        %v2263 = vpack.c.b16 %v2207, %v2203
        %v2264 = vpack.c.b16 %v2208, %v2204
        %v2265 = vpack.c.b16 %v2209, %v2205
        %v2266 = vpack.c.b16 %v2210, %v2206
        %v2267 = vpack.c.b16 %v2215, %v2211
        %v2268 = vpack.c.b16 %v2216, %v2212
        %v2269 = vpack.c.b16 %v2217, %v2213
        %v2270 = vpack.c.b16 %v2218, %v2214
        %v2271 = vpack.c.b16 %v2223, %v2219
        %v2272 = vpack.c.b16 %v2224, %v2220
        %v2273 = vpack.c.b16 %v2225, %v2221
        %v2274 = vpack.c.b16 %v2226, %v2222
        %v2275 = vpack.c.b16 %v2231, %v2227
        %v2276 = vpack.c.b16 %v2232, %v2228
        %v2277 = vpack.c.b16 %v2233, %v2229
        %v2278 = vpack.c.b16 %v2234, %v2230
        %v2279 = vpack.c.b16 %v2239, %v2235
        %v2280 = vpack.c.b16 %v2240, %v2236
        %v2281 = vpack.c.b16 %v2241, %v2237
        %v2282 = vpack.c.b16 %v2242, %v2238
        %v2283 = vpack.c.b16 %v2247, %v2243
        %v2284 = vpack.c.b16 %v2248, %v2244
        %v2285 = vpack.c.b16 %v2249, %v2245
        %v2286 = vpack.c.b16 %v2250, %v2246
        %v2287 = vpack.c.b16 %v2255, %v2251
        %v2288 = vpack.c.b16 %v2256, %v2252
        %v2289 = vpack.c.b16 %v2257, %v2253
        %v2290 = vpack.c.b16 %v2258, %v2254
        %2323 = vmatprep.subr.bf16.mxu0 %v2288
        %2324 = vmatpush1.bf16.msra.mxu0 %v2287
        %2325 = vmatprep.subr.bf16.mxu0 %v2284
        %2326 = vmatpush1.bf16.msra.mxu0 %v2283
        %2327 = vmatprep.subr.bf16.mxu0 %v2280
        %2328 = vmatpush1.bf16.msra.mxu0 %v2279
        %2329 = vmatprep.subr.bf16.mxu0 %v2276
        %2330 = vmatpush1.bf16.msra.mxu0 %v2275
        %2331 = vmatprep.subr.bf16.mxu0 %v2272
        %2332 = vmatpush1.bf16.msra.mxu0 %v2271
        %2333 = vmatprep.subr.bf16.mxu0 %v2268
        %2334 = vmatpush1.bf16.msra.mxu0 %v2267
        %2335 = vmatprep.subr.bf16.mxu0 %v2264
        %2336 = vmatpush1.bf16.msra.mxu0 %v2263
        %2337 = vmatprep.subr.bf16.mxu0 %v2260
        %2338 = vmatpush1.bf16.msra.mxu0 %v2259
        %2339 = vmatprep.subr.bf16.mxu0 0
        %2340 = vmatpush2.bf16.msra.mxu0 0
        %2341 = vmatprep.subr.bf16.mxu0 0
        %2342 = vmatpush2.bf16.msra.mxu0 0
        %2343 = vmatprep.subr.bf16.mxu0 0
        %2344 = vmatpush2.bf16.msra.mxu0 0
        %2345 = vmatprep.subr.bf16.mxu0 0
        %2346 = vmatpush2.bf16.msra.mxu0 0
        %2347 = vmatprep.subr.bf16.mxu0 0
        %2348 = vmatpush2.bf16.msra.mxu0 0
        %2349 = vmatprep.subr.bf16.mxu0 0
        %2350 = vmatpush2.bf16.msra.mxu0 0
        %2351 = vmatprep.subr.bf16.mxu0 0
        %2352 = vmatpush2.bf16.msra.mxu0 0
        %2353 = vmatprep.subr.bf16.mxu0 0
        %2354 = vmatpush2.bf16.msra.mxu0 0
        %2355 = vmatprep.mubr.bf16.mxu0 0
        %2356 = vmatmul.mubr.bf16.gmra.mxu0 %v2108
        %v2357 = vpop.f32.mrf.mxu0
        %v2358 = vadd.f32 %v2146, %v2357
        %v2359 = vpop.f32.mrf.mxu0
        %v2360 = vadd.f32 %v2150, %v2359
        %v2361 = vpop.f32.mrf.mxu0
        %v2362 = vadd.f32 %v2146, %v2361
        %v2363 = vpop.f32.mrf.mxu0
        %v2364 = vadd.f32 %v2150, %v2363
        %2365 = vdwg.mxu0
        %2366 = vmatprep.subr.bf16.mxu0 %v2290
        %2367 = vmatpush1.bf16.msra.mxu0 %v2289
        %2368 = vmatprep.subr.bf16.mxu0 %v2286
        %2369 = vmatpush1.bf16.msra.mxu0 %v2285
        %2370 = vmatprep.subr.bf16.mxu0 %v2282
        %2371 = vmatpush1.bf16.msra.mxu0 %v2281
        %2372 = vmatprep.subr.bf16.mxu0 %v2278
        %2373 = vmatpush1.bf16.msra.mxu0 %v2277
        %2374 = vmatprep.subr.bf16.mxu0 %v2274
        %2375 = vmatpush1.bf16.msra.mxu0 %v2273
        %2376 = vmatprep.subr.bf16.mxu0 %v2270
        %2377 = vmatpush1.bf16.msra.mxu0 %v2269
        %2378 = vmatprep.subr.bf16.mxu0 %v2266
        %2379 = vmatpush1.bf16.msra.mxu0 %v2265
        %2380 = vmatprep.subr.bf16.mxu0 %v2262
        %2381 = vmatpush1.bf16.msra.mxu0 %v2261
        %2382 = vmatprep.subr.bf16.mxu0 0
        %2383 = vmatpush2.bf16.msra.mxu0 0
        %2384 = vmatprep.subr.bf16.mxu0 0
        %2385 = vmatpush2.bf16.msra.mxu0 0
        %2386 = vmatprep.subr.bf16.mxu0 0
        %2387 = vmatpush2.bf16.msra.mxu0 0
        %2388 = vmatprep.subr.bf16.mxu0 0
        %2389 = vmatpush2.bf16.msra.mxu0 0
        %2390 = vmatprep.subr.bf16.mxu0 0
        %2391 = vmatpush2.bf16.msra.mxu0 0
        %2392 = vmatprep.subr.bf16.mxu0 0
        %2393 = vmatpush2.bf16.msra.mxu0 0
        %2394 = vmatprep.subr.bf16.mxu0 0
        %2395 = vmatpush2.bf16.msra.mxu0 0
        %2396 = vmatprep.subr.bf16.mxu0 0
        %2397 = vmatpush2.bf16.msra.mxu0 0
        %2398 = vmatprep.mubr.bf16.mxu0 0
        %2399 = vmatmul.mubr.bf16.gmra.mxu0 %v2108
        %v2400 = vpop.f32.mrf.mxu0
        %v2401 = vadd.f32 %v2154, %v2400
        %v2402 = vpop.f32.mrf.mxu0
        %v2403 = vadd.f32 %v2158, %v2402
        %v2404 = vpop.f32.mrf.mxu0
        %v2405 = vadd.f32 %v2154, %v2404
        %v2406 = vpop.f32.mrf.mxu0
        %v2407 = vadd.f32 %v2158, %v2406
        %2408 = vdwg.mxu0
        %v2409 = vmul.f32 %v2358, -1.702
        %v2410 = vmul.f32 %v2360, -1.702
        %v2411 = vmul.f32 %v2401, -1.702
        %v2412 = vmul.f32 %v2403, -1.702
        %v2413 = vmul.f32 %v2362, -1.702
        %v2414 = vmul.f32 %v2364, -1.702
        %v2415 = vmul.f32 %v2405, -1.702
        %v2416 = vmul.f32 %v2407, -1.702
        %v2417 = vmul.f32 %v2409, 1.442695
        %v2418 = vpow.pop %v2417
        %v2419 = vmul.f32 %v2410, 1.442695
        %v2420 = vpow.pop %v2419
        %v2421 = vmul.f32 %v2411, 1.442695
        %v2422 = vpow.pop %v2421
        %v2423 = vmul.f32 %v2412, 1.442695
        %v2424 = vpow.pop %v2423
        %v2425 = vmul.f32 %v2413, 1.442695
        %v2426 = vpow.pop %v2425
        %v2427 = vmul.f32 %v2414, 1.442695
        %v2428 = vpow.pop %v2427
        %v2429 = vmul.f32 %v2415, 1.442695
        %v2430 = vpow.pop %v2429
        %v2431 = vmul.f32 %v2416, 1.442695
        %v2432 = vpow.pop %v2431
        %v2433 = vadd.f32 %v2418, 1.0
        %v2434 = vadd.f32 %v2420, 1.0
        %v2435 = vadd.f32 %v2422, 1.0
        %v2436 = vadd.f32 %v2424, 1.0
        %v2437 = vadd.f32 %v2426, 1.0
        %v2438 = vadd.f32 %v2428, 1.0
        %v2439 = vadd.f32 %v2430, 1.0
        %v2440 = vadd.f32 %v2432, 1.0
        %v2441 = vrcp.pop %v2433
        %v2442 = vmul.f32 1.0, %v2441
        %v2443 = vrcp.pop %v2434
        %v2444 = vmul.f32 1.0, %v2443
        %v2445 = vrcp.pop %v2435
        %v2446 = vmul.f32 1.0, %v2445
        %v2447 = vrcp.pop %v2436
        %v2448 = vmul.f32 1.0, %v2447
        %v2449 = vrcp.pop %v2437
        %v2450 = vmul.f32 1.0, %v2449
        %v2451 = vrcp.pop %v2438
        %v2452 = vmul.f32 1.0, %v2451
        %v2453 = vrcp.pop %v2439
        %v2454 = vmul.f32 1.0, %v2453
        %v2455 = vrcp.pop %v2440
        %v2456 = vmul.f32 1.0, %v2455
        %v2457 = vmul.f32 %v2358, %v2442
        %v2458 = vmul.f32 %v2360, %v2444
        %v2459 = vmul.f32 %v2401, %v2446
        %v2460 = vmul.f32 %v2403, %v2448
        %v2461 = vmul.f32 %v2362, %v2450
        %v2462 = vmul.f32 %v2364, %v2452
        %v2463 = vmul.f32 %v2405, %v2454
        %v2464 = vmul.f32 %v2407, %v2456
        %v2465 = vpack.c.bf16 %v2461, %v2457
        %v2466 = vpack.c.bf16 %v2462, %v2458
        %v2467 = vpack.c.bf16 %v2463, %v2459
        %v2468 = vpack.c.bf16 %v2464, %v2460
        %v2469 = vld [vmem:[%s844] sm:$0xf]
        %v2470 = vld [vmem:[%s844 + $0x4] sm:$0xf]
        %v2471 = vld [vmem:[%s844 + $0x8] sm:$0xf]
        %v2472 = vld [vmem:[%s844 + $0xc] sm:$0xf]
        %v2473 = vld [vmem:[%s844 + $0x10] sm:$0xf]
        %v2474 = vld [vmem:[%s844 + $0x14] sm:$0xf]
        %v2475 = vld [vmem:[%s844 + $0x18] sm:$0xf]
        %v2476 = vld [vmem:[%s844 + $0x1c] sm:$0xf]
        %v2477 = vld [vmem:[%s844 + $0x20] sm:$0xf]
        %v2478 = vld [vmem:[%s844 + $0x24] sm:$0xf]
        %v2479 = vld [vmem:[%s844 + $0x28] sm:$0xf]
        %v2480 = vld [vmem:[%s844 + $0x2c] sm:$0xf]
        %v2481 = vld [vmem:[%s844 + $0x30] sm:$0xf]
        %v2482 = vld [vmem:[%s844 + $0x34] sm:$0xf]
        %v2483 = vld [vmem:[%s844 + $0x38] sm:$0xf]
        %v2484 = vld [vmem:[%s844 + $0x3c] sm:$0xf]
        %v2485 = vld [vmem:[%s844 + $0x40] sm:$0xf]
        %v2486 = vld [vmem:[%s844 + $0x44] sm:$0xf]
        %v2487 = vld [vmem:[%s844 + $0x48] sm:$0xf]
        %v2488 = vld [vmem:[%s844 + $0x4c] sm:$0xf]
        %v2489 = vld [vmem:[%s844 + $0x50] sm:$0xf]
        %v2490 = vld [vmem:[%s844 + $0x54] sm:$0xf]
        %v2491 = vld [vmem:[%s844 + $0x58] sm:$0xf]
        %v2492 = vld [vmem:[%s844 + $0x5c] sm:$0xf]
        %v2493 = vld [vmem:[%s844 + $0x60] sm:$0xf]
        %v2494 = vld [vmem:[%s844 + $0x64] sm:$0xf]
        %v2495 = vld [vmem:[%s844 + $0x68] sm:$0xf]
        %v2496 = vld [vmem:[%s844 + $0x6c] sm:$0xf]
        %v2497 = vld [vmem:[%s844 + $0x70] sm:$0xf]
        %v2498 = vld [vmem:[%s844 + $0x74] sm:$0xf]
        %v2499 = vld [vmem:[%s844 + $0x78] sm:$0xf]
        %v2500 = vld [vmem:[%s844 + $0x7c] sm:$0xf]
        %v2501 = vld [vmem:[%s844 + $0x80] sm:$0xf]
        %v2502 = vld [vmem:[%s844 + $0x84] sm:$0xf]
        %v2503 = vld [vmem:[%s844 + $0x88] sm:$0xf]
        %v2504 = vld [vmem:[%s844 + $0x8c] sm:$0xf]
        %v2505 = vld [vmem:[%s844 + $0x90] sm:$0xf]
        %v2506 = vld [vmem:[%s844 + $0x94] sm:$0xf]
        %v2507 = vld [vmem:[%s844 + $0x98] sm:$0xf]
        %v2508 = vld [vmem:[%s844 + $0x9c] sm:$0xf]
        %v2509 = vld [vmem:[%s844 + $0xa0] sm:$0xf]
        %v2510 = vld [vmem:[%s844 + $0xa4] sm:$0xf]
        %v2511 = vld [vmem:[%s844 + $0xa8] sm:$0xf]
        %v2512 = vld [vmem:[%s844 + $0xac] sm:$0xf]
        %v2513 = vld [vmem:[%s844 + $0xb0] sm:$0xf]
        %v2514 = vld [vmem:[%s844 + $0xb4] sm:$0xf]
        %v2515 = vld [vmem:[%s844 + $0xb8] sm:$0xf]
        %v2516 = vld [vmem:[%s844 + $0xbc] sm:$0xf]
        %v2517 = vld [vmem:[%s844 + $0xc0] sm:$0xf]
        %v2518 = vld [vmem:[%s844 + $0xc4] sm:$0xf]
        %v2519 = vld [vmem:[%s844 + $0xc8] sm:$0xf]
        %v2520 = vld [vmem:[%s844 + $0xcc] sm:$0xf]
        %v2521 = vld [vmem:[%s844 + $0xd0] sm:$0xf]
        %v2522 = vld [vmem:[%s844 + $0xd4] sm:$0xf]
        %v2523 = vld [vmem:[%s844 + $0xd8] sm:$0xf]
        %v2524 = vld [vmem:[%s844 + $0xdc] sm:$0xf]
        %v2525 = vld [vmem:[%s844 + $0xe0] sm:$0xf]
        %v2526 = vld [vmem:[%s844 + $0xe4] sm:$0xf]
        %v2527 = vld [vmem:[%s844 + $0xe8] sm:$0xf]
        %v2528 = vld [vmem:[%s844 + $0xec] sm:$0xf]
        %v2529 = vld [vmem:[%s844 + $0xf0] sm:$0xf]
        %v2530 = vld [vmem:[%s844 + $0xf4] sm:$0xf]
        %v2531 = vld [vmem:[%s844 + $0xf8] sm:$0xf]
        %v2532 = vld [vmem:[%s844 + $0xfc] sm:$0xf]
        %v2533 = vld [vmem:[%s957] sm:$0x1]
        %v2535 = vlaneseq
        %v2536 = vshrl.u32 %v2535, 7
        %v2537 = vsub.s32 0, %v2536
        %v2538 = vrot.slane %v2533, %v2537
        %v2604 = vunpack.c.l.b16 %v2469
        %v2605 = vunpack.c.l.b16 %v2470
        %v2606 = vunpack.c.l.b16 %v2471
        %v2607 = vunpack.c.l.b16 %v2472
        %v2608 = vunpack.c.l.b16 %v2473
        %v2609 = vunpack.c.l.b16 %v2474
        %v2610 = vunpack.c.l.b16 %v2475
        %v2611 = vunpack.c.l.b16 %v2476
        %v2612 = vunpack.c.l.b16 %v2477
        %v2613 = vunpack.c.l.b16 %v2478
        %v2614 = vunpack.c.l.b16 %v2479
        %v2615 = vunpack.c.l.b16 %v2480
        %v2616 = vunpack.c.l.b16 %v2481
        %v2617 = vunpack.c.l.b16 %v2482
        %v2618 = vunpack.c.l.b16 %v2483
        %v2619 = vunpack.c.l.b16 %v2484
        %v2620 = vunpack.c.l.b16 %v2485
        %v2621 = vunpack.c.l.b16 %v2486
        %v2622 = vunpack.c.l.b16 %v2487
        %v2623 = vunpack.c.l.b16 %v2488
        %v2624 = vunpack.c.l.b16 %v2489
        %v2625 = vunpack.c.l.b16 %v2490
        %v2626 = vunpack.c.l.b16 %v2491
        %v2627 = vunpack.c.l.b16 %v2492
        %v2628 = vunpack.c.l.b16 %v2493
        %v2629 = vunpack.c.l.b16 %v2494
        %v2630 = vunpack.c.l.b16 %v2495
        %v2631 = vunpack.c.l.b16 %v2496
        %v2632 = vunpack.c.l.b16 %v2497
        %v2633 = vunpack.c.l.b16 %v2498
        %v2634 = vunpack.c.l.b16 %v2499
        %v2635 = vunpack.c.l.b16 %v2500
        %v2636 = vunpack.c.l.b16 %v2501
        %v2637 = vunpack.c.l.b16 %v2502
        %v2638 = vunpack.c.l.b16 %v2503
        %v2639 = vunpack.c.l.b16 %v2504
        %v2640 = vunpack.c.l.b16 %v2505
        %v2641 = vunpack.c.l.b16 %v2506
        %v2642 = vunpack.c.l.b16 %v2507
        %v2643 = vunpack.c.l.b16 %v2508
        %v2644 = vunpack.c.l.b16 %v2509
        %v2645 = vunpack.c.l.b16 %v2510
        %v2646 = vunpack.c.l.b16 %v2511
        %v2647 = vunpack.c.l.b16 %v2512
        %v2648 = vunpack.c.l.b16 %v2513
        %v2649 = vunpack.c.l.b16 %v2514
        %v2650 = vunpack.c.l.b16 %v2515
        %v2651 = vunpack.c.l.b16 %v2516
        %v2652 = vunpack.c.l.b16 %v2517
        %v2653 = vunpack.c.l.b16 %v2518
        %v2654 = vunpack.c.l.b16 %v2519
        %v2655 = vunpack.c.l.b16 %v2520
        %v2656 = vunpack.c.l.b16 %v2521
        %v2657 = vunpack.c.l.b16 %v2522
        %v2658 = vunpack.c.l.b16 %v2523
        %v2659 = vunpack.c.l.b16 %v2524
        %v2660 = vunpack.c.l.b16 %v2525
        %v2661 = vunpack.c.l.b16 %v2526
        %v2662 = vunpack.c.l.b16 %v2527
        %v2663 = vunpack.c.l.b16 %v2528
        %v2664 = vunpack.c.l.b16 %v2529
        %v2665 = vunpack.c.l.b16 %v2530
        %v2666 = vunpack.c.l.b16 %v2531
        %v2667 = vunpack.c.l.b16 %v2532
        %v2668 = vpack.c.b16 %v2605, %v2604
        %v2669 = vpack.c.b16 %v2607, %v2606
        %v2670 = vpack.c.b16 %v2609, %v2608
        %v2671 = vpack.c.b16 %v2611, %v2610
        %v2672 = vpack.c.b16 %v2613, %v2612
        %v2673 = vpack.c.b16 %v2615, %v2614
        %v2674 = vpack.c.b16 %v2617, %v2616
        %v2675 = vpack.c.b16 %v2619, %v2618
        %v2676 = vpack.c.b16 %v2621, %v2620
        %v2677 = vpack.c.b16 %v2623, %v2622
        %v2678 = vpack.c.b16 %v2625, %v2624
        %v2679 = vpack.c.b16 %v2627, %v2626
        %v2680 = vpack.c.b16 %v2629, %v2628
        %v2681 = vpack.c.b16 %v2631, %v2630
        %v2682 = vpack.c.b16 %v2633, %v2632
        %v2683 = vpack.c.b16 %v2635, %v2634
        %v2684 = vpack.c.b16 %v2637, %v2636
        %v2685 = vpack.c.b16 %v2639, %v2638
        %v2686 = vpack.c.b16 %v2641, %v2640
        %v2687 = vpack.c.b16 %v2643, %v2642
        %v2688 = vpack.c.b16 %v2645, %v2644
        %v2689 = vpack.c.b16 %v2647, %v2646
        %v2690 = vpack.c.b16 %v2649, %v2648
        %v2691 = vpack.c.b16 %v2651, %v2650
        %v2692 = vpack.c.b16 %v2653, %v2652
        %v2693 = vpack.c.b16 %v2655, %v2654
        %v2694 = vpack.c.b16 %v2657, %v2656
        %v2695 = vpack.c.b16 %v2659, %v2658
        %v2696 = vpack.c.b16 %v2661, %v2660
        %v2697 = vpack.c.b16 %v2663, %v2662
        %v2698 = vpack.c.b16 %v2665, %v2664
        %v2699 = vpack.c.b16 %v2667, %v2666
        %2732 = vmatprep.subr.bf16.mxu0 0
        %2733 = vmatpush1.bf16.msra.mxu0 %v2675
        %2734 = vmatprep.subr.bf16.mxu0 0
        %2735 = vmatpush1.bf16.msra.mxu0 %v2674
        %2736 = vmatprep.subr.bf16.mxu0 0
        %2737 = vmatpush1.bf16.msra.mxu0 %v2673
        %2738 = vmatprep.subr.bf16.mxu0 0
        %2739 = vmatpush1.bf16.msra.mxu0 %v2672
        %2740 = vmatprep.subr.bf16.mxu0 0
        %2741 = vmatpush1.bf16.msra.mxu0 %v2671
        %2742 = vmatprep.subr.bf16.mxu0 0
        %2743 = vmatpush1.bf16.msra.mxu0 %v2670
        %2744 = vmatprep.subr.bf16.mxu0 0
        %2745 = vmatpush1.bf16.msra.mxu0 %v2669
        %2746 = vmatprep.subr.bf16.mxu0 0
        %2747 = vmatpush1.bf16.msra.mxu0 %v2668
        %2748 = vmatprep.subr.bf16.mxu0 0
        %2749 = vmatpush2.bf16.msra.mxu0 %v2683
        %2750 = vmatprep.subr.bf16.mxu0 0
        %2751 = vmatpush2.bf16.msra.mxu0 %v2682
        %2752 = vmatprep.subr.bf16.mxu0 0
        %2753 = vmatpush2.bf16.msra.mxu0 %v2681
        %2754 = vmatprep.subr.bf16.mxu0 0
        %2755 = vmatpush2.bf16.msra.mxu0 %v2680
        %2756 = vmatprep.subr.bf16.mxu0 0
        %2757 = vmatpush2.bf16.msra.mxu0 %v2679
        %2758 = vmatprep.subr.bf16.mxu0 0
        %2759 = vmatpush2.bf16.msra.mxu0 %v2678
        %2760 = vmatprep.subr.bf16.mxu0 0
        %2761 = vmatpush2.bf16.msra.mxu0 %v2677
        %2762 = vmatprep.subr.bf16.mxu0 0
        %2763 = vmatpush2.bf16.msra.mxu0 %v2676
        %2764 = vmatprep.mubr.bf16.mxu0 %v2466
        %2765 = vmatmul.mubr.bf16.gmra.mxu0 %v2465
        %v2766 = vpop.f32.mrf.mxu0
        %v2767 = vadd.f32 %v2538, %v2766
        %v2768 = vpop.f32.mrf.mxu0
        %v2769 = vpop.f32.mrf.mxu0
        %v2770 = vadd.f32 %v2538, %v2769
        %v2771 = vpop.f32.mrf.mxu0
        %2772 = vdwg.mxu0
        %2773 = vmatprep.subr.bf16.mxu0 0
        %2774 = vmatpush1.bf16.msra.mxu0 %v2691
        %2775 = vmatprep.subr.bf16.mxu0 0
        %2776 = vmatpush1.bf16.msra.mxu0 %v2690
        %2777 = vmatprep.subr.bf16.mxu0 0
        %2778 = vmatpush1.bf16.msra.mxu0 %v2689
        %2779 = vmatprep.subr.bf16.mxu0 0
        %2780 = vmatpush1.bf16.msra.mxu0 %v2688
        %2781 = vmatprep.subr.bf16.mxu0 0
        %2782 = vmatpush1.bf16.msra.mxu0 %v2687
        %2783 = vmatprep.subr.bf16.mxu0 0
        %2784 = vmatpush1.bf16.msra.mxu0 %v2686
        %2785 = vmatprep.subr.bf16.mxu0 0
        %2786 = vmatpush1.bf16.msra.mxu0 %v2685
        %2787 = vmatprep.subr.bf16.mxu0 0
        %2788 = vmatpush1.bf16.msra.mxu0 %v2684
        %2789 = vmatprep.subr.bf16.mxu0 0
        %2790 = vmatpush2.bf16.msra.mxu0 %v2699
        %2791 = vmatprep.subr.bf16.mxu0 0
        %2792 = vmatpush2.bf16.msra.mxu0 %v2698
        %2793 = vmatprep.subr.bf16.mxu0 0
        %2794 = vmatpush2.bf16.msra.mxu0 %v2697
        %2795 = vmatprep.subr.bf16.mxu0 0
        %2796 = vmatpush2.bf16.msra.mxu0 %v2696
        %2797 = vmatprep.subr.bf16.mxu0 0
        %2798 = vmatpush2.bf16.msra.mxu0 %v2695
        %2799 = vmatprep.subr.bf16.mxu0 0
        %2800 = vmatpush2.bf16.msra.mxu0 %v2694
        %2801 = vmatprep.subr.bf16.mxu0 0
        %2802 = vmatpush2.bf16.msra.mxu0 %v2693
        %2803 = vmatprep.subr.bf16.mxu0 0
        %2804 = vmatpush2.bf16.msra.mxu0 %v2692
        %2805 = vmatprep.mubr.bf16.mxu0 %v2468
        %2806 = vmatmul.mubr.bf16.gmra.mxu0 %v2467
        %v2807 = vpop.f32.mrf.mxu0
        %v2808 = vadd.f32 %v2767, %v2807
        %v2809 = vpop.f32.mrf.mxu0
        %v2810 = vpop.f32.mrf.mxu0
        %v2811 = vadd.f32 %v2770, %v2810
        %v2812 = vpop.f32.mrf.mxu0
        %2813 = vdwg.mxu0
        %v2814 = vadd.f32 %v2066, %v2808
        %v2815 = vadd.f32 %v2067, %v2811
        %2816 = vst [vmem:[#allocation2] sm:$0xff] %v2814
        %2817 = vst [vmem:[#allocation2 + $0x8] sm:$0xff] %v2815
        %p2818 = scmp.eq.s32.totalorder %s49, 1
        // Predicated region
        $region141: #{tpu_custom_call.1} parent=91 // pred_check
          %p2819 = pneg %p2818
        $region142: #{tpu_custom_call.1} parent=91 // pred_check_branch
          %2821 = sbr.rel (%p2819) target = $region144
        $region143: #{tpu_custom_call.1} parent=91 // pred_region
          %v2822 = vld [vmem:[#allocation3] sm:$0x3]
          %v2824 = vsel %vm1360, %v2822, 0
          %2826 = vmatprep.subr.mxu0 0.0
          %2827 = vmatpush1.msra.mxu0 0.0
          %2828 = vmatprep.subr.mxu0 0.0
          %2829 = vmatpush1.msra.mxu0 0.0
          %2830 = vmatprep.subr.mxu0 0.0
          %2831 = vmatpush1.msra.mxu0 0.0
          %2832 = vmatprep.subr.mxu0 0.0
          %2833 = vmatpush1.msra.mxu0 0.0
          %2834 = vmatprep.subr.mxu0 0.0
          %2835 = vmatpush1.msra.mxu0 0.0
          %2836 = vmatprep.subr.mxu0 0.0
          %2837 = vmatpush1.msra.mxu0 0.0
          %2838 = vmatprep.subr.mxu0 0.0
          %2839 = vmatpush1.msra.mxu0 0.0
          %2840 = vmatprep.subr.mxu0 0.0
          %2841 = vmatpush1.msra.mxu0 0.0
          %2842 = vmatprep.subr.mxu0 0.0
          %2843 = vmatpush1.msra.mxu0 0.0
          %2844 = vmatprep.subr.mxu0 0.0
          %2845 = vmatpush1.msra.mxu0 0.0
          %2846 = vmatprep.subr.mxu0 0.0
          %2847 = vmatpush1.msra.mxu0 0.0
          %2848 = vmatprep.subr.mxu0 0.0
          %2849 = vmatpush1.msra.mxu0 0.0
          %2850 = vmatprep.subr.mxu0 0.0
          %2851 = vmatpush1.msra.mxu0 0.0
          %2852 = vmatprep.subr.mxu0 0.0
          %2853 = vmatpush1.msra.mxu0 0.0
          %2854 = vmatprep.subr.mxu0 0.0
          %2855 = vmatpush1.msra.mxu0 0.0
          %2856 = vmatprep.subr.mxu0 0.0
          %2857 = vmatpush1.msra.mxu0 %v2814
          %2858 = vmatprep.subr.mxu0 0.0
          %2859 = vmatpush2.msra.mxu0 0.0
          %2860 = vmatprep.subr.mxu0 0.0
          %2861 = vmatpush2.msra.mxu0 0.0
          %2862 = vmatprep.subr.mxu0 0.0
          %2863 = vmatpush2.msra.mxu0 0.0
          %2864 = vmatprep.subr.mxu0 0.0
          %2865 = vmatpush2.msra.mxu0 0.0
          %2866 = vmatprep.subr.mxu0 0.0
          %2867 = vmatpush2.msra.mxu0 0.0
          %2868 = vmatprep.subr.mxu0 0.0
          %2869 = vmatpush2.msra.mxu0 0.0
          %2870 = vmatprep.subr.mxu0 0.0
          %2871 = vmatpush2.msra.mxu0 0.0
          %2872 = vmatprep.subr.mxu0 0.0
          %2873 = vmatpush2.msra.mxu0 0.0
          %2874 = vmatprep.subr.mxu0 0.0
          %2875 = vmatpush2.msra.mxu0 0.0
          %2876 = vmatprep.subr.mxu0 0.0
          %2877 = vmatpush2.msra.mxu0 0.0
          %2878 = vmatprep.subr.mxu0 0.0
          %2879 = vmatpush2.msra.mxu0 0.0
          %2880 = vmatprep.subr.mxu0 0.0
          %2881 = vmatpush2.msra.mxu0 0.0
          %2882 = vmatprep.subr.mxu0 0.0
          %2883 = vmatpush2.msra.mxu0 0.0
          %2884 = vmatprep.subr.mxu0 0.0
          %2885 = vmatpush2.msra.mxu0 0.0
          %2886 = vmatprep.subr.mxu0 0.0
          %2887 = vmatpush2.msra.mxu0 0.0
          %2888 = vmatprep.subr.mxu0 0.0
          %2889 = vmatpush2.msra.mxu0 0.0
          %2890 = vmatprep.mubr.f32.mxu0 0.0
          %2891 = vmatmul.mubr.f32.gmra.mxu0 %v2824
          %v2892 = vpop.f32.mrf.mxu0
          %v2893 = vadd.f32 0.0, %v2892
          %v2894 = vpop.f32.mrf.mxu0
          %2895 = vdwg.mxu0
          %v2896 = vrot.slane %v2822, 1
          %v2897 = vsel %vm1360, %v2896, 0
          %2899 = vmatprep.subr.mxu0 0.0
          %2900 = vmatpush1.msra.mxu0 0.0
          %2901 = vmatprep.subr.mxu0 0.0
          %2902 = vmatpush1.msra.mxu0 0.0
          %2903 = vmatprep.subr.mxu0 0.0
          %2904 = vmatpush1.msra.mxu0 0.0
          %2905 = vmatprep.subr.mxu0 0.0
          %2906 = vmatpush1.msra.mxu0 0.0
          %2907 = vmatprep.subr.mxu0 0.0
          %2908 = vmatpush1.msra.mxu0 0.0
          %2909 = vmatprep.subr.mxu0 0.0
          %2910 = vmatpush1.msra.mxu0 0.0
          %2911 = vmatprep.subr.mxu0 0.0
          %2912 = vmatpush1.msra.mxu0 0.0
          %2913 = vmatprep.subr.mxu0 0.0
          %2914 = vmatpush1.msra.mxu0 0.0
          %2915 = vmatprep.subr.mxu0 0.0
          %2916 = vmatpush1.msra.mxu0 0.0
          %2917 = vmatprep.subr.mxu0 0.0
          %2918 = vmatpush1.msra.mxu0 0.0
          %2919 = vmatprep.subr.mxu0 0.0
          %2920 = vmatpush1.msra.mxu0 0.0
          %2921 = vmatprep.subr.mxu0 0.0
          %2922 = vmatpush1.msra.mxu0 0.0
          %2923 = vmatprep.subr.mxu0 0.0
          %2924 = vmatpush1.msra.mxu0 0.0
          %2925 = vmatprep.subr.mxu0 0.0
          %2926 = vmatpush1.msra.mxu0 0.0
          %2927 = vmatprep.subr.mxu0 0.0
          %2928 = vmatpush1.msra.mxu0 0.0
          %2929 = vmatprep.subr.mxu0 0.0
          %2930 = vmatpush1.msra.mxu0 %v2815
          %2931 = vmatprep.subr.mxu0 0.0
          %2932 = vmatpush2.msra.mxu0 0.0
          %2933 = vmatprep.subr.mxu0 0.0
          %2934 = vmatpush2.msra.mxu0 0.0
          %2935 = vmatprep.subr.mxu0 0.0
          %2936 = vmatpush2.msra.mxu0 0.0
          %2937 = vmatprep.subr.mxu0 0.0
          %2938 = vmatpush2.msra.mxu0 0.0
          %2939 = vmatprep.subr.mxu0 0.0
          %2940 = vmatpush2.msra.mxu0 0.0
          %2941 = vmatprep.subr.mxu0 0.0
          %2942 = vmatpush2.msra.mxu0 0.0
          %2943 = vmatprep.subr.mxu0 0.0
          %2944 = vmatpush2.msra.mxu0 0.0
          %2945 = vmatprep.subr.mxu0 0.0
          %2946 = vmatpush2.msra.mxu0 0.0
          %2947 = vmatprep.subr.mxu0 0.0
          %2948 = vmatpush2.msra.mxu0 0.0
          %2949 = vmatprep.subr.mxu0 0.0
          %2950 = vmatpush2.msra.mxu0 0.0
          %2951 = vmatprep.subr.mxu0 0.0
          %2952 = vmatpush2.msra.mxu0 0.0
          %2953 = vmatprep.subr.mxu0 0.0
          %2954 = vmatpush2.msra.mxu0 0.0
          %2955 = vmatprep.subr.mxu0 0.0
          %2956 = vmatpush2.msra.mxu0 0.0
          %2957 = vmatprep.subr.mxu0 0.0
          %2958 = vmatpush2.msra.mxu0 0.0
          %2959 = vmatprep.subr.mxu0 0.0
          %2960 = vmatpush2.msra.mxu0 0.0
          %2961 = vmatprep.subr.mxu0 0.0
          %2962 = vmatpush2.msra.mxu0 0.0
          %2963 = vmatprep.mubr.f32.mxu0 0.0
          %2964 = vmatmul.mubr.f32.gmra.mxu0 %v2897
          %v2965 = vpop.f32.mrf.mxu0
          %v2966 = vadd.f32 0.0, %v2965
          %v2967 = vpop.f32.mrf.mxu0
          %2968 = vdwg.mxu0
          %v2970 = vrot.slane %v2966, 7
          %vm2972 = vcmask 1040384
          %v2973 = vsel %vm2972, %v2893, %v2970
          %v2974 = vld [vmem:[%s15] sm:$0x1]
          %v2975 = vld [vmem:[%s16] sm:$0x1]
          %vm2976 = vcmask 1041408
          %v2977 = vsel %vm2976, %v2973, 0.0
          %2978 = vadd.xlane.f32.xlu0 %v2977
          %v2979 = vpop.xlane.xlu0 %2978
          %v2980 = vmul.f32 %v2979, %v979
          %v2981 = vsub.f32 %v2973, %v2980
          %v2982 = vmul.f32 %v2981, %v2981
          %v2983 = vsel %vm2976, %v2982, 0.0
          %2984 = vadd.xlane.f32.xlu0 %v2983
          %v2985 = vpop.xlane.xlu0 %2984
          %v2986 = vmul.f32 %v2985, %v979
          %v2987 = vadd.f32 %v2986, 1e-05
          %v2988 = vrsqrt.pop %v2987
          %v2989 = vmul.f32 %v2981, %v2988
          %v2991 = vlaneseq
          %v2992 = vshrl.u32 %v2991, 7
          %v2993 = vsub.s32 0, %v2992
          %v2994 = vrot.slane %v2974, %v2993
          %v2996 = vmul.f32 %v2989, %v2994
          %v2998 = vlaneseq
          %v2999 = vshrl.u32 %v2998, 7
          %v3000 = vsub.s32 0, %v2999
          %v3001 = vrot.slane %v2975, %v3000
          %v3003 = vadd.f32 %v2996, %v3001
          %v3004 = vpack.c.bf16 %v3003, %v3003
          %v3005 = vld [vmem:[#allocation20] sm:$0xf]
          %v3006 = vld [vmem:[#allocation20 + $0x4] sm:$0xf]
          %v3007 = vld [vmem:[#allocation20 + $0x8] sm:$0xf]
          %v3008 = vld [vmem:[#allocation20 + $0xc] sm:$0xf]
          %v3009 = vld [vmem:[#allocation20 + $0x10] sm:$0xf]
          %v3010 = vld [vmem:[#allocation20 + $0x14] sm:$0xf]
          %v3011 = vld [vmem:[#allocation20 + $0x18] sm:$0xf]
          %v3012 = vld [vmem:[#allocation20 + $0x1c] sm:$0xf]
          %v3013 = vld [vmem:[#allocation20 + $0x20] sm:$0xf]
          %v3014 = vld [vmem:[#allocation20 + $0x24] sm:$0xf]
          %v3015 = vld [vmem:[#allocation20 + $0x28] sm:$0xf]
          %v3016 = vld [vmem:[#allocation20 + $0x2c] sm:$0xf]
          %v3017 = vld [vmem:[#allocation20 + $0x30] sm:$0xf]
          %v3018 = vld [vmem:[#allocation20 + $0x34] sm:$0xf]
          %v3019 = vld [vmem:[#allocation20 + $0x38] sm:$0xf]
          %v3020 = vld [vmem:[#allocation20 + $0x3c] sm:$0xf]
          %v3037 = vunpack.c.l.b16 %v3005
          %v3038 = vunpack.c.l.b16 %v3006
          %v3039 = vunpack.c.l.b16 %v3007
          %v3040 = vunpack.c.l.b16 %v3008
          %v3041 = vunpack.c.l.b16 %v3009
          %v3042 = vunpack.c.l.b16 %v3010
          %v3043 = vunpack.c.l.b16 %v3011
          %v3044 = vunpack.c.l.b16 %v3012
          %v3045 = vunpack.c.l.b16 %v3013
          %v3046 = vunpack.c.l.b16 %v3014
          %v3047 = vunpack.c.l.b16 %v3015
          %v3048 = vunpack.c.l.b16 %v3016
          %v3049 = vunpack.c.l.b16 %v3017
          %v3050 = vunpack.c.l.b16 %v3018
          %v3051 = vunpack.c.l.b16 %v3019
          %v3052 = vunpack.c.l.b16 %v3020
          %v3053 = vpack.c.b16 %v3038, %v3037
          %v3054 = vpack.c.b16 %v3040, %v3039
          %v3055 = vpack.c.b16 %v3042, %v3041
          %v3056 = vpack.c.b16 %v3044, %v3043
          %v3057 = vpack.c.b16 %v3046, %v3045
          %v3058 = vpack.c.b16 %v3048, %v3047
          %v3059 = vpack.c.b16 %v3050, %v3049
          %v3060 = vpack.c.b16 %v3052, %v3051
          %3069 = vmatprep.subr.bf16.mxu0 0
          %3070 = vmatpush1.bf16.msra.mxu0 %v3060
          %3071 = vmatprep.subr.bf16.mxu0 0
          %3072 = vmatpush1.bf16.msra.mxu0 %v3059
          %3073 = vmatprep.subr.bf16.mxu0 0
          %3074 = vmatpush1.bf16.msra.mxu0 %v3058
          %3075 = vmatprep.subr.bf16.mxu0 0
          %3076 = vmatpush1.bf16.msra.mxu0 %v3057
          %3077 = vmatprep.subr.bf16.mxu0 0
          %3078 = vmatpush1.bf16.msra.mxu0 %v3056
          %3079 = vmatprep.subr.bf16.mxu0 0
          %3080 = vmatpush1.bf16.msra.mxu0 %v3055
          %3081 = vmatprep.subr.bf16.mxu0 0
          %3082 = vmatpush1.bf16.msra.mxu0 %v3054
          %3083 = vmatprep.subr.bf16.mxu0 0
          %3084 = vmatpush1.bf16.msra.mxu0 %v3053
          %3085 = vmatprep.subr.bf16.mxu0 0
          %3086 = vmatpush2.bf16.msra.mxu0 0
          %3087 = vmatprep.subr.bf16.mxu0 0
          %3088 = vmatpush2.bf16.msra.mxu0 0
          %3089 = vmatprep.subr.bf16.mxu0 0
          %3090 = vmatpush2.bf16.msra.mxu0 0
          %3091 = vmatprep.subr.bf16.mxu0 0
          %3092 = vmatpush2.bf16.msra.mxu0 0
          %3093 = vmatprep.subr.bf16.mxu0 0
          %3094 = vmatpush2.bf16.msra.mxu0 0
          %3095 = vmatprep.subr.bf16.mxu0 0
          %3096 = vmatpush2.bf16.msra.mxu0 0
          %3097 = vmatprep.subr.bf16.mxu0 0
          %3098 = vmatpush2.bf16.msra.mxu0 0
          %3099 = vmatprep.subr.bf16.mxu0 0
          %3100 = vmatpush2.bf16.msra.mxu0 0
          %3101 = vmatprep.mubr.bf16.mxu0 0
          %3102 = vmatmul.mubr.bf16.gmra.mxu0 %v3004
          %v3103 = vpop.f32.mrf.mxu0
          %v3104 = vadd.f32 0.0, %v3103
          %v3105 = vpop.f32.mrf.mxu0
          %v3106 = vpop.f32.mrf.mxu0
          %v3107 = vpop.f32.mrf.mxu0
          %3108 = vdwg.mxu0
          %3109 = vst [vmem:[#allocation21] sm:$0x3] %v3104
        $region144: #{tpu_custom_call.1} parent=91 // pred_fallthru
          _
        // Predicated region
        $region145: #{tpu_custom_call.1} parent=91 // pred_check
          %p3110 = pneg %p522
        $region146: #{tpu_custom_call.1} parent=91 // pred_check_branch
          %3112 = sbr.rel (%p3110) target = $region148
        $region147: #{tpu_custom_call.1} parent=91 // pred_region
          %s3114 = ssub.s32 32, 32
          %3115 = vsyncadd [#allocation5], %s3114
          %s3116 = smul.addr %s48, 32
          %s3117 = scalar_lea.hbm %s18, %s3116
          %s3119 = sshll.u32 [#allocation21], 4
          %s3120 = int_to_ptr.vmem [resolvable:$true] %s3119
          %3122 = dma.vmem_to_hbm [thread:$0]  %s3120, 32, %s3117, [#allocation5]
        $region148: #{tpu_custom_call.1} parent=91 // pred_fallthru
          _
        // Predicated region
        $region149: #{tpu_custom_call.1} parent=91 // pred_check
          %p3123 = pneg %p522
        $region150: #{tpu_custom_call.1} parent=91 // pred_check_branch
          %3125 = sbr.rel (%p3123) target = $region152
        $region151: #{tpu_custom_call.1} parent=91 // pred_region
          %3126 = dma.done [#allocation5], 32
        $region152: #{tpu_custom_call.1} parent=91 // pred_fallthru
          _
      $region92: #{tpu_custom_call.1} parent=5 // pred_fallthru
        _
      %p3127 = scmp.le.s32.totalorder 2, %s39
      // Predicated region
      $region153: #{tpu_custom_call.1} parent=5 // pred_check
        %p3128 = pneg %p3127
      $region154: #{tpu_custom_call.1} parent=5 // pred_check_branch
        %3130 = sbr.rel (%p3128) target = $region156
      $region155: #{tpu_custom_call.1} parent=5 // pred_region
        %s3131 = ssub.s32 %s39, 2
      $region156: #{tpu_custom_call.1} parent=5 // pred_fallthru
        _
    $region6: #{tpu_custom_call.1} parent=1 // loop_footer
      %s43 = sadd.s32 1, %s39
    $region7: #{tpu_custom_call.1} parent=1 // loop_footer_branch
      %38 = sbr.rel target = $region3
    $region8: #{tpu_custom_call.1} parent=1 // loop_exit
      _
    %3132 = vsyncpa [#allocation4], 1
    %s3133 = scalar_lea.sflag [#allocation4], 1
    %3134 = vsyncpa %s3133, 1
    %3135 = vsyncpa [#allocation7], 1
    %3136 = vsyncpa [#allocation10], 1
    %s3137 = scalar_lea.sflag [#allocation10], 1
    %3138 = vsyncpa %s3137, 1
    %3139 = vsyncpa [#allocation13], 1
    %s3140 = scalar_lea.sflag [#allocation13], 1
    %3141 = vsyncpa %s3140, 1
    %3142 = vsyncpa [#allocation16], 1
    %s3143 = scalar_lea.sflag [#allocation16], 1
    %3144 = vsyncpa %s3143, 1
    %3145 = vsyncpa [#allocation19], 1
    %s3146 = scalar_lea.sflag [#allocation19], 1
    %3147 = vsyncpa %s3146, 1
    %3148 = vsyncpa [#allocation5], 1
    %s3149 = scalar_lea.sflag [#allocation5], 1
    %3150 = vsyncpa %s3149, 1

</llo_original>
